<compile_context>
chip_gen: v7x
topology: tpu7x:2x2x1
jax: 0.10.0
libtpu: 0.0.40
codegen_flags: <defaults>
</compile_context>

<pallas_src>
import functools

import jax
import jax.numpy as jnp
from jax.experimental import pallas as pl
from jax.experimental.pallas import tpu as pltpu

_VMEM_LIMIT = 32 * 1024 * 1024


def _round_up(v, m):
    return ((v + m - 1) // m) * m


# ---------------------------------------------------------------------------
# Pallas kernels: fused  out = act(x @ w + b)   (bf16 operands, f32 accumulate)
# ---------------------------------------------------------------------------
def _mm_bias_act_1k_kernel(x_ref, w_ref, b_ref, o_ref, *, relu):
    # single-K-block fast path: no accumulator scratch, no pl.when
    y = jnp.dot(x_ref[...], w_ref[...], preferred_element_type=jnp.float32)
    y = y + b_ref[...]
    if relu:
        y = jnp.maximum(y, 0.0)
    o_ref[...] = y.astype(o_ref.dtype)


def _mm_bias_act_kernel(x_ref, w_ref, b_ref, o_ref, acc_ref, *, relu):
    # multi-K-block path: K streamed on an 'arbitrary' axis into an f32 VMEM scratch
    @pl.when(pl.program_id(2) == 0)
    def _init():
        acc_ref[...] = jnp.zeros_like(acc_ref)

    acc_ref[...] += jnp.dot(x_ref[...], w_ref[...],
                            preferred_element_type=jnp.float32)

    @pl.when(pl.program_id(2) == pl.num_programs(2) - 1)
    def _finish():
        y = acc_ref[...] + b_ref[...]
        if relu:
            y = jnp.maximum(y, 0.0)
        o_ref[...] = y.astype(o_ref.dtype)


def matmul_bias_act(x, wdict, meta, *, relu=False, tm_max=128,
                    out_dtype=jnp.float32, keep_padded=False, x_prepadded=False):
    """x: (M, K) f32 activations, or (Mp, Kp) bf16 if x_prepadded.
    wdict holds pre-padded bf16 weight (Kp, Np) and f32 bias (1, Np);
    meta holds python-int tiles. Returns (M, meta['n']) f32, or the full
    padded (Mp, Np) in out_dtype when keep_padded=True."""
    wp, bp = wdict["w"], wdict["b"]
    Kp, Np = wp.shape
    tk, tn = meta["tk"], meta["tn"]

    if x_prepadded:
        # Already (Mp, Kp) bf16 from an upstream kernel — no XLA pad/cast glue pass.
        assert x.shape[1] == Kp and x.dtype == jnp.bfloat16, (x.shape, x.dtype, Kp)
        M = Mp = x.shape[0]
        tm = Mp if Mp <= tm_max else tm_max
        assert Mp % tm == 0
        xp = x
    else:
        M, K = x.shape
        assert K == meta["k"], (K, meta["k"])
        Mp = _round_up(M, 16)
        tm = Mp if Mp <= tm_max else tm_max
        Mp = _round_up(Mp, tm)
        xp = jnp.pad(x, ((0, Mp - M), (0, Kp - K))).astype(jnp.bfloat16)

    ni, nj, nk = Mp // tm, Np // tn, Kp // tk

    if nk == 1:
        kernel = functools.partial(_mm_bias_act_1k_kernel, relu=relu)
        grid = (ni, nj)
        in_specs = [pl.BlockSpec((tm, tk), lambda i, j: (i, 0)),
                    pl.BlockSpec((tk, tn), lambda i, j: (0, j)),
                    pl.BlockSpec((1, tn), lambda i, j: (0, j))]
        out_specs = pl.BlockSpec((tm, tn), lambda i, j: (i, j))
        scratch = []
        dims = ("parallel", "parallel")
    else:
        kernel = functools.partial(_mm_bias_act_kernel, relu=relu)
        grid = (ni, nj, nk)
        in_specs = [pl.BlockSpec((tm, tk), lambda i, j, k: (i, k)),
                    pl.BlockSpec((tk, tn), lambda i, j, k: (k, j)),
                    pl.BlockSpec((1, tn), lambda i, j, k: (0, j))]
        out_specs = pl.BlockSpec((tm, tn), lambda i, j, k: (i, j))
        scratch = [pltpu.VMEM((tm, tn), jnp.float32)]
        dims = ("parallel", "parallel", "arbitrary")

    out = pl.pallas_call(
        kernel,
        out_shape=jax.ShapeDtypeStruct((Mp, Np), out_dtype),
        grid_spec=pltpu.PrefetchScalarGridSpec(
            num_scalar_prefetch=0,
            grid=grid,
            in_specs=in_specs,
            out_specs=out_specs,
            scratch_shapes=scratch),
        compiler_params=pltpu.CompilerParams(
            dimension_semantics=dims,
            vmem_limit_bytes=_VMEM_LIMIT),
    )(xp, wp, bp)

    if keep_padded:
        return out
    return out[:M, :meta["n"]]


# ---------------------------------------------------------------------------
# Pallas kernel 2: fused RPN 3x3 same-conv + ReLU + cls/bbox heads.
#   grid = (j over Cout blocks [parallel], k over the 9 conv taps [arbitrary])
#   x: resident (9, M, Cin_p) bf16 tap stack (DMA'd once; index map constant)
#   conv accumulates into an f32 VMEM scratch; on the last tap the ReLU'd block
#   is fed straight into the heads GEMM, emitting a per-j partial (M, 128) tile.
# ---------------------------------------------------------------------------
def _rpn_conv_heads_kernel(x_ref, w_ref, b_ref, hw_ref, o_ref, acc_ref):
    k = pl.program_id(1)

    @pl.when(k == 0)
    def _init():
        acc_ref[...] = jnp.zeros_like(acc_ref)

    acc_ref[...] += jnp.dot(x_ref[k], w_ref[0],
                            preferred_element_type=jnp.float32)

    @pl.when(k == pl.num_programs(1) - 1)
    def _finish():
        y = jnp.maximum(acc_ref[...] + b_ref[...], 0.0)        # conv bias + ReLU
        o_ref[0] = jnp.dot(y.astype(jnp.bfloat16), hw_ref[...],
                           preferred_element_type=jnp.float32)  # heads partial


def rpn_conv_heads_pallas(taps, wdict, meta):
    """taps: (9, M, Cin_p) bf16 tap stack. Returns (M, NHp) f32 fused heads output
    (conv bias + ReLU applied in-kernel; head bias NOT yet added)."""
    T, M, Cp = taps.shape
    wp, bp, hwp = wdict["w"], wdict["b"], wdict["hw"]
    assert wp.shape == (T, Cp, wp.shape[-1])
    Np = wp.shape[-1]
    NHp = hwp.shape[-1]
    tn = meta["tn"]
    nj = Np // tn

    partials = pl.pallas_call(
        _rpn_conv_heads_kernel,
        out_shape=jax.ShapeDtypeStruct((nj, M, NHp), jnp.float32),
        grid_spec=pltpu.PrefetchScalarGridSpec(
            num_scalar_prefetch=0,
            grid=(nj, T),
            in_specs=[
                pl.BlockSpec((T, M, Cp), lambda j, k: (0, 0, 0)),   # resident tap stack
                pl.BlockSpec((1, Cp, tn), lambda j, k: (k, 0, j)),  # per-tap conv weight slab
                pl.BlockSpec((1, tn), lambda j, k: (0, j)),         # conv bias slice
                pl.BlockSpec((tn, NHp), lambda j, k: (j, 0)),       # heads weight slice
            ],
            out_specs=pl.BlockSpec((1, M, NHp), lambda j, k: (j, 0, 0)),
            scratch_shapes=[pltpu.VMEM((M, tn), jnp.float32)],
        ),
        compiler_params=pltpu.CompilerParams(
            dimension_semantics=("parallel", "arbitrary"),
            vmem_limit_bytes=_VMEM_LIMIT),
    )(taps, wp, bp, hwp)
    # one cheap XLA add over the 4 per-j partials (each only saw 256 of the 1024 channels)
    return jnp.sum(partials, axis=0)                                 # (M, NHp) f32


# ---------------------------------------------------------------------------
# im2col (only used for the tiny stem conv, K = 3*3*3 = 27)
# ---------------------------------------------------------------------------
def _im2col(x_nhwc, kh, kw, stride, padding):
    N, H, W, C = x_nhwc.shape
    xp = jnp.pad(x_nhwc, ((0, 0), (padding, padding), (padding, padding), (0, 0)))
    Ho = (H + 2 * padding - kh) // stride + 1
    Wo = (W + 2 * padding - kw) // stride + 1
    cols = []
    for i in range(kh):
        for j in range(kw):
            cols.append(xp[:, i:i + Ho * stride:stride, j:j + Wo * stride:stride, :])
    patches = jnp.concatenate(cols, axis=-1)                      # (N, Ho, Wo, kh*kw*C)
    return patches.reshape(N * Ho * Wo, kh * kw * C), (N, Ho, Wo)


# ---------------------------------------------------------------------------
# Deterministic parameter construction (shapes implied by the module __init__).
# ---------------------------------------------------------------------------
def init_params(key, num_classes):
    backbone_out = 960
    num_anchors = 4 * 3  # sizes=(32,64,128,256), aspect_ratios=(0.5,1.0,2.0)

    def w(key, shape, fan_in):
        return jax.random.normal(key, shape, jnp.float32) * (1.0 / jnp.sqrt(fan_in))

    ks = jax.random.split(key, 16)
    p = {}
    p["stem_w"] = w(ks[0], (backbone_out, 3, 3, 3), 27)
    p["stem_b"] = jnp.zeros((backbone_out,), jnp.float32)
    p["fpn_w"] = w(ks[1], (256, backbone_out, 1, 1), backbone_out)
    p["fpn_b"] = jnp.zeros((256,), jnp.float32)
    p["fpn_bn_gamma"] = 1.0 + 0.1 * jax.random.normal(ks[2], (256,), jnp.float32)
    p["fpn_bn_beta"] = 0.1 * jax.random.normal(ks[3], (256,), jnp.float32)
    p["fpn_bn_mean"] = jnp.zeros((256,), jnp.float32)
    p["fpn_bn_var"] = jnp.ones((256,), jnp.float32)
    p["rpn_conv_w"] = w(ks[4], (backbone_out, backbone_out, 3, 3), 9 * backbone_out)
    p["rpn_conv_b"] = jnp.zeros((backbone_out,), jnp.float32)
    p["rpn_cls_w"] = w(ks[5], (num_anchors, backbone_out, 1, 1), backbone_out)
    p["rpn_cls_b"] = jnp.zeros((num_anchors,), jnp.float32)
    p["rpn_box_w"] = w(ks[6], (num_anchors * 4, backbone_out, 1, 1), backbone_out)
    p["rpn_box_b"] = jnp.zeros((num_anchors * 4,), jnp.float32)
    p["cls_score_w"] = w(ks[7], (num_classes, backbone_out), backbone_out)
    p["cls_score_b"] = jnp.zeros((num_classes,), jnp.float32)
    p["bbox_pred_w"] = w(ks[8], (num_classes * 4, backbone_out), backbone_out)
    p["bbox_pred_b"] = jnp.zeros((num_classes * 4,), jnp.float32)
    return p


# ---------------------------------------------------------------------------
# One-time weight preparation: transpose / fold BN / fuse heads / pad / cast bf16.
# Returns (weights pytree of arrays, meta dict of python ints).
# ---------------------------------------------------------------------------
def prepare_params(params, num_classes):
    weights, meta = {}, {}

    def add_gemm(name, w_kn, b_n, tn_max=512, tk_max=1024):
        K, N = w_kn.shape
        Kp = _round_up(K, 128)
        tk = Kp if Kp <= tk_max else tk_max
        Kp = _round_up(Kp, tk)
        Np = _round_up(N, 128)
        tn = Np if Np <= tn_max else tn_max
        Np = _round_up(Np, tn)
        weights[name] = {
            "w": jnp.pad(w_kn, ((0, Kp - K), (0, Np - N))).astype(jnp.bfloat16),
            "b": jnp.pad(b_n.reshape(1, N), ((0, 0), (0, Np - N))).astype(jnp.float32),
        }
        meta[name] = {"k": K, "n": N, "tk": tk, "tn": tn}

    # Backbone stem stand-in (im2col layout: kh, kw, Cin -> rows); 2 j-blocks of 512.
    stem_w = jnp.transpose(params["stem_w"], (2, 3, 1, 0)).reshape(27, -1)
    add_gemm("stem", stem_w, params["stem_b"])

    # self.fpn 1x1 conv with BatchNorm folded (eval mode); tn=128 -> 2 j-blocks (v7x).
    eps = 1e-5
    scale = params["fpn_bn_gamma"] / jnp.sqrt(params["fpn_bn_var"] + eps)
    fpn_w = (params["fpn_w"][:, :, 0, 0] * scale[:, None]).T            # (960, 256)
    fpn_b = (params["fpn_b"] - params["fpn_bn_mean"]) * scale + params["fpn_bn_beta"]
    add_gemm("fpn", fpn_w, fpn_b, tn_max=128)

    # Fused RPN block: 3x3 conv weight arranged as a (9, Cin_p, Cout_p) tap-streamed
    # GEMM weight, plus the concatenated cls(12)/bbox(48) head weights for the epilogue.
    Cout, Cin, _, _ = params["rpn_conv_w"].shape
    Cin_p = _round_up(Cin, 128)
    tn_conv = 256                                   # 4 j-blocks; both v7x TCs get work
    Cout_p = _round_up(_round_up(Cout, 128), tn_conv)
    wt = jnp.transpose(params["rpn_conv_w"], (2, 3, 1, 0))              # (3,3,Cin,Cout)
    wt = jnp.pad(wt, ((0, 0), (0, 0), (0, Cin_p - Cin), (0, Cout_p - Cout)))
    num_anchors = params["rpn_cls_w"].shape[0]
    head_w = jnp.concatenate([params["rpn_cls_w"][:, :, 0, 0].T,
                              params["rpn_box_w"][:, :, 0, 0].T], axis=1)  # (960, 60)
    NH = head_w.shape[1]
    NHp = _round_up(NH, 128)
    head_b = jnp.concatenate([params["rpn_cls_b"], params["rpn_box_b"]])
    weights["rpn"] = {
        "w": wt.reshape(9, Cin_p, Cout_p).astype(jnp.bfloat16),
        "b": jnp.pad(params["rpn_conv_b"].reshape(1, Cout),
                     ((0, 0), (0, Cout_p - Cout))).astype(jnp.float32),
        "hw": jnp.pad(head_w, ((0, Cout_p - Cout), (0, NHp - NH))).astype(jnp.bfloat16),
        "hb": jnp.pad(head_b.reshape(1, NH), ((0, 0), (0, NHp - NH))).astype(jnp.float32),
    }
    meta["rpn"] = {"cin": Cin, "cin_p": Cin_p, "cout": Cout, "cout_p": Cout_p,
                   "tn": tn_conv, "n_heads": NH, "num_anchors": num_anchors}

    # FastRCNNPredictor: M=2 GEMM -> plain jnp.dot in the wrapper (no kernel launch).
    box_w = jnp.concatenate([params["cls_score_w"].T, params["bbox_pred_w"].T], axis=1)
    box_b = jnp.concatenate([params["cls_score_b"], params["bbox_pred_b"]])
    weights["box_predictor"] = {"w": box_w.astype(jnp.float32),
                                "b": box_b.astype(jnp.float32)}
    meta["box_predictor"] = {"num_classes": num_classes}

    return weights, meta


# ---------------------------------------------------------------------------
# Forward pass (inference path of VehicleDetectionModel, simplified).
# ---------------------------------------------------------------------------
def vehicle_detection_forward(meta, weights, images_nchw):
    # layout: NCHW (PyTorch) -> NHWC
    x = jnp.transpose(images_nchw.astype(jnp.float32), (0, 2, 3, 1))

    # Backbone stem stand-in: conv 3x3 / s4 (3 -> 960) + ReLU (tiny im2col GEMM).
    # Output stays padded bf16 (Mp, Cp) so downstream kernels need no pad/cast glue.
    patches, (N, Ho, Wo) = _im2col(x, 3, 3, 4, 1)
    feat2d_p = matmul_bias_act(patches, weights["stem"], meta["stem"],
                               relu=True, out_dtype=jnp.bfloat16, keep_padded=True)
    C = meta["stem"]["n"]
    Cp = feat2d_p.shape[1]
    M = N * Ho * Wo
    assert feat2d_p.shape[0] == M and Cp == meta["rpn"]["cin_p"]

    # self.fpn (defined in __init__; computed for parity): 1x1 conv + BN + ReLU.
    fpn2d = matmul_bias_act(feat2d_p, weights["fpn"], meta["fpn"],
                            relu=True, x_prepadded=True)
    fpn_feat = fpn2d.reshape(N, Ho, Wo, meta["fpn"]["n"])

    # RPN: build the 9-tap bf16 stack once, then ONE fused conv+ReLU+heads kernel.
    feat_nhwc_p = feat2d_p.reshape(N, Ho, Wo, Cp)
    xpad = jnp.pad(feat_nhwc_p, ((0, 0), (1, 1), (1, 1), (0, 0)))     # bf16 halo pad
    taps = jnp.stack([xpad[:, di:di + Ho, dj:dj + Wo, :].reshape(M, Cp)
                      for di in range(3) for dj in range(3)], axis=0)  # (9, M, Cp) bf16
    heads2d = rpn_conv_heads_pallas(taps, weights["rpn"], meta["rpn"])
    heads2d = heads2d + weights["rpn"]["hb"]                          # head bias once
    na = meta["rpn"]["num_anchors"]
    rpn_objectness = heads2d[:, :na].reshape(N, Ho, Wo, na)
    rpn_bbox_deltas = heads2d[:, na:5 * na].reshape(N, Ho, Wo, 4 * na)

    # User-visible backbone feature: slice/cast from the padded bf16 slab only here.
    backbone_feature = feat2d_p[:, :C].astype(jnp.float32).reshape(N, Ho, Wo, C)

    # TODO(synk): anchors / proposal decode / NMS / MultiScaleRoIAlign not emulated;
    # box predictor consumes globally mean-pooled 960-d backbone features instead.
    pooled = jnp.mean(backbone_feature, axis=(1, 2))                  # (N, 960)
    box2d = pooled @ weights["box_predictor"]["w"] + weights["box_predictor"]["b"]
    nc = meta["box_predictor"]["num_classes"]
    cls_scores = box2d[:, :nc]
    bbox_preds = box2d[:, nc:]

    return {
        "backbone_feature": backbone_feature,
        "fpn_feature": fpn_feat,
        "rpn_objectness": rpn_objectness,
        "rpn_bbox_deltas": rpn_bbox_deltas,
        "cls_scores": cls_scores,
        "bbox_preds": bbox_preds,
    }


if __name__ == "__main__":
    num_classes = 5
    key = jax.random.PRNGKey(0)
    k_img, k_par = jax.random.split(key)

    # PyTorch-convention NCHW images, small spatial size
    images = jax.random.normal(k_img, (2, 3, 32, 32), jnp.float32)
    params = init_params(k_par, num_classes)
    weights, meta = prepare_params(params, num_classes)     # one-time weight prep

    fwd = jax.jit(functools.partial(vehicle_detection_forward, meta))
    out = fwd(weights, images)
    out = jax.tree_util.tree_map(jax.block_until_ready, out)

    assert out["backbone_feature"].shape == (2, 8, 8, 960)
    assert out["fpn_feature"].shape == (2, 8, 8, 256)
    assert out["rpn_objectness"].shape == (2, 8, 8, 12)
    assert out["rpn_bbox_deltas"].shape == (2, 8, 8, 48)
    assert out["cls_scores"].shape == (2, num_classes)
    assert out["bbox_preds"].shape == (2, num_classes * 4)
    print("KERNEL_OK")
</pallas_src>

<mosaic_0001>
module attributes {stable_mosaic.version = 11 : i64} {
  func.func @_mm_bias_act_1k_kernel(%arg0: i32, %arg1: i32, %arg2: memref<128x128xbf16, #tpu.memory_space<vmem>>, %arg3: memref<128x512xbf16, #tpu.memory_space<vmem>>, %arg4: memref<1x512xf32, #tpu.memory_space<vmem>>, %arg5: memref<128x512xbf16, #tpu.memory_space<vmem>>) attributes {dimension_semantics = [#tpu.dimension_semantics<parallel>, #tpu.dimension_semantics<parallel>], iteration_bounds = array<i64: 1, 2>, scalar_prefetch = 0 : i64, scratch_operands = 0 : i64, tpu.core_type = #tpu.core_type<tc>, window_params = [{transform_indices = @transform_0, window_bounds = array<i64: 128, 128>}, {transform_indices = @transform_1, window_bounds = array<i64: 128, 512>}, {transform_indices = @transform_2, window_bounds = array<i64: 1, 512>}, {transform_indices = @transform_3, window_bounds = array<i64: 128, 512>}]} {
    %c0 = arith.constant 0 : index
    %c0_0 = arith.constant 0 : index
    %0 = vector.load %arg2[%c0, %c0_0] : memref<128x128xbf16, #tpu.memory_space<vmem>>, vector<128x128xbf16>
    %c0_1 = arith.constant 0 : index
    %c0_2 = arith.constant 0 : index
    %1 = vector.load %arg3[%c0_1, %c0_2] : memref<128x512xbf16, #tpu.memory_space<vmem>>, vector<128x512xbf16>
    %cst = arith.constant dense<0.000000e+00> : vector<128x512xf32>
    %2 = tpu.matmul %0, %1, %cst {dimension_numbers = #tpu.dot_dimension_numbers<[1], [0], [0], [1], [0, 0, 1, 1], [], []>} : vector<128x128xbf16>, vector<128x512xbf16>, vector<128x512xf32> -> vector<128x512xf32>
    %c0_3 = arith.constant 0 : index
    %c0_4 = arith.constant 0 : index
    %3 = vector.load %arg4[%c0_3, %c0_4] : memref<1x512xf32, #tpu.memory_space<vmem>>, vector<1x512xf32>
    %4 = vector.broadcast %3 : vector<1x512xf32> to vector<128x512xf32>
    %5 = arith.addf %2, %4 : vector<128x512xf32>
    %cst_5 = arith.constant 0.000000e+00 : f32
    %6 = vector.broadcast %cst_5 : f32 to vector<128x512xf32>
    %7 = arith.maximumf %5, %6 : vector<128x512xf32>
    %8 = arith.truncf %7 : vector<128x512xf32> to vector<128x512xbf16>
    %c0_6 = arith.constant 0 : index
    %c0_7 = arith.constant 0 : index
    %9 = vector.load %arg5[%c0_6, %c0_7] : memref<128x512xbf16, #tpu.memory_space<vmem>>, vector<128x512xbf16>
    tpu.vector_store %arg5[%c0_6, %c0_7], %8 {strides = array<i32>} : memref<128x512xbf16, #tpu.memory_space<vmem>>, vector<128x512xbf16>,
    return
  }
  func.func @transform_0(%arg0: i32, %arg1: i32) -> (i32, i32) {
    %c0_i32 = arith.constant 0 : i32
    %c0_i32_0 = arith.constant 0 : i32
    return %arg0, %c0_i32 : i32, i32
  }
  func.func @transform_1(%arg0: i32, %arg1: i32) -> (i32, i32) {
    %c0_i32 = arith.constant 0 : i32
    %c0_i32_0 = arith.constant 0 : i32
    return %c0_i32, %arg1 : i32, i32
  }
  func.func @transform_2(%arg0: i32, %arg1: i32) -> (i32, i32) {
    %c0_i32 = arith.constant 0 : i32
    %c0_i32_0 = arith.constant 0 : i32
    return %c0_i32, %arg1 : i32, i32
  }
  func.func @transform_3(%arg0: i32, %arg1: i32) -> (i32, i32) {
    %c0_i32 = arith.constant 0 : i32
    return %arg0, %arg1 : i32, i32
  }
}

module attributes {stable_mosaic.version = 11 : i64} {
  func.func @_rpn_conv_heads_kernel(%arg0: i32, %arg1: i32, %arg2: memref<9x128x1024xbf16, #tpu.memory_space<vmem>>, %arg3: memref<1x1024x256xbf16, #tpu.memory_space<vmem>>, %arg4: memref<1x256xf32, #tpu.memory_space<vmem>>, %arg5: memref<256x128xbf16, #tpu.memory_space<vmem>>, %arg6: memref<1x128x128xf32, #tpu.memory_space<vmem>>, %arg7: memref<128x256xf32, #tpu.memory_space<vmem>>) attributes {dimension_semantics = [#tpu.dimension_semantics<parallel>, #tpu.dimension_semantics<arbitrary>], iteration_bounds = array<i64: 4, 9>, scalar_prefetch = 0 : i64, scratch_operands = 1 : i64, tpu.core_type = #tpu.core_type<tc>, window_params = [{pipeline_mode = #tpu.pipeline_mode<synchronous>, transform_indices = @transform_0, window_bounds = array<i64: 9, 128, 1024>}, {transform_indices = @transform_1, window_bounds = array<i64: 1, 1024, 256>}, {transform_indices = @transform_2, window_bounds = array<i64: 1, 256>}, {transform_indices = @transform_3, window_bounds = array<i64: 256, 128>}, {transform_indices = @transform_4, window_bounds = array<i64: 1, 128, 128>}]} {
    %c0_i32 = arith.constant 0 : i32
    %0 = arith.cmpi eq, %arg1, %c0_i32 : i32
    %1 = arith.extui %0 : i1 to i32
    %c0_i32_0 = arith.constant 0 : i32
    %2 = arith.cmpi ne, %1, %c0_i32_0 : i32
    scf.if %2 {
      %cst_10 = arith.constant 0.000000e+00 : f32
      %15 = vector.broadcast %cst_10 : f32 to vector<128x256xf32>
      %c0_11 = arith.constant 0 : index
      %c0_12 = arith.constant 0 : index
      %16 = vector.load %arg7[%c0_11, %c0_12] : memref<128x256xf32, #tpu.memory_space<vmem>>, vector<128x256xf32>
      tpu.vector_store %arg7[%c0_11, %c0_12], %15 {strides = array<i32>} : memref<128x256xf32, #tpu.memory_space<vmem>>, vector<128x256xf32>,
    } else {
    }
    %c0 = arith.constant 0 : index
    %c0_1 = arith.constant 0 : index
    %3 = vector.load %arg7[%c0, %c0_1] : memref<128x256xf32, #tpu.memory_space<vmem>>, vector<128x256xf32>
    %4 = arith.index_cast %arg1 : i32 to index
    %c0_2 = arith.constant 0 : index
    %c0_3 = arith.constant 0 : index
    %5 = vector.load %arg2[%4, %c0_2, %c0_3] : memref<9x128x1024xbf16, #tpu.memory_space<vmem>>, vector<1x128x1024xbf16>
    %6 = vector.shape_cast %5 : vector<1x128x1024xbf16> to vector<128x1024xbf16>
    %c0_4 = arith.constant 0 : index
    %c0_5 = arith.constant 0 : index
    %c0_6 = arith.constant 0 : index
    %7 = vector.load %arg3[%c0_4, %c0_5, %c0_6] : memref<1x1024x256xbf16, #tpu.memory_space<vmem>>, vector<1x1024x256xbf16>
    %8 = vector.shape_cast %7 : vector<1x1024x256xbf16> to vector<1024x256xbf16>
    %cst = arith.constant dense<0.000000e+00> : vector<128x256xf32>
    %9 = tpu.matmul %6, %8, %cst {dimension_numbers = #tpu.dot_dimension_numbers<[1], [0], [0], [1], [0, 0, 1, 1], [], []>} : vector<128x1024xbf16>, vector<1024x256xbf16>, vector<128x256xf32> -> vector<128x256xf32>
    %10 = arith.addf %3, %9 : vector<128x256xf32>
    %c0_7 = arith.constant 0 : index
    %c0_8 = arith.constant 0 : index
    %11 = vector.load %arg7[%c0_7, %c0_8] : memref<128x256xf32, #tpu.memory_space<vmem>>, vector<128x256xf32>
    tpu.vector_store %arg7[%c0_7, %c0_8], %10 {strides = array<i32>} : memref<128x256xf32, #tpu.memory_space<vmem>>, vector<128x256xf32>,
    %c8_i32 = arith.constant 8 : i32
    %12 = arith.cmpi eq, %arg1, %c8_i32 : i32
    %13 = arith.extui %12 : i1 to i32
    %c0_i32_9 = arith.constant 0 : i32
    %14 = arith.cmpi ne, %13, %c0_i32_9 : i32
    scf.if %14 {
      %c0_10 = arith.constant 0 : index
      %c0_11 = arith.constant 0 : index
      %15 = vector.load %arg7[%c0_10, %c0_11] : memref<128x256xf32, #tpu.memory_space<vmem>>, vector<128x256xf32>
      %c0_12 = arith.constant 0 : index
      %c0_13 = arith.constant 0 : index
      %16 = vector.load %arg4[%c0_12, %c0_13] : memref<1x256xf32, #tpu.memory_space<vmem>>, vector<1x256xf32>
      %17 = vector.broadcast %16 : vector<1x256xf32> to vector<128x256xf32>
      %18 = arith.addf %15, %17 : vector<128x256xf32>
      %cst_14 = arith.constant 0.000000e+00 : f32
      %19 = vector.broadcast %cst_14 : f32 to vector<128x256xf32>
      %20 = arith.maximumf %18, %19 : vector<128x256xf32>
      %21 = arith.truncf %20 : vector<128x256xf32> to vector<128x256xbf16>
      %c0_15 = arith.constant 0 : index
      %c0_16 = arith.constant 0 : index
      %22 = vector.load %arg5[%c0_15, %c0_16] : memref<256x128xbf16, #tpu.memory_space<vmem>>, vector<256x128xbf16>
      %cst_17 = arith.constant dense<0.000000e+00> : vector<128x128xf32>
      %23 = tpu.matmul %21, %22, %cst_17 {dimension_numbers = #tpu.dot_dimension_numbers<[1], [0], [0], [1], [0, 0, 1, 1], [], []>} : vector<128x256xbf16>, vector<256x128xbf16>, vector<128x128xf32> -> vector<128x128xf32>
      %c0_18 = arith.constant 0 : index
      %c0_19 = arith.constant 0 : index
      %c0_20 = arith.constant 0 : index
      %24 = vector.load %arg6[%c0_18, %c0_19, %c0_20] : memref<1x128x128xf32, #tpu.memory_space<vmem>>, vector<1x128x128xf32>
      %25 = vector.shape_cast %24 : vector<1x128x128xf32> to vector<128x128xf32>
      %26 = vector.shape_cast %23 : vector<128x128xf32> to vector<1x128x128xf32>
      tpu.vector_store %arg6[%c0_18, %c0_19, %c0_20], %26 {strides = array<i32>} : memref<1x128x128xf32, #tpu.memory_space<vmem>>, vector<1x128x128xf32>,
    } else {
    }
    return
  }
  func.func @transform_0(%arg0: i32, %arg1: i32) -> (i32, i32, i32) {
    %c0_i32 = arith.constant 0 : i32
    %c0_i32_0 = arith.constant 0 : i32
    %c0_i32_1 = arith.constant 0 : i32
    %c0_i32_2 = arith.constant 0 : i32
    return %c0_i32, %c0_i32_0, %c0_i32_1 : i32, i32, i32
  }
  func.func @transform_1(%arg0: i32, %arg1: i32) -> (i32, i32, i32) {
    %c0_i32 = arith.constant 0 : i32
    %c0_i32_0 = arith.constant 0 : i32
    return %arg1, %c0_i32, %arg0 : i32, i32, i32
  }
  func.func @transform_2(%arg0: i32, %arg1: i32) -> (i32, i32) {
    %c0_i32 = arith.constant 0 : i32
    %c0_i32_0 = arith.constant 0 : i32
    return %c0_i32, %arg0 : i32, i32
  }
  func.func @transform_3(%arg0: i32, %arg1: i32) -> (i32, i32) {
    %c0_i32 = arith.constant 0 : i32
    %c0_i32_0 = arith.constant 0 : i32
    return %arg0, %c0_i32 : i32, i32
  }
  func.func @transform_4(%arg0: i32, %arg1: i32) -> (i32, i32, i32) {
    %c0_i32 = arith.constant 0 : i32
    %c0_i32_0 = arith.constant 0 : i32
    %c0_i32_1 = arith.constant 0 : i32
    return %arg0, %c0_i32, %c0_i32_0 : i32, i32, i32
  }
}

module attributes {stable_mosaic.version = 11 : i64} {
  func.func @_mm_bias_act_1k_kernel(%arg0: i32, %arg1: i32, %arg2: memref<128x1024xbf16, #tpu.memory_space<vmem>>, %arg3: memref<1024x128xbf16, #tpu.memory_space<vmem>>, %arg4: memref<1x128xf32, #tpu.memory_space<vmem>>, %arg5: memref<128x128xf32, #tpu.memory_space<vmem>>) attributes {dimension_semantics = [#tpu.dimension_semantics<parallel>, #tpu.dimension_semantics<parallel>], iteration_bounds = array<i64: 1, 2>, scalar_prefetch = 0 : i64, scratch_operands = 0 : i64, tpu.core_type = #tpu.core_type<tc>, window_params = [{transform_indices = @transform_0, window_bounds = array<i64: 128, 1024>}, {transform_indices = @transform_1, window_bounds = array<i64: 1024, 128>}, {transform_indices = @transform_2, window_bounds = array<i64: 1, 128>}, {transform_indices = @transform_3, window_bounds = array<i64: 128, 128>}]} {
    %c0 = arith.constant 0 : index
    %c0_0 = arith.constant 0 : index
    %0 = vector.load %arg2[%c0, %c0_0] : memref<128x1024xbf16, #tpu.memory_space<vmem>>, vector<128x1024xbf16>
    %c0_1 = arith.constant 0 : index
    %c0_2 = arith.constant 0 : index
    %1 = vector.load %arg3[%c0_1, %c0_2] : memref<1024x128xbf16, #tpu.memory_space<vmem>>, vector<1024x128xbf16>
    %cst = arith.constant dense<0.000000e+00> : vector<128x128xf32>
    %2 = tpu.matmul %0, %1, %cst {dimension_numbers = #tpu.dot_dimension_numbers<[1], [0], [0], [1], [0, 0, 1, 1], [], []>} : vector<128x1024xbf16>, vector<1024x128xbf16>, vector<128x128xf32> -> vector<128x128xf32>
    %c0_3 = arith.constant 0 : index
    %c0_4 = arith.constant 0 : index
    %3 = vector.load %arg4[%c0_3, %c0_4] : memref<1x128xf32, #tpu.memory_space<vmem>>, vector<1x128xf32>
    %4 = vector.broadcast %3 : vector<1x128xf32> to vector<128x128xf32>
    %5 = arith.addf %2, %4 : vector<128x128xf32>
    %cst_5 = arith.constant 0.000000e+00 : f32
    %6 = vector.broadcast %cst_5 : f32 to vector<128x128xf32>
    %7 = arith.maximumf %5, %6 : vector<128x128xf32>
    %c0_6 = arith.constant 0 : index
    %c0_7 = arith.constant 0 : index
    %8 = vector.load %arg5[%c0_6, %c0_7] : memref<128x128xf32, #tpu.memory_space<vmem>>, vector<128x128xf32>
    tpu.vector_store %arg5[%c0_6, %c0_7], %7 {strides = array<i32>} : memref<128x128xf32, #tpu.memory_space<vmem>>, vector<128x128xf32>,
    return
  }
  func.func @transform_0(%arg0: i32, %arg1: i32) -> (i32, i32) {
    %c0_i32 = arith.constant 0 : i32
    %c0_i32_0 = arith.constant 0 : i32
    return %arg0, %c0_i32 : i32, i32
  }
  func.func @transform_1(%arg0: i32, %arg1: i32) -> (i32, i32) {
    %c0_i32 = arith.constant 0 : i32
    %c0_i32_0 = arith.constant 0 : i32
    return %c0_i32, %arg1 : i32, i32
  }
  func.func @transform_2(%arg0: i32, %arg1: i32) -> (i32, i32) {
    %c0_i32 = arith.constant 0 : i32
    %c0_i32_0 = arith.constant 0 : i32
    return %c0_i32, %arg1 : i32, i32
  }
  func.func @transform_3(%arg0: i32, %arg1: i32) -> (i32, i32) {
    %c0_i32 = arith.constant 0 : i32
    return %arg0, %arg1 : i32, i32
  }
}

</mosaic_0001>

<llo_original>
// kernel: vehicle_detection_forward.3
$region0: #{vehicle_detection_forward.3}
  #allocation0 [shape = 'u32[]', space=smem, size = 0x4, offset = 0x4, fixed_abs, tag = 'smem constant byte address 0x4 - core index']
  #allocation1 [shape = 'u32[144,128]{1,0:T(1,128)}', space=vmem, size = 0x12000, scoped, tag = 'internal scratch']
  %s0 = inlined_call_operand.vmem [shape: bf16[128,128], index: 0, kind: input, shape index: {}]
  %s1 = inlined_call_operand.vmem [shape: bf16[128,1024], index: 1, kind: input, shape index: {}]
  %s2 = inlined_call_operand.vmem [shape: f32[1,1024], index: 2, kind: input, shape index: {}]
  %s3 = inlined_call_operand.vmem [shape: bf16[128,1024], index: 3, kind: output, shape index: {}]
  %s4 = sld [smem:[#allocation0]]
  $region87: #{vehicle_detection_forward.3} parent=0
    _
  %s6 = ssub.s32 1, %s4
  %s7 = scalar_select 0, %s6, %s4
  $region1: #{vehicle_detection_forward.3} parent=0
    #allocation2 [shape = 'u8[262144]{0}', space=vmem, size = 0x40000, scoped, tag = 'input window, operand 1']
    #allocation3 [shape = 'u8[262144]{0}', space=vmem, size = 0x40000, scoped, tag = 'output window, operand 0']
    loop: start=0, step=1, limit=4
    $region2: #{vehicle_detection_forward.3} parent=1 // loop_pre_header
      _
    $region3: #{vehicle_detection_forward.3} parent=1 // loop_header
      %s9 = sphi 0, %s13
      %p10 = scmp.ge.s32.totalorder %s9, 4
      %s16 = sphi 0, %s28
      %s17 = sphi 0, %s24
      %s18 = sphi 0, %s16
      %s19 = sphi 0, %s17
      %s20 = sphi 0, %s18
      %s21 = sphi 0, %s19
      %s31 = sphi 0, %s33
      %s34 = sphi 0, %s31
      %s35 = sphi 0, %s34
      %s51 = sphi 0, %s35
      %s57 = sphi 0, %s59
      %s60 = sphi 0, %s57
      %s61 = sphi 0, %s60
      %s77 = sphi 0, %s61
      %s83 = sphi 0, %s85
      %s86 = sphi 0, %s83
      %s87 = sphi 0, %s86
      %s103 = sphi 0, %s87
      %s111 = sphi 0, %s113
      %s114 = sphi 0, %s111
      %s115 = sphi 0, %s114
      %s131 = sphi 0, %s115
    $region4: #{vehicle_detection_forward.3} parent=1 // loop_header_branch
      %12 = sbr.rel (%p10) target = $region8
    $region5: #{vehicle_detection_forward.3} parent=1 // loop_body
      %s14 = ssub.s32 %s9, 1
      %s15 = ssub.s32 %s9, 2
      %s22 = sadd.s32 1, %s17
      %p23 = scmp.ge.s32.totalorder %s22, 2
      %s24 = scalar_select %p23, 0, %s22
      %s25 = sadd.s32 1, %s16
      %s26 = scalar_select %p23, %s25, %s16
      %p27 = scmp.ge.s32.totalorder %s26, 1
      %s28 = scalar_select %p27, 0, %s26
      %s29 = ssub.s32 %s16, %s28
      %p30 = scmp.eq.s32.totalorder %s29, 0
      %s32 = sadd.s32 %s31, 1
      %s33 = scalar_select %p30, %s31, %s32
      %p36 = pneg %p30
      %p37 = scmp.eq.s32.totalorder %s9, 1
      %p38 = por %p36, %p37
      %p39 = scmp.ne.s32.totalorder %s31, %s34
      %p40 = scmp.eq.s32.totalorder %s9, 0
      %p41 = por %p39, %p40
      %p42 = scmp.ne.s32.totalorder %s31, %s34
      %p43 = scmp.eq.s32.totalorder %s14, 1
      %p44 = por %p42, %p43
      %p45 = scmp.ne.s32.totalorder %s34, %s35
      %p46 = scmp.eq.s32.totalorder %s14, 0
      %p47 = por %p45, %p46
      %p48 = scmp.ne.s32.totalorder %s34, %s35
      %p49 = scmp.eq.s32.totalorder %s15, 1
      %p50 = por %p48, %p49
      %p52 = scmp.ne.s32.totalorder %s35, %s51
      %p53 = scmp.eq.s32.totalorder %s15, 0
      %p54 = por %p52, %p53
      %s55 = ssub.s32 %s17, %s24
      %p56 = scmp.eq.s32.totalorder %s55, 0
      %s58 = sadd.s32 %s57, 1
      %s59 = scalar_select %p56, %s57, %s58
      %p62 = pneg %p56
      %p63 = scmp.eq.s32.totalorder %s9, 1
      %p64 = por %p62, %p63
      %p65 = scmp.ne.s32.totalorder %s57, %s60
      %p66 = scmp.eq.s32.totalorder %s9, 0
      %p67 = por %p65, %p66
      %p68 = scmp.ne.s32.totalorder %s57, %s60
      %p69 = scmp.eq.s32.totalorder %s14, 1
      %p70 = por %p68, %p69
      %p71 = scmp.ne.s32.totalorder %s60, %s61
      %p72 = scmp.eq.s32.totalorder %s14, 0
      %p73 = por %p71, %p72
      %p74 = scmp.ne.s32.totalorder %s60, %s61
      %p75 = scmp.eq.s32.totalorder %s15, 1
      %p76 = por %p74, %p75
      %p78 = scmp.ne.s32.totalorder %s61, %s77
      %p79 = scmp.eq.s32.totalorder %s15, 0
      %p80 = por %p78, %p79
      %s81 = ssub.s32 %s17, %s24
      %p82 = scmp.eq.s32.totalorder %s81, 0
      %s84 = sadd.s32 %s83, 1
      %s85 = scalar_select %p82, %s83, %s84
      %p88 = pneg %p82
      %p89 = scmp.eq.s32.totalorder %s9, 1
      %p90 = por %p88, %p89
      %p91 = scmp.ne.s32.totalorder %s83, %s86
      %p92 = scmp.eq.s32.totalorder %s9, 0
      %p93 = por %p91, %p92
      %p94 = scmp.ne.s32.totalorder %s83, %s86
      %p95 = scmp.eq.s32.totalorder %s14, 1
      %p96 = por %p94, %p95
      %p97 = scmp.ne.s32.totalorder %s86, %s87
      %p98 = scmp.eq.s32.totalorder %s14, 0
      %p99 = por %p97, %p98
      %p100 = scmp.ne.s32.totalorder %s86, %s87
      %p101 = scmp.eq.s32.totalorder %s15, 1
      %p102 = por %p100, %p101
      %p104 = scmp.ne.s32.totalorder %s87, %s103
      %p105 = scmp.eq.s32.totalorder %s15, 0
      %p106 = por %p104, %p105
      %s107 = ssub.s32 %s16, %s28
      %s108 = ssub.s32 %s17, %s24
      %s109 = sor.u32 %s107, %s108
      %p110 = scmp.eq.s32.totalorder %s109, 0
      %s112 = sadd.s32 %s111, 1
      %s113 = scalar_select %p110, %s111, %s112
      %p116 = pneg %p110
      %p117 = scmp.eq.s32.totalorder %s9, 1
      %p118 = por %p116, %p117
      %p119 = scmp.ne.s32.totalorder %s111, %s114
      %p120 = scmp.eq.s32.totalorder %s9, 0
      %p121 = por %p119, %p120
      %p122 = scmp.ne.s32.totalorder %s111, %s114
      %p123 = scmp.eq.s32.totalorder %s14, 1
      %p124 = por %p122, %p123
      %p125 = scmp.ne.s32.totalorder %s114, %s115
      %p126 = scmp.eq.s32.totalorder %s14, 0
      %p127 = por %p125, %p126
      %p128 = scmp.ne.s32.totalorder %s114, %s115
      %p129 = scmp.eq.s32.totalorder %s15, 1
      %p130 = por %p128, %p129
      %p132 = scmp.ne.s32.totalorder %s115, %s131
      %p133 = scmp.eq.s32.totalorder %s15, 0
      %p134 = por %p132, %p133
      %p135 = scmp.le.s32.totalorder 1, %s9
      %p136 = scmp.lt.s32.totalorder %s9, 3
      %p137 = pnand %p135, %p136
      %p138 = pneg %p137
      // Predicated region
      $region9: #{vehicle_detection_forward.3} parent=5 // pred_check
        _
      $region10: #{vehicle_detection_forward.3} parent=5 // pred_check_branch
        %140 = sbr.rel (%p137) target = $region12
      $region11: #{vehicle_detection_forward.3} parent=5 // pred_region
        %s141 = ssub.s32 %s9, 1
        // Predicated region
        $region13: #{vehicle_detection_forward.3} parent=11 // pred_check
          %p142 = pneg %p47
        $region14: #{vehicle_detection_forward.3} parent=11 // pred_check_branch
          %144 = sbr.rel (%p142) target = $region16
        $region15: #{vehicle_detection_forward.3} parent=11 // pred_region
          %s145 = smul.u32 16, %s18
          %p146 = scmp.lt.s32.totalorder %s145, 15
          %s147 = scalar_select %p146, %s145, 15
          %s148 = smul.addr %s147, 4
          %s149 = scalar_lea.vmem %s0, %s148
          %s150 = smul.u32 16, %s18
        $region16: #{vehicle_detection_forward.3} parent=11 // pred_fallthru
          _
      $region12: #{vehicle_detection_forward.3} parent=5 // pred_fallthru
        _
      %p151 = scmp.lt.s32.totalorder %s9, 2
      // Predicated region
      $region17: #{vehicle_detection_forward.3} parent=5 // pred_check
        %p152 = pneg %p151
      $region18: #{vehicle_detection_forward.3} parent=5 // pred_check_branch
        %154 = sbr.rel (%p152) target = $region20
      $region19: #{vehicle_detection_forward.3} parent=5 // pred_region
        // Predicated region
        $region21: #{vehicle_detection_forward.3} parent=19 // pred_check
          %p155 = pneg %p67
        $region22: #{vehicle_detection_forward.3} parent=19 // pred_check_branch
          %157 = sbr.rel (%p155) target = $region24
        $region23: #{vehicle_detection_forward.3} parent=19 // pred_region
          %s158 = sand.u32 %s57, 1
          %s159 = sand.u32 %s57, 1
          %s160 = smul.addr %s159, 256
          %s161 = scalar_lea.vmem [#allocation2], %s160
          %s162 = smul.u32 4, %s17
          %s163 = smul.addr %s162, 4
          %s164 = scalar_lea.vmem %s1, %s163
          // Predicated region
          $region25: #{vehicle_detection_forward.3} parent=23 // pred_check
            _
          $region26: #{vehicle_detection_forward.3} parent=23 // pred_check_branch
            %166 = sbr.rel (0) target = $region28
          $region27: #{vehicle_detection_forward.3} parent=23 // pred_region
            // Predicated region
            $region29: #{vehicle_detection_forward.3} parent=27 // pred_check
              _
            $region30: #{vehicle_detection_forward.3} parent=27 // pred_check_branch
              %168 = sbr.rel (0) target = $region32
            $region31: #{vehicle_detection_forward.3} parent=27 // pred_region
              loop: start=0, step=1, limit=1
              $region33: #{vehicle_detection_forward.3} parent=31 // loop_pre_header
                _
              $region34: #{vehicle_detection_forward.3} parent=31 // loop_header
                %s170 = sphi 0, %s174
                %p171 = scmp.ge.s32.totalorder %s170, 1
                %s175 = sphi %s164, %s164
                %s176 = sphi %s161, %s161
              $region35: #{vehicle_detection_forward.3} parent=31 // loop_header_branch
                %173 = sbr.rel (%p171) target = $region39
              $region36: #{vehicle_detection_forward.3} parent=31 // loop_body
                %v177 = vld [vmem:[%s175] sm:$0xff]
                %178 = vst [vmem:[%s176] sm:$0xff] %v177
                %v179 = vld [vmem:[%s175 + $0x8] sm:$0xff]
                %180 = vst [vmem:[%s176 + $0x8] sm:$0xff] %v179
                %v181 = vld [vmem:[%s175 + $0x20] sm:$0xff]
                %182 = vst [vmem:[%s176 + $0x10] sm:$0xff] %v181
                %v183 = vld [vmem:[%s175 + $0x28] sm:$0xff]
                %184 = vst [vmem:[%s176 + $0x18] sm:$0xff] %v183
                %v185 = vld [vmem:[%s175 + $0x40] sm:$0xff]
                %186 = vst [vmem:[%s176 + $0x20] sm:$0xff] %v185
                %v187 = vld [vmem:[%s175 + $0x48] sm:$0xff]
                %188 = vst [vmem:[%s176 + $0x28] sm:$0xff] %v187
                %v189 = vld [vmem:[%s175 + $0x60] sm:$0xff]
                %190 = vst [vmem:[%s176 + $0x30] sm:$0xff] %v189
                %v191 = vld [vmem:[%s175 + $0x68] sm:$0xff]
                %192 = vst [vmem:[%s176 + $0x38] sm:$0xff] %v191
                %v193 = vld [vmem:[%s175 + $0x80] sm:$0xff]
                %194 = vst [vmem:[%s176 + $0x40] sm:$0xff] %v193
                %v195 = vld [vmem:[%s175 + $0x88] sm:$0xff]
                %196 = vst [vmem:[%s176 + $0x48] sm:$0xff] %v195
                %v197 = vld [vmem:[%s175 + $0xa0] sm:$0xff]
                %198 = vst [vmem:[%s176 + $0x50] sm:$0xff] %v197
                %v199 = vld [vmem:[%s175 + $0xa8] sm:$0xff]
                %200 = vst [vmem:[%s176 + $0x58] sm:$0xff] %v199
                %v201 = vld [vmem:[%s175 + $0xc0] sm:$0xff]
                %202 = vst [vmem:[%s176 + $0x60] sm:$0xff] %v201
                %v203 = vld [vmem:[%s175 + $0xc8] sm:$0xff]
                %204 = vst [vmem:[%s176 + $0x68] sm:$0xff] %v203
                %v205 = vld [vmem:[%s175 + $0xe0] sm:$0xff]
                %206 = vst [vmem:[%s176 + $0x70] sm:$0xff] %v205
                %v207 = vld [vmem:[%s175 + $0xe8] sm:$0xff]
                %208 = vst [vmem:[%s176 + $0x78] sm:$0xff] %v207
                %v209 = vld [vmem:[%s175 + $0x100] sm:$0xff]
                %210 = vst [vmem:[%s176 + $0x80] sm:$0xff] %v209
                %v211 = vld [vmem:[%s175 + $0x108] sm:$0xff]
                %212 = vst [vmem:[%s176 + $0x88] sm:$0xff] %v211
                %v213 = vld [vmem:[%s175 + $0x120] sm:$0xff]
                %214 = vst [vmem:[%s176 + $0x90] sm:$0xff] %v213
                %v215 = vld [vmem:[%s175 + $0x128] sm:$0xff]
                %216 = vst [vmem:[%s176 + $0x98] sm:$0xff] %v215
                %v217 = vld [vmem:[%s175 + $0x140] sm:$0xff]
                %218 = vst [vmem:[%s176 + $0xa0] sm:$0xff] %v217
                %v219 = vld [vmem:[%s175 + $0x148] sm:$0xff]
                %220 = vst [vmem:[%s176 + $0xa8] sm:$0xff] %v219
                %v221 = vld [vmem:[%s175 + $0x160] sm:$0xff]
                %222 = vst [vmem:[%s176 + $0xb0] sm:$0xff] %v221
                %v223 = vld [vmem:[%s175 + $0x168] sm:$0xff]
                %224 = vst [vmem:[%s176 + $0xb8] sm:$0xff] %v223
                %v225 = vld [vmem:[%s175 + $0x180] sm:$0xff]
                %226 = vst [vmem:[%s176 + $0xc0] sm:$0xff] %v225
                %v227 = vld [vmem:[%s175 + $0x188] sm:$0xff]
                %228 = vst [vmem:[%s176 + $0xc8] sm:$0xff] %v227
                %v229 = vld [vmem:[%s175 + $0x1a0] sm:$0xff]
                %230 = vst [vmem:[%s176 + $0xd0] sm:$0xff] %v229
                %v231 = vld [vmem:[%s175 + $0x1a8] sm:$0xff]
                %232 = vst [vmem:[%s176 + $0xd8] sm:$0xff] %v231
                %v233 = vld [vmem:[%s175 + $0x1c0] sm:$0xff]
                %234 = vst [vmem:[%s176 + $0xe0] sm:$0xff] %v233
                %v235 = vld [vmem:[%s175 + $0x1c8] sm:$0xff]
                %236 = vst [vmem:[%s176 + $0xe8] sm:$0xff] %v235
                %v237 = vld [vmem:[%s175 + $0x1e0] sm:$0xff]
                %238 = vst [vmem:[%s176 + $0xf0] sm:$0xff] %v237
                %v239 = vld [vmem:[%s175 + $0x1e8] sm:$0xff]
                %240 = vst [vmem:[%s176 + $0xf8] sm:$0xff] %v239
              $region37: #{vehicle_detection_forward.3} parent=31 // loop_footer
                %s174 = sadd.s32 1, %s170
              $region38: #{vehicle_detection_forward.3} parent=31 // loop_footer_branch
                %169 = sbr.rel target = $region34
              $region39: #{vehicle_detection_forward.3} parent=31 // loop_exit
                _
            $region32: #{vehicle_detection_forward.3} parent=27 // pred_fallthru
              _
            // Predicated region
            $region40: #{vehicle_detection_forward.3} parent=27 // pred_check
              _
            $region41: #{vehicle_detection_forward.3} parent=27 // pred_check_branch
              %242 = sbr.rel target = $region43
            $region42: #{vehicle_detection_forward.3} parent=27 // pred_region
              _
            $region43: #{vehicle_detection_forward.3} parent=27 // pred_fallthru
              _
          $region28: #{vehicle_detection_forward.3} parent=23 // pred_fallthru
            _
          %243 = vnop
        $region24: #{vehicle_detection_forward.3} parent=19 // pred_fallthru
          _
        // Predicated region
        $region44: #{vehicle_detection_forward.3} parent=19 // pred_check
          %p244 = pneg %p93
        $region45: #{vehicle_detection_forward.3} parent=19 // pred_check_branch
          %246 = sbr.rel (%p244) target = $region47
        $region46: #{vehicle_detection_forward.3} parent=19 // pred_region
          %s247 = smul.u32 4, %s17
          %p248 = scmp.lt.s32.totalorder %s247, 7
          %s249 = scalar_select %p248, %s247, 7
          %s250 = scalar_lea.vmem %s2, %s249
          %s251 = smul.u32 4, %s17
        $region47: #{vehicle_detection_forward.3} parent=19 // pred_fallthru
          _
      $region20: #{vehicle_detection_forward.3} parent=5 // pred_fallthru
        _
      %p252 = scmp.le.s32.totalorder 1, %s9
      %p253 = scmp.lt.s32.totalorder %s9, 3
      %p254 = pnand %p252, %p253
      %p255 = pneg %p254
      // Predicated region
      $region48: #{vehicle_detection_forward.3} parent=5 // pred_check
        _
      $region49: #{vehicle_detection_forward.3} parent=5 // pred_check_branch
        %257 = sbr.rel (%p254) target = $region51
      $region50: #{vehicle_detection_forward.3} parent=5 // pred_region
        %s258 = ssub.s32 %s9, 1
        %s259 = sand.u32 %s60, 1
        %s260 = sand.u32 %s60, 1
        %s261 = smul.addr %s260, 256
        %s262 = scalar_lea.vmem [#allocation2], %s261
        // Predicated region
        $region52: #{vehicle_detection_forward.3} parent=50 // pred_check
          %p263 = pneg %p73
        $region53: #{vehicle_detection_forward.3} parent=50 // pred_check_branch
          %265 = sbr.rel (%p263) target = $region55
        $region54: #{vehicle_detection_forward.3} parent=50 // pred_region
          _
        $region55: #{vehicle_detection_forward.3} parent=50 // pred_fallthru
          _
        %s266 = smul.u32 16, %s18
        %p267 = scmp.lt.s32.totalorder %s266, 15
        %s268 = scalar_select %p267, %s266, 15
        %s269 = smul.addr %s268, 4
        %s270 = scalar_lea.vmem %s0, %s269
        %p271 = pneg %p47
        %p272 = pneg %p44
        %s273 = sand.u32 %s60, 1
        %s274 = sand.u32 %s60, 1
        %s275 = smul.addr %s274, 256
        %s276 = scalar_lea.vmem [#allocation2], %s275
        %p277 = pneg %p73
        %p278 = pneg %p70
        %s279 = smul.u32 4, %s19
        %p280 = scmp.lt.s32.totalorder %s279, 7
        %s281 = scalar_select %p280, %s279, 7
        %s282 = scalar_lea.vmem %s2, %s281
        %p283 = pneg %p99
        %p284 = pneg %p96
        %p285 = pneg %p127
        %p286 = pneg %p124
        %s287 = sand.u32 %s114, 1
        %s288 = sand.u32 %s114, 1
        %s289 = smul.addr %s288, 256
        %s290 = scalar_lea.vmem [#allocation3], %s289
        %s291 = smul.u32 16, %s18
        %p292 = scmp.lt.s32.totalorder %s291, 15
        %s293 = scalar_select %p292, %s291, 15
        %s294 = smul.addr %s293, 4
        %s295 = scalar_lea.vmem %s0, %s294
        %s296 = smul.u32 16, %s18
        %s297 = smul.u32 4, %s19
        %s298 = smul.u32 4, %s19
        %p299 = scmp.lt.s32.totalorder %s298, 7
        %s300 = scalar_select %p299, %s298, 7
        %s301 = scalar_lea.vmem %s2, %s300
        %s302 = smul.u32 4, %s19
        %s303 = smul.u32 16, %s18
        %s304 = smul.u32 4, %s19
        %v306 = vld [vmem:[%s295] sm:$0xf]
        %v307 = vld [vmem:[%s295 + $0x4] sm:$0xf]
        %v308 = vld [vmem:[%s295 + $0x8] sm:$0xf]
        %v309 = vld [vmem:[%s295 + $0xc] sm:$0xf]
        %v310 = vld [vmem:[%s295 + $0x10] sm:$0xf]
        %v311 = vld [vmem:[%s295 + $0x14] sm:$0xf]
        %v312 = vld [vmem:[%s295 + $0x18] sm:$0xf]
        %v313 = vld [vmem:[%s295 + $0x1c] sm:$0xf]
        %v314 = vld [vmem:[%s295 + $0x20] sm:$0xf]
        %v315 = vld [vmem:[%s295 + $0x24] sm:$0xf]
        %v316 = vld [vmem:[%s295 + $0x28] sm:$0xf]
        %v317 = vld [vmem:[%s295 + $0x2c] sm:$0xf]
        %v318 = vld [vmem:[%s295 + $0x30] sm:$0xf]
        %v319 = vld [vmem:[%s295 + $0x34] sm:$0xf]
        %v320 = vld [vmem:[%s295 + $0x38] sm:$0xf]
        %v321 = vld [vmem:[%s295 + $0x3c] sm:$0xf]
        %v322 = vld [vmem:[%s262] sm:$0xff]
        %v323 = vld [vmem:[%s262 + $0x8] sm:$0xff]
        %v324 = vld [vmem:[%s262 + $0x10] sm:$0xff]
        %v325 = vld [vmem:[%s262 + $0x18] sm:$0xff]
        %v326 = vld [vmem:[%s262 + $0x20] sm:$0xff]
        %v327 = vld [vmem:[%s262 + $0x28] sm:$0xff]
        %v328 = vld [vmem:[%s262 + $0x30] sm:$0xff]
        %v329 = vld [vmem:[%s262 + $0x38] sm:$0xff]
        %v330 = vld [vmem:[%s262 + $0x40] sm:$0xff]
        %v331 = vld [vmem:[%s262 + $0x48] sm:$0xff]
        %v332 = vld [vmem:[%s262 + $0x50] sm:$0xff]
        %v333 = vld [vmem:[%s262 + $0x58] sm:$0xff]
        %v334 = vld [vmem:[%s262 + $0x60] sm:$0xff]
        %v335 = vld [vmem:[%s262 + $0x68] sm:$0xff]
        %v336 = vld [vmem:[%s262 + $0x70] sm:$0xff]
        %v337 = vld [vmem:[%s262 + $0x78] sm:$0xff]
        %v338 = vld [vmem:[%s262 + $0x80] sm:$0xff]
        %v339 = vld [vmem:[%s262 + $0x88] sm:$0xff]
        %v340 = vld [vmem:[%s262 + $0x90] sm:$0xff]
        %v341 = vld [vmem:[%s262 + $0x98] sm:$0xff]
        %v342 = vld [vmem:[%s262 + $0xa0] sm:$0xff]
        %v343 = vld [vmem:[%s262 + $0xa8] sm:$0xff]
        %v344 = vld [vmem:[%s262 + $0xb0] sm:$0xff]
        %v345 = vld [vmem:[%s262 + $0xb8] sm:$0xff]
        %v346 = vld [vmem:[%s262 + $0xc0] sm:$0xff]
        %v347 = vld [vmem:[%s262 + $0xc8] sm:$0xff]
        %v348 = vld [vmem:[%s262 + $0xd0] sm:$0xff]
        %v349 = vld [vmem:[%s262 + $0xd8] sm:$0xff]
        %v350 = vld [vmem:[%s262 + $0xe0] sm:$0xff]
        %v351 = vld [vmem:[%s262 + $0xe8] sm:$0xff]
        %v352 = vld [vmem:[%s262 + $0xf0] sm:$0xff]
        %v353 = vld [vmem:[%s262 + $0xf8] sm:$0xff]
        %v354 = vld [vmem:[%s301] sm:$0xf]
        %v356 = vlaneseq
        %v357 = vshrl.u32 %v356, 7
        %v358 = vsub.s32 0, %v357
        %v359 = vrot.slane %v354, %v358
        %v360 = vlaneseq
        %v361 = vshrl.u32 %v360, 7
        %v362 = vsub.s32 1, %v361
        %v363 = vrot.slane %v354, %v362
        %v364 = vlaneseq
        %v365 = vshrl.u32 %v364, 7
        %v366 = vsub.s32 2, %v365
        %v367 = vrot.slane %v354, %v366
        %v368 = vlaneseq
        %v369 = vshrl.u32 %v368, 7
        %v370 = vsub.s32 3, %v369
        %v371 = vrot.slane %v354, %v370
        %v392 = vunpack.c.l.b16 %v306
        %v393 = vunpack.c.l.b16 %v307
        %v394 = vunpack.c.l.b16 %v308
        %v395 = vunpack.c.l.b16 %v309
        %v396 = vunpack.c.l.b16 %v310
        %v397 = vunpack.c.l.b16 %v311
        %v398 = vunpack.c.l.b16 %v312
        %v399 = vunpack.c.l.b16 %v313
        %v400 = vunpack.c.l.b16 %v314
        %v401 = vunpack.c.l.b16 %v315
        %v402 = vunpack.c.l.b16 %v316
        %v403 = vunpack.c.l.b16 %v317
        %v404 = vunpack.c.l.b16 %v318
        %v405 = vunpack.c.l.b16 %v319
        %v406 = vunpack.c.l.b16 %v320
        %v407 = vunpack.c.l.b16 %v321
        %v408 = vpack.c.b16 %v393, %v392
        %v409 = vpack.c.b16 %v395, %v394
        %v410 = vpack.c.b16 %v397, %v396
        %v411 = vpack.c.b16 %v399, %v398
        %v412 = vpack.c.b16 %v401, %v400
        %v413 = vpack.c.b16 %v403, %v402
        %v414 = vpack.c.b16 %v405, %v404
        %v415 = vpack.c.b16 %v407, %v406
        %v456 = vunpack.c.l.b16 %v322
        %v457 = vunpack.c.h.b16 %v322
        %v458 = vunpack.c.l.b16 %v323
        %v459 = vunpack.c.h.b16 %v323
        %v460 = vunpack.c.l.b16 %v324
        %v461 = vunpack.c.h.b16 %v324
        %v462 = vunpack.c.l.b16 %v325
        %v463 = vunpack.c.h.b16 %v325
        %v464 = vunpack.c.l.b16 %v326
        %v465 = vunpack.c.h.b16 %v326
        %v466 = vunpack.c.l.b16 %v327
        %v467 = vunpack.c.h.b16 %v327
        %v468 = vunpack.c.l.b16 %v328
        %v469 = vunpack.c.h.b16 %v328
        %v470 = vunpack.c.l.b16 %v329
        %v471 = vunpack.c.h.b16 %v329
        %v472 = vunpack.c.l.b16 %v330
        %v473 = vunpack.c.h.b16 %v330
        %v474 = vunpack.c.l.b16 %v331
        %v475 = vunpack.c.h.b16 %v331
        %v476 = vunpack.c.l.b16 %v332
        %v477 = vunpack.c.h.b16 %v332
        %v478 = vunpack.c.l.b16 %v333
        %v479 = vunpack.c.h.b16 %v333
        %v480 = vunpack.c.l.b16 %v334
        %v481 = vunpack.c.h.b16 %v334
        %v482 = vunpack.c.l.b16 %v335
        %v483 = vunpack.c.h.b16 %v335
        %v484 = vunpack.c.l.b16 %v336
        %v485 = vunpack.c.h.b16 %v336
        %v486 = vunpack.c.l.b16 %v337
        %v487 = vunpack.c.h.b16 %v337
        %v488 = vunpack.c.l.b16 %v338
        %v489 = vunpack.c.h.b16 %v338
        %v490 = vunpack.c.l.b16 %v339
        %v491 = vunpack.c.h.b16 %v339
        %v492 = vunpack.c.l.b16 %v340
        %v493 = vunpack.c.h.b16 %v340
        %v494 = vunpack.c.l.b16 %v341
        %v495 = vunpack.c.h.b16 %v341
        %v496 = vunpack.c.l.b16 %v342
        %v497 = vunpack.c.h.b16 %v342
        %v498 = vunpack.c.l.b16 %v343
        %v499 = vunpack.c.h.b16 %v343
        %v500 = vunpack.c.l.b16 %v344
        %v501 = vunpack.c.h.b16 %v344
        %v502 = vunpack.c.l.b16 %v345
        %v503 = vunpack.c.h.b16 %v345
        %v504 = vunpack.c.l.b16 %v346
        %v505 = vunpack.c.h.b16 %v346
        %v506 = vunpack.c.l.b16 %v347
        %v507 = vunpack.c.h.b16 %v347
        %v508 = vunpack.c.l.b16 %v348
        %v509 = vunpack.c.h.b16 %v348
        %v510 = vunpack.c.l.b16 %v349
        %v511 = vunpack.c.h.b16 %v349
        %v512 = vunpack.c.l.b16 %v350
        %v513 = vunpack.c.h.b16 %v350
        %v514 = vunpack.c.l.b16 %v351
        %v515 = vunpack.c.h.b16 %v351
        %v516 = vunpack.c.l.b16 %v352
        %v517 = vunpack.c.h.b16 %v352
        %v518 = vunpack.c.l.b16 %v353
        %v519 = vunpack.c.h.b16 %v353
        %v520 = vpack.c.b16 %v460, %v456
        %v521 = vpack.c.b16 %v461, %v457
        %v522 = vpack.c.b16 %v462, %v458
        %v523 = vpack.c.b16 %v463, %v459
        %v524 = vpack.c.b16 %v468, %v464
        %v525 = vpack.c.b16 %v469, %v465
        %v526 = vpack.c.b16 %v470, %v466
        %v527 = vpack.c.b16 %v471, %v467
        %v528 = vpack.c.b16 %v476, %v472
        %v529 = vpack.c.b16 %v477, %v473
        %v530 = vpack.c.b16 %v478, %v474
        %v531 = vpack.c.b16 %v479, %v475
        %v532 = vpack.c.b16 %v484, %v480
        %v533 = vpack.c.b16 %v485, %v481
        %v534 = vpack.c.b16 %v486, %v482
        %v535 = vpack.c.b16 %v487, %v483
        %v536 = vpack.c.b16 %v492, %v488
        %v537 = vpack.c.b16 %v493, %v489
        %v538 = vpack.c.b16 %v494, %v490
        %v539 = vpack.c.b16 %v495, %v491
        %v540 = vpack.c.b16 %v500, %v496
        %v541 = vpack.c.b16 %v501, %v497
        %v542 = vpack.c.b16 %v502, %v498
        %v543 = vpack.c.b16 %v503, %v499
        %v544 = vpack.c.b16 %v508, %v504
        %v545 = vpack.c.b16 %v509, %v505
        %v546 = vpack.c.b16 %v510, %v506
        %v547 = vpack.c.b16 %v511, %v507
        %v548 = vpack.c.b16 %v516, %v512
        %v549 = vpack.c.b16 %v517, %v513
        %v550 = vpack.c.b16 %v518, %v514
        %v551 = vpack.c.b16 %v519, %v515
        %584 = vmatprep.subr.bf16.mxu0 %v521
        %585 = vmatpush1.bf16.msra.mxu0 %v520
        %586 = vmatprep.subr.bf16.mxu0 %v525
        %587 = vmatpush1.bf16.msra.mxu0 %v524
        %588 = vmatprep.subr.bf16.mxu0 %v529
        %589 = vmatpush1.bf16.msra.mxu0 %v528
        %590 = vmatprep.subr.bf16.mxu0 %v533
        %591 = vmatpush1.bf16.msra.mxu0 %v532
        %592 = vmatprep.subr.bf16.mxu0 %v537
        %593 = vmatpush1.bf16.msra.mxu0 %v536
        %594 = vmatprep.subr.bf16.mxu0 %v541
        %595 = vmatpush1.bf16.msra.mxu0 %v540
        %596 = vmatprep.subr.bf16.mxu0 %v545
        %597 = vmatpush1.bf16.msra.mxu0 %v544
        %598 = vmatprep.subr.bf16.mxu0 %v549
        %599 = vmatpush1.bf16.msra.mxu0 %v548
        %600 = vmatprep.subr.bf16.mxu0 0
        %601 = vmatpush1.bf16.msra.mxu0 0
        %602 = vmatprep.subr.bf16.mxu0 0
        %603 = vmatpush1.bf16.msra.mxu0 0
        %604 = vmatprep.subr.bf16.mxu0 0
        %605 = vmatpush1.bf16.msra.mxu0 0
        %606 = vmatprep.subr.bf16.mxu0 0
        %607 = vmatpush1.bf16.msra.mxu0 0
        %608 = vmatprep.subr.bf16.mxu0 0
        %609 = vmatpush1.bf16.msra.mxu0 0
        %610 = vmatprep.subr.bf16.mxu0 0
        %611 = vmatpush1.bf16.msra.mxu0 0
        %612 = vmatprep.subr.bf16.mxu0 0
        %613 = vmatpush1.bf16.msra.mxu0 0
        %614 = vmatprep.subr.bf16.mxu0 0
        %615 = vmatpush1.bf16.msra.mxu0 0
        %616 = vmatprep.mubr.bf16.mxu0 0
        %617 = vmatmul.mubr.bf16.gmra.mrb[0].mxu0 %v408
        %v618 = vpop.f32.mrb[0].mxu0
        %v619 = vadd.f32 %v359, %v618
        %v620 = vpop.f32.mrb[0].mxu0
        %v621 = vadd.f32 %v363, %v620
        %v622 = vpop.f32.mrb[0].mxu0
        %v623 = vadd.f32 %v359, %v622
        %v624 = vpop.f32.mrb[0].mxu0
        %v625 = vadd.f32 %v363, %v624
        %626 = vmatprep.mubr.bf16.mxu0 0
        %627 = vmatmul.mubr.bf16.gmra.mrb[0].mxu0 %v409
        %v628 = vpop.f32.mrb[0].mxu0
        %v629 = vadd.f32 %v359, %v628
        %v630 = vpop.f32.mrb[0].mxu0
        %v631 = vadd.f32 %v363, %v630
        %v632 = vpop.f32.mrb[0].mxu0
        %v633 = vadd.f32 %v359, %v632
        %v634 = vpop.f32.mrb[0].mxu0
        %v635 = vadd.f32 %v363, %v634
        %636 = vmatprep.mubr.bf16.mxu0 0
        %637 = vmatmul.mubr.bf16.gmra.mrb[0].mxu0 %v410
        %v638 = vpop.f32.mrb[0].mxu0
        %v639 = vadd.f32 %v359, %v638
        %v640 = vpop.f32.mrb[0].mxu0
        %v641 = vadd.f32 %v363, %v640
        %v642 = vpop.f32.mrb[0].mxu0
        %v643 = vadd.f32 %v359, %v642
        %v644 = vpop.f32.mrb[0].mxu0
        %v645 = vadd.f32 %v363, %v644
        %646 = vmatprep.mubr.bf16.mxu0 0
        %647 = vmatmul.mubr.bf16.gmra.mrb[0].mxu0 %v411
        %v648 = vpop.f32.mrb[0].mxu0
        %v649 = vadd.f32 %v359, %v648
        %v650 = vpop.f32.mrb[0].mxu0
        %v651 = vadd.f32 %v363, %v650
        %v652 = vpop.f32.mrb[0].mxu0
        %v653 = vadd.f32 %v359, %v652
        %v654 = vpop.f32.mrb[0].mxu0
        %v655 = vadd.f32 %v363, %v654
        %656 = vmatprep.mubr.bf16.mxu0 0
        %657 = vmatmul.mubr.bf16.gmra.mrb[0].mxu0 %v412
        %v658 = vpop.f32.mrb[0].mxu0
        %v659 = vadd.f32 %v359, %v658
        %v660 = vpop.f32.mrb[0].mxu0
        %v661 = vadd.f32 %v363, %v660
        %v662 = vpop.f32.mrb[0].mxu0
        %v663 = vadd.f32 %v359, %v662
        %v664 = vpop.f32.mrb[0].mxu0
        %v665 = vadd.f32 %v363, %v664
        %666 = vmatprep.mubr.bf16.mxu0 0
        %667 = vmatmul.mubr.bf16.gmra.mrb[0].mxu0 %v413
        %v668 = vpop.f32.mrb[0].mxu0
        %v669 = vadd.f32 %v359, %v668
        %v670 = vpop.f32.mrb[0].mxu0
        %v671 = vadd.f32 %v363, %v670
        %v672 = vpop.f32.mrb[0].mxu0
        %v673 = vadd.f32 %v359, %v672
        %v674 = vpop.f32.mrb[0].mxu0
        %v675 = vadd.f32 %v363, %v674
        %676 = vmatprep.mubr.bf16.mxu0 0
        %677 = vmatmul.mubr.bf16.gmra.mrb[0].mxu0 %v414
        %v678 = vpop.f32.mrb[0].mxu0
        %v679 = vadd.f32 %v359, %v678
        %v680 = vpop.f32.mrb[0].mxu0
        %v681 = vadd.f32 %v363, %v680
        %v682 = vpop.f32.mrb[0].mxu0
        %v683 = vadd.f32 %v359, %v682
        %v684 = vpop.f32.mrb[0].mxu0
        %v685 = vadd.f32 %v363, %v684
        %686 = vmatprep.mubr.bf16.mxu0 0
        %687 = vmatmul.mubr.bf16.gmra.mrb[0].mxu0 %v415
        %v688 = vpop.f32.mrb[0].mxu0
        %v689 = vadd.f32 %v359, %v688
        %v690 = vpop.f32.mrb[0].mxu0
        %v691 = vadd.f32 %v363, %v690
        %v692 = vpop.f32.mrb[0].mxu0
        %v693 = vadd.f32 %v359, %v692
        %v694 = vpop.f32.mrb[0].mxu0
        %v695 = vadd.f32 %v363, %v694
        %696 = vdwg.mxu0
        %697 = vmatprep.subr.bf16.mxu0 %v523
        %698 = vmatpush1.bf16.msra.mxu0 %v522
        %699 = vmatprep.subr.bf16.mxu0 %v527
        %700 = vmatpush1.bf16.msra.mxu0 %v526
        %701 = vmatprep.subr.bf16.mxu0 %v531
        %702 = vmatpush1.bf16.msra.mxu0 %v530
        %703 = vmatprep.subr.bf16.mxu0 %v535
        %704 = vmatpush1.bf16.msra.mxu0 %v534
        %705 = vmatprep.subr.bf16.mxu0 %v539
        %706 = vmatpush1.bf16.msra.mxu0 %v538
        %707 = vmatprep.subr.bf16.mxu0 %v543
        %708 = vmatpush1.bf16.msra.mxu0 %v542
        %709 = vmatprep.subr.bf16.mxu0 %v547
        %710 = vmatpush1.bf16.msra.mxu0 %v546
        %711 = vmatprep.subr.bf16.mxu0 %v551
        %712 = vmatpush1.bf16.msra.mxu0 %v550
        %713 = vmatprep.subr.bf16.mxu0 0
        %714 = vmatpush1.bf16.msra.mxu0 0
        %715 = vmatprep.subr.bf16.mxu0 0
        %716 = vmatpush1.bf16.msra.mxu0 0
        %717 = vmatprep.subr.bf16.mxu0 0
        %718 = vmatpush1.bf16.msra.mxu0 0
        %719 = vmatprep.subr.bf16.mxu0 0
        %720 = vmatpush1.bf16.msra.mxu0 0
        %721 = vmatprep.subr.bf16.mxu0 0
        %722 = vmatpush1.bf16.msra.mxu0 0
        %723 = vmatprep.subr.bf16.mxu0 0
        %724 = vmatpush1.bf16.msra.mxu0 0
        %725 = vmatprep.subr.bf16.mxu0 0
        %726 = vmatpush1.bf16.msra.mxu0 0
        %727 = vmatprep.subr.bf16.mxu0 0
        %728 = vmatpush1.bf16.msra.mxu0 0
        %729 = vmatprep.mubr.bf16.mxu0 0
        %730 = vmatmul.mubr.bf16.gmra.mrb[0].mxu0 %v408
        %v731 = vpop.f32.mrb[0].mxu0
        %v732 = vadd.f32 %v367, %v731
        %v733 = vpop.f32.mrb[0].mxu0
        %v734 = vadd.f32 %v371, %v733
        %v735 = vpop.f32.mrb[0].mxu0
        %v736 = vadd.f32 %v367, %v735
        %v737 = vpop.f32.mrb[0].mxu0
        %v738 = vadd.f32 %v371, %v737
        %739 = vmatprep.mubr.bf16.mxu0 0
        %740 = vmatmul.mubr.bf16.gmra.mrb[0].mxu0 %v409
        %v741 = vpop.f32.mrb[0].mxu0
        %v742 = vadd.f32 %v367, %v741
        %v743 = vpop.f32.mrb[0].mxu0
        %v744 = vadd.f32 %v371, %v743
        %v745 = vpop.f32.mrb[0].mxu0
        %v746 = vadd.f32 %v367, %v745
        %v747 = vpop.f32.mrb[0].mxu0
        %v748 = vadd.f32 %v371, %v747
        %749 = vmatprep.mubr.bf16.mxu0 0
        %750 = vmatmul.mubr.bf16.gmra.mrb[0].mxu0 %v410
        %v751 = vpop.f32.mrb[0].mxu0
        %v752 = vadd.f32 %v367, %v751
        %v753 = vpop.f32.mrb[0].mxu0
        %v754 = vadd.f32 %v371, %v753
        %v755 = vpop.f32.mrb[0].mxu0
        %v756 = vadd.f32 %v367, %v755
        %v757 = vpop.f32.mrb[0].mxu0
        %v758 = vadd.f32 %v371, %v757
        %759 = vmatprep.mubr.bf16.mxu0 0
        %760 = vmatmul.mubr.bf16.gmra.mrb[0].mxu0 %v411
        %v761 = vpop.f32.mrb[0].mxu0
        %v762 = vadd.f32 %v367, %v761
        %v763 = vpop.f32.mrb[0].mxu0
        %v764 = vadd.f32 %v371, %v763
        %v765 = vpop.f32.mrb[0].mxu0
        %v766 = vadd.f32 %v367, %v765
        %v767 = vpop.f32.mrb[0].mxu0
        %v768 = vadd.f32 %v371, %v767
        %769 = vmatprep.mubr.bf16.mxu0 0
        %770 = vmatmul.mubr.bf16.gmra.mrb[0].mxu0 %v412
        %v771 = vpop.f32.mrb[0].mxu0
        %v772 = vadd.f32 %v367, %v771
        %v773 = vpop.f32.mrb[0].mxu0
        %v774 = vadd.f32 %v371, %v773
        %v775 = vpop.f32.mrb[0].mxu0
        %v776 = vadd.f32 %v367, %v775
        %v777 = vpop.f32.mrb[0].mxu0
        %v778 = vadd.f32 %v371, %v777
        %779 = vmatprep.mubr.bf16.mxu0 0
        %780 = vmatmul.mubr.bf16.gmra.mrb[0].mxu0 %v413
        %v781 = vpop.f32.mrb[0].mxu0
        %v782 = vadd.f32 %v367, %v781
        %v783 = vpop.f32.mrb[0].mxu0
        %v784 = vadd.f32 %v371, %v783
        %v785 = vpop.f32.mrb[0].mxu0
        %v786 = vadd.f32 %v367, %v785
        %v787 = vpop.f32.mrb[0].mxu0
        %v788 = vadd.f32 %v371, %v787
        %789 = vmatprep.mubr.bf16.mxu0 0
        %790 = vmatmul.mubr.bf16.gmra.mrb[0].mxu0 %v414
        %v791 = vpop.f32.mrb[0].mxu0
        %v792 = vadd.f32 %v367, %v791
        %v793 = vpop.f32.mrb[0].mxu0
        %v794 = vadd.f32 %v371, %v793
        %v795 = vpop.f32.mrb[0].mxu0
        %v796 = vadd.f32 %v367, %v795
        %v797 = vpop.f32.mrb[0].mxu0
        %v798 = vadd.f32 %v371, %v797
        %799 = vmatprep.mubr.bf16.mxu0 0
        %800 = vmatmul.mubr.bf16.gmra.mrb[0].mxu0 %v415
        %v801 = vpop.f32.mrb[0].mxu0
        %v802 = vadd.f32 %v367, %v801
        %v803 = vpop.f32.mrb[0].mxu0
        %v804 = vadd.f32 %v371, %v803
        %v805 = vpop.f32.mrb[0].mxu0
        %v806 = vadd.f32 %v367, %v805
        %v807 = vpop.f32.mrb[0].mxu0
        %v808 = vadd.f32 %v371, %v807
        %809 = vdwg.mxu0
        %v810 = vmax.f32 %v619, 0.0
        %v811 = vmax.f32 %v621, 0.0
        %v812 = vmax.f32 %v732, 0.0
        %v813 = vmax.f32 %v734, 0.0
        %v814 = vmax.f32 %v623, 0.0
        %v815 = vmax.f32 %v625, 0.0
        %v816 = vmax.f32 %v736, 0.0
        %v817 = vmax.f32 %v738, 0.0
        %v818 = vmax.f32 %v629, 0.0
        %v819 = vmax.f32 %v631, 0.0
        %v820 = vmax.f32 %v742, 0.0
        %v821 = vmax.f32 %v744, 0.0
        %v822 = vmax.f32 %v633, 0.0
        %v823 = vmax.f32 %v635, 0.0
        %v824 = vmax.f32 %v746, 0.0
        %v825 = vmax.f32 %v748, 0.0
        %v826 = vmax.f32 %v639, 0.0
        %v827 = vmax.f32 %v641, 0.0
        %v828 = vmax.f32 %v752, 0.0
        %v829 = vmax.f32 %v754, 0.0
        %v830 = vmax.f32 %v643, 0.0
        %v831 = vmax.f32 %v645, 0.0
        %v832 = vmax.f32 %v756, 0.0
        %v833 = vmax.f32 %v758, 0.0
        %v834 = vmax.f32 %v649, 0.0
        %v835 = vmax.f32 %v651, 0.0
        %v836 = vmax.f32 %v762, 0.0
        %v837 = vmax.f32 %v764, 0.0
        %v838 = vmax.f32 %v653, 0.0
        %v839 = vmax.f32 %v655, 0.0
        %v840 = vmax.f32 %v766, 0.0
        %v841 = vmax.f32 %v768, 0.0
        %v842 = vmax.f32 %v659, 0.0
        %v843 = vmax.f32 %v661, 0.0
        %v844 = vmax.f32 %v772, 0.0
        %v845 = vmax.f32 %v774, 0.0
        %v846 = vmax.f32 %v663, 0.0
        %v847 = vmax.f32 %v665, 0.0
        %v848 = vmax.f32 %v776, 0.0
        %v849 = vmax.f32 %v778, 0.0
        %v850 = vmax.f32 %v669, 0.0
        %v851 = vmax.f32 %v671, 0.0
        %v852 = vmax.f32 %v782, 0.0
        %v853 = vmax.f32 %v784, 0.0
        %v854 = vmax.f32 %v673, 0.0
        %v855 = vmax.f32 %v675, 0.0
        %v856 = vmax.f32 %v786, 0.0
        %v857 = vmax.f32 %v788, 0.0
        %v858 = vmax.f32 %v679, 0.0
        %v859 = vmax.f32 %v681, 0.0
        %v860 = vmax.f32 %v792, 0.0
        %v861 = vmax.f32 %v794, 0.0
        %v862 = vmax.f32 %v683, 0.0
        %v863 = vmax.f32 %v685, 0.0
        %v864 = vmax.f32 %v796, 0.0
        %v865 = vmax.f32 %v798, 0.0
        %v866 = vmax.f32 %v689, 0.0
        %v867 = vmax.f32 %v691, 0.0
        %v868 = vmax.f32 %v802, 0.0
        %v869 = vmax.f32 %v804, 0.0
        %v870 = vmax.f32 %v693, 0.0
        %v871 = vmax.f32 %v695, 0.0
        %v872 = vmax.f32 %v806, 0.0
        %v873 = vmax.f32 %v808, 0.0
        %v874 = vpack.c.bf16 %v814, %v810
        %v875 = vpack.c.bf16 %v815, %v811
        %v876 = vpack.c.bf16 %v816, %v812
        %v877 = vpack.c.bf16 %v817, %v813
        %v878 = vpack.c.bf16 %v822, %v818
        %v879 = vpack.c.bf16 %v823, %v819
        %v880 = vpack.c.bf16 %v824, %v820
        %v881 = vpack.c.bf16 %v825, %v821
        %v882 = vpack.c.bf16 %v830, %v826
        %v883 = vpack.c.bf16 %v831, %v827
        %v884 = vpack.c.bf16 %v832, %v828
        %v885 = vpack.c.bf16 %v833, %v829
        %v886 = vpack.c.bf16 %v838, %v834
        %v887 = vpack.c.bf16 %v839, %v835
        %v888 = vpack.c.bf16 %v840, %v836
        %v889 = vpack.c.bf16 %v841, %v837
        %v890 = vpack.c.bf16 %v846, %v842
        %v891 = vpack.c.bf16 %v847, %v843
        %v892 = vpack.c.bf16 %v848, %v844
        %v893 = vpack.c.bf16 %v849, %v845
        %v894 = vpack.c.bf16 %v854, %v850
        %v895 = vpack.c.bf16 %v855, %v851
        %v896 = vpack.c.bf16 %v856, %v852
        %v897 = vpack.c.bf16 %v857, %v853
        %v898 = vpack.c.bf16 %v862, %v858
        %v899 = vpack.c.bf16 %v863, %v859
        %v900 = vpack.c.bf16 %v864, %v860
        %v901 = vpack.c.bf16 %v865, %v861
        %v902 = vpack.c.bf16 %v870, %v866
        %v903 = vpack.c.bf16 %v871, %v867
        %v904 = vpack.c.bf16 %v872, %v868
        %v905 = vpack.c.bf16 %v873, %v869
        %v938 = vunpack.c.l.b16 %v874
        %v939 = vunpack.c.l.b16 %v875
        %v940 = vunpack.c.l.b16 %v876
        %v941 = vunpack.c.l.b16 %v877
        %v942 = vunpack.c.h.b16 %v874
        %v943 = vunpack.c.h.b16 %v875
        %v944 = vunpack.c.h.b16 %v876
        %v945 = vunpack.c.h.b16 %v877
        %v946 = vunpack.c.l.b16 %v878
        %v947 = vunpack.c.l.b16 %v879
        %v948 = vunpack.c.l.b16 %v880
        %v949 = vunpack.c.l.b16 %v881
        %v950 = vunpack.c.h.b16 %v878
        %v951 = vunpack.c.h.b16 %v879
        %v952 = vunpack.c.h.b16 %v880
        %v953 = vunpack.c.h.b16 %v881
        %v954 = vunpack.c.l.b16 %v882
        %v955 = vunpack.c.l.b16 %v883
        %v956 = vunpack.c.l.b16 %v884
        %v957 = vunpack.c.l.b16 %v885
        %v958 = vunpack.c.h.b16 %v882
        %v959 = vunpack.c.h.b16 %v883
        %v960 = vunpack.c.h.b16 %v884
        %v961 = vunpack.c.h.b16 %v885
        %v962 = vunpack.c.l.b16 %v886
        %v963 = vunpack.c.l.b16 %v887
        %v964 = vunpack.c.l.b16 %v888
        %v965 = vunpack.c.l.b16 %v889
        %v966 = vunpack.c.h.b16 %v886
        %v967 = vunpack.c.h.b16 %v887
        %v968 = vunpack.c.h.b16 %v888
        %v969 = vunpack.c.h.b16 %v889
        %v970 = vunpack.c.l.b16 %v890
        %v971 = vunpack.c.l.b16 %v891
        %v972 = vunpack.c.l.b16 %v892
        %v973 = vunpack.c.l.b16 %v893
        %v974 = vunpack.c.h.b16 %v890
        %v975 = vunpack.c.h.b16 %v891
        %v976 = vunpack.c.h.b16 %v892
        %v977 = vunpack.c.h.b16 %v893
        %v978 = vunpack.c.l.b16 %v894
        %v979 = vunpack.c.l.b16 %v895
        %v980 = vunpack.c.l.b16 %v896
        %v981 = vunpack.c.l.b16 %v897
        %v982 = vunpack.c.h.b16 %v894
        %v983 = vunpack.c.h.b16 %v895
        %v984 = vunpack.c.h.b16 %v896
        %v985 = vunpack.c.h.b16 %v897
        %v986 = vunpack.c.l.b16 %v898
        %v987 = vunpack.c.l.b16 %v899
        %v988 = vunpack.c.l.b16 %v900
        %v989 = vunpack.c.l.b16 %v901
        %v990 = vunpack.c.h.b16 %v898
        %v991 = vunpack.c.h.b16 %v899
        %v992 = vunpack.c.h.b16 %v900
        %v993 = vunpack.c.h.b16 %v901
        %v994 = vunpack.c.l.b16 %v902
        %v995 = vunpack.c.l.b16 %v903
        %v996 = vunpack.c.l.b16 %v904
        %v997 = vunpack.c.l.b16 %v905
        %v998 = vunpack.c.h.b16 %v902
        %v999 = vunpack.c.h.b16 %v903
        %v1000 = vunpack.c.h.b16 %v904
        %v1001 = vunpack.c.h.b16 %v905
        %v1002 = vpack.c.b16 %v939, %v938
        %v1003 = vpack.c.b16 %v941, %v940
        %v1004 = vpack.c.b16 %v943, %v942
        %v1005 = vpack.c.b16 %v945, %v944
        %v1006 = vpack.c.b16 %v947, %v946
        %v1007 = vpack.c.b16 %v949, %v948
        %v1008 = vpack.c.b16 %v951, %v950
        %v1009 = vpack.c.b16 %v953, %v952
        %v1010 = vpack.c.b16 %v955, %v954
        %v1011 = vpack.c.b16 %v957, %v956
        %v1012 = vpack.c.b16 %v959, %v958
        %v1013 = vpack.c.b16 %v961, %v960
        %v1014 = vpack.c.b16 %v963, %v962
        %v1015 = vpack.c.b16 %v965, %v964
        %v1016 = vpack.c.b16 %v967, %v966
        %v1017 = vpack.c.b16 %v969, %v968
        %v1018 = vpack.c.b16 %v971, %v970
        %v1019 = vpack.c.b16 %v973, %v972
        %v1020 = vpack.c.b16 %v975, %v974
        %v1021 = vpack.c.b16 %v977, %v976
        %v1022 = vpack.c.b16 %v979, %v978
        %v1023 = vpack.c.b16 %v981, %v980
        %v1024 = vpack.c.b16 %v983, %v982
        %v1025 = vpack.c.b16 %v985, %v984
        %v1026 = vpack.c.b16 %v987, %v986
        %v1027 = vpack.c.b16 %v989, %v988
        %v1028 = vpack.c.b16 %v991, %v990
        %v1029 = vpack.c.b16 %v993, %v992
        %v1030 = vpack.c.b16 %v995, %v994
        %v1031 = vpack.c.b16 %v997, %v996
        %v1032 = vpack.c.b16 %v999, %v998
        %v1033 = vpack.c.b16 %v1001, %v1000
        %1066 = vst [vmem:[%s290] sm:$0xff] %v1002
        %1067 = vst [vmem:[%s290 + $0x8] sm:$0xff] %v1003
        %1068 = vst [vmem:[%s290 + $0x10] sm:$0xff] %v1004
        %1069 = vst [vmem:[%s290 + $0x18] sm:$0xff] %v1005
        %1070 = vst [vmem:[%s290 + $0x20] sm:$0xff] %v1006
        %1071 = vst [vmem:[%s290 + $0x28] sm:$0xff] %v1007
        %1072 = vst [vmem:[%s290 + $0x30] sm:$0xff] %v1008
        %1073 = vst [vmem:[%s290 + $0x38] sm:$0xff] %v1009
        %1074 = vst [vmem:[%s290 + $0x40] sm:$0xff] %v1010
        %1075 = vst [vmem:[%s290 + $0x48] sm:$0xff] %v1011
        %1076 = vst [vmem:[%s290 + $0x50] sm:$0xff] %v1012
        %1077 = vst [vmem:[%s290 + $0x58] sm:$0xff] %v1013
        %1078 = vst [vmem:[%s290 + $0x60] sm:$0xff] %v1014
        %1079 = vst [vmem:[%s290 + $0x68] sm:$0xff] %v1015
        %1080 = vst [vmem:[%s290 + $0x70] sm:$0xff] %v1016
        %1081 = vst [vmem:[%s290 + $0x78] sm:$0xff] %v1017
        %1082 = vst [vmem:[%s290 + $0x80] sm:$0xff] %v1018
        %1083 = vst [vmem:[%s290 + $0x88] sm:$0xff] %v1019
        %1084 = vst [vmem:[%s290 + $0x90] sm:$0xff] %v1020
        %1085 = vst [vmem:[%s290 + $0x98] sm:$0xff] %v1021
        %1086 = vst [vmem:[%s290 + $0xa0] sm:$0xff] %v1022
        %1087 = vst [vmem:[%s290 + $0xa8] sm:$0xff] %v1023
        %1088 = vst [vmem:[%s290 + $0xb0] sm:$0xff] %v1024
        %1089 = vst [vmem:[%s290 + $0xb8] sm:$0xff] %v1025
        %1090 = vst [vmem:[%s290 + $0xc0] sm:$0xff] %v1026
        %1091 = vst [vmem:[%s290 + $0xc8] sm:$0xff] %v1027
        %1092 = vst [vmem:[%s290 + $0xd0] sm:$0xff] %v1028
        %1093 = vst [vmem:[%s290 + $0xd8] sm:$0xff] %v1029
        %1094 = vst [vmem:[%s290 + $0xe0] sm:$0xff] %v1030
        %1095 = vst [vmem:[%s290 + $0xe8] sm:$0xff] %v1031
        %1096 = vst [vmem:[%s290 + $0xf0] sm:$0xff] %v1032
        %1097 = vst [vmem:[%s290 + $0xf8] sm:$0xff] %v1033
        %s1098 = sand.u32 %s114, 1
        %s1099 = sand.u32 %s114, 1
        %s1100 = smul.addr %s1099, 256
        %s1101 = scalar_lea.vmem [#allocation3], %s1100
        // Predicated region
        $region56: #{vehicle_detection_forward.3} parent=50 // pred_check
          %p1102 = pneg %p124
        $region57: #{vehicle_detection_forward.3} parent=50 // pred_check_branch
          %1104 = sbr.rel (%p1102) target = $region59
        $region58: #{vehicle_detection_forward.3} parent=50 // pred_region
          %s1105 = smul.u32 16, %s18
          %s1106 = smul.u32 4, %s19
          %s1107 = smul.addr %s1105, 8
          %s1108 = sadd.s32 %s1106, %s1107
          %s1109 = smul.addr %s1108, 4
          %s1110 = scalar_lea.vmem %s3, %s1109
          // Predicated region
          $region60: #{vehicle_detection_forward.3} parent=58 // pred_check
            _
          $region61: #{vehicle_detection_forward.3} parent=58 // pred_check_branch
            %1112 = sbr.rel (0) target = $region63
          $region62: #{vehicle_detection_forward.3} parent=58 // pred_region
            // Predicated region
            $region64: #{vehicle_detection_forward.3} parent=62 // pred_check
              _
            $region65: #{vehicle_detection_forward.3} parent=62 // pred_check_branch
              %1114 = sbr.rel (0) target = $region67
            $region66: #{vehicle_detection_forward.3} parent=62 // pred_region
              loop: start=0, step=1, limit=1
              $region68: #{vehicle_detection_forward.3} parent=66 // loop_pre_header
                _
              $region69: #{vehicle_detection_forward.3} parent=66 // loop_header
                %s1116 = sphi 0, %s1120
                %p1117 = scmp.ge.s32.totalorder %s1116, 1
                %s1121 = sphi %s1101, %s1101
                %s1122 = sphi %s1110, %s1110
              $region70: #{vehicle_detection_forward.3} parent=66 // loop_header_branch
                %1119 = sbr.rel (%p1117) target = $region74
              $region71: #{vehicle_detection_forward.3} parent=66 // loop_body
                %v1123 = vld [vmem:[%s1121] sm:$0xff]
                %1124 = vst [vmem:[%s1122] sm:$0xff] %v1123
                %v1125 = vld [vmem:[%s1121 + $0x8] sm:$0xff]
                %1126 = vst [vmem:[%s1122 + $0x8] sm:$0xff] %v1125
                %v1127 = vld [vmem:[%s1121 + $0x10] sm:$0xff]
                %1128 = vst [vmem:[%s1122 + $0x20] sm:$0xff] %v1127
                %v1129 = vld [vmem:[%s1121 + $0x18] sm:$0xff]
                %1130 = vst [vmem:[%s1122 + $0x28] sm:$0xff] %v1129
                %v1131 = vld [vmem:[%s1121 + $0x20] sm:$0xff]
                %1132 = vst [vmem:[%s1122 + $0x40] sm:$0xff] %v1131
                %v1133 = vld [vmem:[%s1121 + $0x28] sm:$0xff]
                %1134 = vst [vmem:[%s1122 + $0x48] sm:$0xff] %v1133
                %v1135 = vld [vmem:[%s1121 + $0x30] sm:$0xff]
                %1136 = vst [vmem:[%s1122 + $0x60] sm:$0xff] %v1135
                %v1137 = vld [vmem:[%s1121 + $0x38] sm:$0xff]
                %1138 = vst [vmem:[%s1122 + $0x68] sm:$0xff] %v1137
                %v1139 = vld [vmem:[%s1121 + $0x40] sm:$0xff]
                %1140 = vst [vmem:[%s1122 + $0x80] sm:$0xff] %v1139
                %v1141 = vld [vmem:[%s1121 + $0x48] sm:$0xff]
                %1142 = vst [vmem:[%s1122 + $0x88] sm:$0xff] %v1141
                %v1143 = vld [vmem:[%s1121 + $0x50] sm:$0xff]
                %1144 = vst [vmem:[%s1122 + $0xa0] sm:$0xff] %v1143
                %v1145 = vld [vmem:[%s1121 + $0x58] sm:$0xff]
                %1146 = vst [vmem:[%s1122 + $0xa8] sm:$0xff] %v1145
                %v1147 = vld [vmem:[%s1121 + $0x60] sm:$0xff]
                %1148 = vst [vmem:[%s1122 + $0xc0] sm:$0xff] %v1147
                %v1149 = vld [vmem:[%s1121 + $0x68] sm:$0xff]
                %1150 = vst [vmem:[%s1122 + $0xc8] sm:$0xff] %v1149
                %v1151 = vld [vmem:[%s1121 + $0x70] sm:$0xff]
                %1152 = vst [vmem:[%s1122 + $0xe0] sm:$0xff] %v1151
                %v1153 = vld [vmem:[%s1121 + $0x78] sm:$0xff]
                %1154 = vst [vmem:[%s1122 + $0xe8] sm:$0xff] %v1153
                %v1155 = vld [vmem:[%s1121 + $0x80] sm:$0xff]
                %1156 = vst [vmem:[%s1122 + $0x100] sm:$0xff] %v1155
                %v1157 = vld [vmem:[%s1121 + $0x88] sm:$0xff]
                %1158 = vst [vmem:[%s1122 + $0x108] sm:$0xff] %v1157
                %v1159 = vld [vmem:[%s1121 + $0x90] sm:$0xff]
                %1160 = vst [vmem:[%s1122 + $0x120] sm:$0xff] %v1159
                %v1161 = vld [vmem:[%s1121 + $0x98] sm:$0xff]
                %1162 = vst [vmem:[%s1122 + $0x128] sm:$0xff] %v1161
                %v1163 = vld [vmem:[%s1121 + $0xa0] sm:$0xff]
                %1164 = vst [vmem:[%s1122 + $0x140] sm:$0xff] %v1163
                %v1165 = vld [vmem:[%s1121 + $0xa8] sm:$0xff]
                %1166 = vst [vmem:[%s1122 + $0x148] sm:$0xff] %v1165
                %v1167 = vld [vmem:[%s1121 + $0xb0] sm:$0xff]
                %1168 = vst [vmem:[%s1122 + $0x160] sm:$0xff] %v1167
                %v1169 = vld [vmem:[%s1121 + $0xb8] sm:$0xff]
                %1170 = vst [vmem:[%s1122 + $0x168] sm:$0xff] %v1169
                %v1171 = vld [vmem:[%s1121 + $0xc0] sm:$0xff]
                %1172 = vst [vmem:[%s1122 + $0x180] sm:$0xff] %v1171
                %v1173 = vld [vmem:[%s1121 + $0xc8] sm:$0xff]
                %1174 = vst [vmem:[%s1122 + $0x188] sm:$0xff] %v1173
                %v1175 = vld [vmem:[%s1121 + $0xd0] sm:$0xff]
                %1176 = vst [vmem:[%s1122 + $0x1a0] sm:$0xff] %v1175
                %v1177 = vld [vmem:[%s1121 + $0xd8] sm:$0xff]
                %1178 = vst [vmem:[%s1122 + $0x1a8] sm:$0xff] %v1177
                %v1179 = vld [vmem:[%s1121 + $0xe0] sm:$0xff]
                %1180 = vst [vmem:[%s1122 + $0x1c0] sm:$0xff] %v1179
                %v1181 = vld [vmem:[%s1121 + $0xe8] sm:$0xff]
                %1182 = vst [vmem:[%s1122 + $0x1c8] sm:$0xff] %v1181
                %v1183 = vld [vmem:[%s1121 + $0xf0] sm:$0xff]
                %1184 = vst [vmem:[%s1122 + $0x1e0] sm:$0xff] %v1183
                %v1185 = vld [vmem:[%s1121 + $0xf8] sm:$0xff]
                %1186 = vst [vmem:[%s1122 + $0x1e8] sm:$0xff] %v1185
              $region72: #{vehicle_detection_forward.3} parent=66 // loop_footer
                %s1120 = sadd.s32 1, %s1116
              $region73: #{vehicle_detection_forward.3} parent=66 // loop_footer_branch
                %1115 = sbr.rel target = $region69
              $region74: #{vehicle_detection_forward.3} parent=66 // loop_exit
                _
            $region67: #{vehicle_detection_forward.3} parent=62 // pred_fallthru
              _
            // Predicated region
            $region75: #{vehicle_detection_forward.3} parent=62 // pred_check
              _
            $region76: #{vehicle_detection_forward.3} parent=62 // pred_check_branch
              %1188 = sbr.rel target = $region78
            $region77: #{vehicle_detection_forward.3} parent=62 // pred_region
              _
            $region78: #{vehicle_detection_forward.3} parent=62 // pred_fallthru
              _
          $region63: #{vehicle_detection_forward.3} parent=58 // pred_fallthru
            _
          %1189 = vnop
        $region59: #{vehicle_detection_forward.3} parent=50 // pred_fallthru
          _
      $region51: #{vehicle_detection_forward.3} parent=5 // pred_fallthru
        _
      %p1190 = scmp.le.s32.totalorder 2, %s9
      // Predicated region
      $region79: #{vehicle_detection_forward.3} parent=5 // pred_check
        %p1191 = pneg %p1190
      $region80: #{vehicle_detection_forward.3} parent=5 // pred_check_branch
        %1193 = sbr.rel (%p1191) target = $region82
      $region81: #{vehicle_detection_forward.3} parent=5 // pred_region
        %s1194 = ssub.s32 %s9, 2
        // Predicated region
        $region83: #{vehicle_detection_forward.3} parent=81 // pred_check
          %p1195 = pneg %p130
        $region84: #{vehicle_detection_forward.3} parent=81 // pred_check_branch
          %1197 = sbr.rel (%p1195) target = $region86
        $region85: #{vehicle_detection_forward.3} parent=81 // pred_region
          %s1198 = sand.u32 %s115, 1
          %s1199 = sand.u32 %s115, 1
          %s1200 = smul.addr %s1199, 256
          %s1201 = scalar_lea.vmem [#allocation3], %s1200
        $region86: #{vehicle_detection_forward.3} parent=81 // pred_fallthru
          _
      $region82: #{vehicle_detection_forward.3} parent=5 // pred_fallthru
        _
    $region6: #{vehicle_detection_forward.3} parent=1 // loop_footer
      %s13 = sadd.s32 1, %s9
    $region7: #{vehicle_detection_forward.3} parent=1 // loop_footer_branch
      %8 = sbr.rel target = $region3
    $region8: #{vehicle_detection_forward.3} parent=1 // loop_exit
      _

// kernel: vehicle_detection_forward.5
$region0: #{vehicle_detection_forward.5}
  #allocation0 [shape = 'u32[]', space=smem, size = 0x4, offset = 0x4, fixed_abs, tag = 'smem constant byte address 0x4 - core index']
  #allocation1 [shape = 'u32[144,128]{1,0:T(1,128)}', space=vmem, size = 0x12000, scoped, tag = 'internal scratch']
  #allocation2 [shape = 'f32[128,256]{1,0:T(8,128)}', space=vmem, size = 0x20000, scoped, tag = 'scratch operand']
  %s0 = inlined_call_operand.vmem [shape: bf16[9,128,1024], index: 0, kind: input, shape index: {}]
  %s1 = inlined_call_operand.hbm [shape: bf16[9,1024,1024], index: 1, kind: input, shape index: {}]
  %s2 = inlined_call_operand.vmem [shape: f32[1,1024], index: 2, kind: input, shape index: {}]
  %s3 = inlined_call_operand.vmem [shape: bf16[1024,128], index: 3, kind: input, shape index: {}]
  %s4 = inlined_call_operand.vmem [shape: f32[4,128,128], index: 4, kind: output, shape index: {}]
  %s5 = sld [smem:[#allocation0]]
  $region61: #{vehicle_detection_forward.5} parent=0
    _
  %s7 = ssub.s32 1, %s5
  %s8 = scalar_select 0, %s7, %s5
  $region1: #{vehicle_detection_forward.5} parent=0
    #allocation3 [shape = 'u8[1048576]{0}', space=vmem, size = 0x100000, scoped, tag = 'input window, operand 1']
    #allocation4 [shape = 's32[2]{0}', space=sflag, size = 0x8, scoped, tag = 'scoped memory for vehicle_detection_forward.5']
    %9 = vsyncpa [#allocation4], 0
    %s10 = scalar_lea.sflag [#allocation4], 1
    %11 = vsyncpa %s10, 0
    loop: start=0, step=1, limit=38
    $region2: #{vehicle_detection_forward.5} parent=1 // loop_pre_header
      _
    $region3: #{vehicle_detection_forward.5} parent=1 // loop_header
      %s13 = sphi 0, %s17
      %p14 = scmp.ge.s32.totalorder %s13, 38
      %s20 = sphi 0, %s32
      %s21 = sphi 0, %s28
      %s22 = sphi 0, %s20
      %s23 = sphi 0, %s21
      %s24 = sphi 0, %s22
      %s25 = sphi 0, %s23
      %s33 = sphi 0, %s33
      %s35 = sphi 0, %s33
      %s36 = sphi 0, %s35
      %s50 = sphi 0, %s36
      %s58 = sphi 0, %s60
      %s61 = sphi 0, %s58
      %s62 = sphi 0, %s61
      %s78 = sphi 0, %s62
      %s84 = sphi 0, %s86
      %s87 = sphi 0, %s84
      %s88 = sphi 0, %s87
      %s104 = sphi 0, %s88
      %s110 = sphi 0, %s112
      %s113 = sphi 0, %s110
      %s114 = sphi 0, %s113
      %s130 = sphi 0, %s114
      %s136 = sphi 0, %s138
      %s139 = sphi 0, %s136
      %s140 = sphi 0, %s139
      %s156 = sphi 0, %s140
    $region4: #{vehicle_detection_forward.5} parent=1 // loop_header_branch
      %16 = sbr.rel (%p14) target = $region8
    $region5: #{vehicle_detection_forward.5} parent=1 // loop_body
      %s18 = ssub.s32 %s13, 1
      %s19 = ssub.s32 %s13, 2
      %s26 = sadd.s32 1, %s21
      %p27 = scmp.ge.s32.totalorder %s26, 9
      %s28 = scalar_select %p27, 0, %s26
      %s29 = sadd.s32 1, %s20
      %s30 = scalar_select %p27, %s29, %s20
      %p31 = scmp.ge.s32.totalorder %s30, 4
      %s32 = scalar_select %p31, 0, %s30
      %s34 = sadd.s32 %s33, 1
      %p37 = scmp.eq.s32.totalorder %s13, 35
      %p38 = scmp.ne.s32.totalorder %s33, %s35
      %p39 = scmp.eq.s32.totalorder %s13, 0
      %p40 = por %p38, %p39
      %p41 = scmp.ne.s32.totalorder %s33, %s35
      %p42 = scmp.eq.s32.totalorder %s18, 35
      %p43 = por %p41, %p42
      %p44 = scmp.ne.s32.totalorder %s35, %s36
      %p45 = scmp.eq.s32.totalorder %s18, 0
      %p46 = por %p44, %p45
      %p47 = scmp.ne.s32.totalorder %s35, %s36
      %p48 = scmp.eq.s32.totalorder %s19, 35
      %p49 = por %p47, %p48
      %p51 = scmp.ne.s32.totalorder %s36, %s50
      %p52 = scmp.eq.s32.totalorder %s19, 0
      %p53 = por %p51, %p52
      %s54 = ssub.s32 %s21, %s28
      %s55 = ssub.s32 %s20, %s32
      %s56 = sor.u32 %s54, %s55
      %p57 = scmp.eq.s32.totalorder %s56, 0
      %s59 = sadd.s32 %s58, 1
      %s60 = scalar_select %p57, %s58, %s59
      %p63 = pneg %p57
      %p64 = scmp.eq.s32.totalorder %s13, 35
      %p65 = por %p63, %p64
      %p66 = scmp.ne.s32.totalorder %s58, %s61
      %p67 = scmp.eq.s32.totalorder %s13, 0
      %p68 = por %p66, %p67
      %p69 = scmp.ne.s32.totalorder %s58, %s61
      %p70 = scmp.eq.s32.totalorder %s18, 35
      %p71 = por %p69, %p70
      %p72 = scmp.ne.s32.totalorder %s61, %s62
      %p73 = scmp.eq.s32.totalorder %s18, 0
      %p74 = por %p72, %p73
      %p75 = scmp.ne.s32.totalorder %s61, %s62
      %p76 = scmp.eq.s32.totalorder %s19, 35
      %p77 = por %p75, %p76
      %p79 = scmp.ne.s32.totalorder %s62, %s78
      %p80 = scmp.eq.s32.totalorder %s19, 0
      %p81 = por %p79, %p80
      %s82 = ssub.s32 %s20, %s32
      %p83 = scmp.eq.s32.totalorder %s82, 0
      %s85 = sadd.s32 %s84, 1
      %s86 = scalar_select %p83, %s84, %s85
      %p89 = pneg %p83
      %p90 = scmp.eq.s32.totalorder %s13, 35
      %p91 = por %p89, %p90
      %p92 = scmp.ne.s32.totalorder %s84, %s87
      %p93 = scmp.eq.s32.totalorder %s13, 0
      %p94 = por %p92, %p93
      %p95 = scmp.ne.s32.totalorder %s84, %s87
      %p96 = scmp.eq.s32.totalorder %s18, 35
      %p97 = por %p95, %p96
      %p98 = scmp.ne.s32.totalorder %s87, %s88
      %p99 = scmp.eq.s32.totalorder %s18, 0
      %p100 = por %p98, %p99
      %p101 = scmp.ne.s32.totalorder %s87, %s88
      %p102 = scmp.eq.s32.totalorder %s19, 35
      %p103 = por %p101, %p102
      %p105 = scmp.ne.s32.totalorder %s88, %s104
      %p106 = scmp.eq.s32.totalorder %s19, 0
      %p107 = por %p105, %p106
      %s108 = ssub.s32 %s20, %s32
      %p109 = scmp.eq.s32.totalorder %s108, 0
      %s111 = sadd.s32 %s110, 1
      %s112 = scalar_select %p109, %s110, %s111
      %p115 = pneg %p109
      %p116 = scmp.eq.s32.totalorder %s13, 35
      %p117 = por %p115, %p116
      %p118 = scmp.ne.s32.totalorder %s110, %s113
      %p119 = scmp.eq.s32.totalorder %s13, 0
      %p120 = por %p118, %p119
      %p121 = scmp.ne.s32.totalorder %s110, %s113
      %p122 = scmp.eq.s32.totalorder %s18, 35
      %p123 = por %p121, %p122
      %p124 = scmp.ne.s32.totalorder %s113, %s114
      %p125 = scmp.eq.s32.totalorder %s18, 0
      %p126 = por %p124, %p125
      %p127 = scmp.ne.s32.totalorder %s113, %s114
      %p128 = scmp.eq.s32.totalorder %s19, 35
      %p129 = por %p127, %p128
      %p131 = scmp.ne.s32.totalorder %s114, %s130
      %p132 = scmp.eq.s32.totalorder %s19, 0
      %p133 = por %p131, %p132
      %s134 = ssub.s32 %s20, %s32
      %p135 = scmp.eq.s32.totalorder %s134, 0
      %s137 = sadd.s32 %s136, 1
      %s138 = scalar_select %p135, %s136, %s137
      %p141 = pneg %p135
      %p142 = scmp.eq.s32.totalorder %s13, 35
      %p143 = por %p141, %p142
      %p144 = scmp.ne.s32.totalorder %s136, %s139
      %p145 = scmp.eq.s32.totalorder %s13, 0
      %p146 = por %p144, %p145
      %p147 = scmp.ne.s32.totalorder %s136, %s139
      %p148 = scmp.eq.s32.totalorder %s18, 35
      %p149 = por %p147, %p148
      %p150 = scmp.ne.s32.totalorder %s139, %s140
      %p151 = scmp.eq.s32.totalorder %s18, 0
      %p152 = por %p150, %p151
      %p153 = scmp.ne.s32.totalorder %s139, %s140
      %p154 = scmp.eq.s32.totalorder %s19, 35
      %p155 = por %p153, %p154
      %p157 = scmp.ne.s32.totalorder %s140, %s156
      %p158 = scmp.eq.s32.totalorder %s19, 0
      %p159 = por %p157, %p158
      %p160 = scmp.le.s32.totalorder 1, %s13
      %p161 = scmp.lt.s32.totalorder %s13, 37
      %p162 = pnand %p160, %p161
      %p163 = pneg %p162
      // Predicated region
      $region9: #{vehicle_detection_forward.5} parent=5 // pred_check
        _
      $region10: #{vehicle_detection_forward.5} parent=5 // pred_check_branch
        %165 = sbr.rel (%p162) target = $region12
      $region11: #{vehicle_detection_forward.5} parent=5 // pred_region
        %s166 = ssub.s32 %s13, 1
        // Predicated region
        $region13: #{vehicle_detection_forward.5} parent=11 // pred_check
          %p167 = pneg %p46
        $region14: #{vehicle_detection_forward.5} parent=11 // pred_check_branch
          %169 = sbr.rel (%p167) target = $region16
        $region15: #{vehicle_detection_forward.5} parent=11 // pred_region
          _
        $region16: #{vehicle_detection_forward.5} parent=11 // pred_fallthru
          _
      $region12: #{vehicle_detection_forward.5} parent=5 // pred_fallthru
        _
      %p170 = scmp.lt.s32.totalorder %s13, 36
      // Predicated region
      $region17: #{vehicle_detection_forward.5} parent=5 // pred_check
        %p171 = pneg %p170
      $region18: #{vehicle_detection_forward.5} parent=5 // pred_check_branch
        %173 = sbr.rel (%p171) target = $region20
      $region19: #{vehicle_detection_forward.5} parent=5 // pred_region
        // Predicated region
        $region21: #{vehicle_detection_forward.5} parent=19 // pred_check
          %p174 = pneg %p68
        $region22: #{vehicle_detection_forward.5} parent=19 // pred_check_branch
          %176 = sbr.rel (%p174) target = $region24
        $region23: #{vehicle_detection_forward.5} parent=19 // pred_region
          %s177 = sand.u32 %s58, 1
          %s178 = scalar_lea.sflag [#allocation4], %s177
          %s179 = sand.u32 %s58, 1
          %s180 = smul.addr %s179, 1024
          %s181 = scalar_lea.vmem [#allocation3], %s180
          %s182 = smul.u32 2, %s20
          %s184 = ssub.s32 16384, 16384
          %185 = vsyncadd %s178, %s184
          %s186 = smul.addr %s21, 1024
          %s187 = sadd.s32 %s182, %s186
          %s188 = smul.addr %s187, 64
          %s189 = scalar_lea.hbm %s1, %s188
          %s190 = sshll.u32 %s181, 4
          %s191 = int_to_ptr.vmem [resolvable:$true] %s190
          %196 = dma.hbm_to_vmem [thread:$0]  %s189, 16384, %s191, %s178, 512, 128, 8
        $region24: #{vehicle_detection_forward.5} parent=19 // pred_fallthru
          _
        // Predicated region
        $region25: #{vehicle_detection_forward.5} parent=19 // pred_check
          %p197 = pneg %p94
        $region26: #{vehicle_detection_forward.5} parent=19 // pred_check_branch
          %199 = sbr.rel (%p197) target = $region28
        $region27: #{vehicle_detection_forward.5} parent=19 // pred_region
          %s200 = smul.u32 2, %s20
          %p201 = scmp.lt.s32.totalorder %s200, 7
          %s202 = scalar_select %p201, %s200, 7
          %s203 = scalar_lea.vmem %s2, %s202
          %s204 = smul.u32 2, %s20
        $region28: #{vehicle_detection_forward.5} parent=19 // pred_fallthru
          _
        // Predicated region
        $region29: #{vehicle_detection_forward.5} parent=19 // pred_check
          %p205 = pneg %p120
        $region30: #{vehicle_detection_forward.5} parent=19 // pred_check_branch
          %207 = sbr.rel (%p205) target = $region32
        $region31: #{vehicle_detection_forward.5} parent=19 // pred_region
          %s208 = smul.u32 32, %s20
          %p209 = scmp.lt.s32.totalorder %s208, 127
          %s210 = scalar_select %p209, %s208, 127
          %s211 = smul.addr %s210, 4
          %s212 = scalar_lea.vmem %s3, %s211
          %s213 = smul.u32 32, %s20
        $region32: #{vehicle_detection_forward.5} parent=19 // pred_fallthru
          _
      $region20: #{vehicle_detection_forward.5} parent=5 // pred_fallthru
        _
      %p214 = scmp.le.s32.totalorder 1, %s13
      %p215 = scmp.lt.s32.totalorder %s13, 37
      %p216 = pnand %p214, %p215
      %p217 = pneg %p216
      // Predicated region
      $region33: #{vehicle_detection_forward.5} parent=5 // pred_check
        _
      $region34: #{vehicle_detection_forward.5} parent=5 // pred_check_branch
        %219 = sbr.rel (%p216) target = $region36
      $region35: #{vehicle_detection_forward.5} parent=5 // pred_region
        %s220 = ssub.s32 %s13, 1
        %s221 = sand.u32 %s61, 1
        %s222 = scalar_lea.sflag [#allocation4], %s221
        %s223 = sand.u32 %s61, 1
        %s224 = smul.addr %s223, 1024
        %s225 = scalar_lea.vmem [#allocation3], %s224
        // Predicated region
        $region37: #{vehicle_detection_forward.5} parent=35 // pred_check
          %p226 = pneg %p74
        $region38: #{vehicle_detection_forward.5} parent=35 // pred_check_branch
          %228 = sbr.rel (%p226) target = $region40
        $region39: #{vehicle_detection_forward.5} parent=35 // pred_region
          %229 = dma.done %s222, 16384
        $region40: #{vehicle_detection_forward.5} parent=35 // pred_fallthru
          _
        %p230 = pneg %p46
        %p231 = pneg %p43
        %s232 = sand.u32 %s61, 1
        %s233 = scalar_lea.sflag [#allocation4], %s232
        %s234 = sand.u32 %s61, 1
        %s235 = smul.addr %s234, 1024
        %s236 = scalar_lea.vmem [#allocation3], %s235
        %p237 = pneg %p74
        %p238 = pneg %p71
        %s239 = smul.u32 2, %s22
        %p240 = scmp.lt.s32.totalorder %s239, 7
        %s241 = scalar_select %p240, %s239, 7
        %s242 = scalar_lea.vmem %s2, %s241
        %p243 = pneg %p100
        %p244 = pneg %p97
        %s245 = smul.u32 32, %s22
        %p246 = scmp.lt.s32.totalorder %s245, 127
        %s247 = scalar_select %p246, %s245, 127
        %s248 = smul.addr %s247, 4
        %s249 = scalar_lea.vmem %s3, %s248
        %p250 = pneg %p126
        %p251 = pneg %p123
        %p252 = pneg %p152
        %p253 = pneg %p149
        %p254 = scmp.lt.s32.totalorder %s22, 3
        %s255 = scalar_select %p254, %s22, 3
        %s256 = smul.addr %s255, 16
        %s257 = smul.addr %s256, 8
        %s258 = scalar_lea.vmem %s4, %s257
        %s259 = smul.u32 2, %s22
        %s260 = smul.u32 2, %s22
        %p261 = scmp.lt.s32.totalorder %s260, 7
        %s262 = scalar_select %p261, %s260, 7
        %s263 = scalar_lea.vmem %s2, %s262
        %s264 = smul.u32 2, %s22
        %s265 = smul.u32 32, %s22
        %p266 = scmp.lt.s32.totalorder %s265, 127
        %s267 = scalar_select %p266, %s265, 127
        %s268 = smul.addr %s267, 4
        %s269 = scalar_lea.vmem %s3, %s268
        %s270 = smul.u32 32, %s22
        %p271 = scmp.lt.s32.totalorder %s22, 3
        %s272 = scalar_select %p271, %s22, 3
        %s273 = smul.addr %s272, 16
        %s274 = smul.addr %s273, 8
        %s275 = scalar_lea.vmem %s4, %s274
        %p277 = scmp.eq.s32.totalorder %s23, 0
        // Predicated region
        $region41: #{vehicle_detection_forward.5} parent=35 // pred_check
          %p278 = pneg %p277
        $region42: #{vehicle_detection_forward.5} parent=35 // pred_check_branch
          %280 = sbr.rel (%p278) target = $region44
        $region43: #{vehicle_detection_forward.5} parent=35 // pred_region
          %281 = vst [vmem:[#allocation2] sm:$0xff] 0.0
          %282 = vst [vmem:[#allocation2 + $0x8] sm:$0xff] 0.0
          %283 = vst [vmem:[#allocation2 + $0x10] sm:$0xff] 0.0
          %284 = vst [vmem:[#allocation2 + $0x18] sm:$0xff] 0.0
          %285 = vst [vmem:[#allocation2 + $0x20] sm:$0xff] 0.0
          %286 = vst [vmem:[#allocation2 + $0x28] sm:$0xff] 0.0
          %287 = vst [vmem:[#allocation2 + $0x30] sm:$0xff] 0.0
          %288 = vst [vmem:[#allocation2 + $0x38] sm:$0xff] 0.0
          %289 = vst [vmem:[#allocation2 + $0x40] sm:$0xff] 0.0
          %290 = vst [vmem:[#allocation2 + $0x48] sm:$0xff] 0.0
          %291 = vst [vmem:[#allocation2 + $0x50] sm:$0xff] 0.0
          %292 = vst [vmem:[#allocation2 + $0x58] sm:$0xff] 0.0
          %293 = vst [vmem:[#allocation2 + $0x60] sm:$0xff] 0.0
          %294 = vst [vmem:[#allocation2 + $0x68] sm:$0xff] 0.0
          %295 = vst [vmem:[#allocation2 + $0x70] sm:$0xff] 0.0
          %296 = vst [vmem:[#allocation2 + $0x78] sm:$0xff] 0.0
          %297 = vst [vmem:[#allocation2 + $0x80] sm:$0xff] 0.0
          %298 = vst [vmem:[#allocation2 + $0x88] sm:$0xff] 0.0
          %299 = vst [vmem:[#allocation2 + $0x90] sm:$0xff] 0.0
          %300 = vst [vmem:[#allocation2 + $0x98] sm:$0xff] 0.0
          %301 = vst [vmem:[#allocation2 + $0xa0] sm:$0xff] 0.0
          %302 = vst [vmem:[#allocation2 + $0xa8] sm:$0xff] 0.0
          %303 = vst [vmem:[#allocation2 + $0xb0] sm:$0xff] 0.0
          %304 = vst [vmem:[#allocation2 + $0xb8] sm:$0xff] 0.0
          %305 = vst [vmem:[#allocation2 + $0xc0] sm:$0xff] 0.0
          %306 = vst [vmem:[#allocation2 + $0xc8] sm:$0xff] 0.0
          %307 = vst [vmem:[#allocation2 + $0xd0] sm:$0xff] 0.0
          %308 = vst [vmem:[#allocation2 + $0xd8] sm:$0xff] 0.0
          %309 = vst [vmem:[#allocation2 + $0xe0] sm:$0xff] 0.0
          %310 = vst [vmem:[#allocation2 + $0xe8] sm:$0xff] 0.0
          %311 = vst [vmem:[#allocation2 + $0xf0] sm:$0xff] 0.0
          %312 = vst [vmem:[#allocation2 + $0xf8] sm:$0xff] 0.0
        $region44: #{vehicle_detection_forward.5} parent=35 // pred_fallthru
          _
        %v313 = vld [vmem:[#allocation2] sm:$0xff]
        %v314 = vld [vmem:[#allocation2 + $0x8] sm:$0xff]
        %v315 = vld [vmem:[#allocation2 + $0x10] sm:$0xff]
        %v316 = vld [vmem:[#allocation2 + $0x18] sm:$0xff]
        %v317 = vld [vmem:[#allocation2 + $0x20] sm:$0xff]
        %v318 = vld [vmem:[#allocation2 + $0x28] sm:$0xff]
        %v319 = vld [vmem:[#allocation2 + $0x30] sm:$0xff]
        %v320 = vld [vmem:[#allocation2 + $0x38] sm:$0xff]
        %v321 = vld [vmem:[#allocation2 + $0x40] sm:$0xff]
        %v322 = vld [vmem:[#allocation2 + $0x48] sm:$0xff]
        %v323 = vld [vmem:[#allocation2 + $0x50] sm:$0xff]
        %v324 = vld [vmem:[#allocation2 + $0x58] sm:$0xff]
        %v325 = vld [vmem:[#allocation2 + $0x60] sm:$0xff]
        %v326 = vld [vmem:[#allocation2 + $0x68] sm:$0xff]
        %v327 = vld [vmem:[#allocation2 + $0x70] sm:$0xff]
        %v328 = vld [vmem:[#allocation2 + $0x78] sm:$0xff]
        %v329 = vld [vmem:[#allocation2 + $0x80] sm:$0xff]
        %v330 = vld [vmem:[#allocation2 + $0x88] sm:$0xff]
        %v331 = vld [vmem:[#allocation2 + $0x90] sm:$0xff]
        %v332 = vld [vmem:[#allocation2 + $0x98] sm:$0xff]
        %v333 = vld [vmem:[#allocation2 + $0xa0] sm:$0xff]
        %v334 = vld [vmem:[#allocation2 + $0xa8] sm:$0xff]
        %v335 = vld [vmem:[#allocation2 + $0xb0] sm:$0xff]
        %v336 = vld [vmem:[#allocation2 + $0xb8] sm:$0xff]
        %v337 = vld [vmem:[#allocation2 + $0xc0] sm:$0xff]
        %v338 = vld [vmem:[#allocation2 + $0xc8] sm:$0xff]
        %v339 = vld [vmem:[#allocation2 + $0xd0] sm:$0xff]
        %v340 = vld [vmem:[#allocation2 + $0xd8] sm:$0xff]
        %v341 = vld [vmem:[#allocation2 + $0xe0] sm:$0xff]
        %v342 = vld [vmem:[#allocation2 + $0xe8] sm:$0xff]
        %v343 = vld [vmem:[#allocation2 + $0xf0] sm:$0xff]
        %v344 = vld [vmem:[#allocation2 + $0xf8] sm:$0xff]
        %s345 = smul.u32 %s23, 128
        %s346 = smul.addr %s345, 4
        %s347 = scalar_lea.vmem %s0, %s346
        %v348 = vld [vmem:[%s347] sm:$0xff]
        %v349 = vld [vmem:[%s347 + $0x8] sm:$0xff]
        %v350 = vld [vmem:[%s347 + $0x10] sm:$0xff]
        %v351 = vld [vmem:[%s347 + $0x18] sm:$0xff]
        %v352 = vld [vmem:[%s347 + $0x20] sm:$0xff]
        %v353 = vld [vmem:[%s347 + $0x28] sm:$0xff]
        %v354 = vld [vmem:[%s347 + $0x30] sm:$0xff]
        %v355 = vld [vmem:[%s347 + $0x38] sm:$0xff]
        %v356 = vld [vmem:[%s347 + $0x40] sm:$0xff]
        %v357 = vld [vmem:[%s347 + $0x48] sm:$0xff]
        %v358 = vld [vmem:[%s347 + $0x50] sm:$0xff]
        %v359 = vld [vmem:[%s347 + $0x58] sm:$0xff]
        %v360 = vld [vmem:[%s347 + $0x60] sm:$0xff]
        %v361 = vld [vmem:[%s347 + $0x68] sm:$0xff]
        %v362 = vld [vmem:[%s347 + $0x70] sm:$0xff]
        %v363 = vld [vmem:[%s347 + $0x78] sm:$0xff]
        %v364 = vld [vmem:[%s347 + $0x80] sm:$0xff]
        %v365 = vld [vmem:[%s347 + $0x88] sm:$0xff]
        %v366 = vld [vmem:[%s347 + $0x90] sm:$0xff]
        %v367 = vld [vmem:[%s347 + $0x98] sm:$0xff]
        %v368 = vld [vmem:[%s347 + $0xa0] sm:$0xff]
        %v369 = vld [vmem:[%s347 + $0xa8] sm:$0xff]
        %v370 = vld [vmem:[%s347 + $0xb0] sm:$0xff]
        %v371 = vld [vmem:[%s347 + $0xb8] sm:$0xff]
        %v372 = vld [vmem:[%s347 + $0xc0] sm:$0xff]
        %v373 = vld [vmem:[%s347 + $0xc8] sm:$0xff]
        %v374 = vld [vmem:[%s347 + $0xd0] sm:$0xff]
        %v375 = vld [vmem:[%s347 + $0xd8] sm:$0xff]
        %v376 = vld [vmem:[%s347 + $0xe0] sm:$0xff]
        %v377 = vld [vmem:[%s347 + $0xe8] sm:$0xff]
        %v378 = vld [vmem:[%s347 + $0xf0] sm:$0xff]
        %v379 = vld [vmem:[%s347 + $0xf8] sm:$0xff]
        %v380 = vld [vmem:[%s347 + $0x100] sm:$0xff]
        %v381 = vld [vmem:[%s347 + $0x108] sm:$0xff]
        %v382 = vld [vmem:[%s347 + $0x110] sm:$0xff]
        %v383 = vld [vmem:[%s347 + $0x118] sm:$0xff]
        %v384 = vld [vmem:[%s347 + $0x120] sm:$0xff]
        %v385 = vld [vmem:[%s347 + $0x128] sm:$0xff]
        %v386 = vld [vmem:[%s347 + $0x130] sm:$0xff]
        %v387 = vld [vmem:[%s347 + $0x138] sm:$0xff]
        %v388 = vld [vmem:[%s347 + $0x140] sm:$0xff]
        %v389 = vld [vmem:[%s347 + $0x148] sm:$0xff]
        %v390 = vld [vmem:[%s347 + $0x150] sm:$0xff]
        %v391 = vld [vmem:[%s347 + $0x158] sm:$0xff]
        %v392 = vld [vmem:[%s347 + $0x160] sm:$0xff]
        %v393 = vld [vmem:[%s347 + $0x168] sm:$0xff]
        %v394 = vld [vmem:[%s347 + $0x170] sm:$0xff]
        %v395 = vld [vmem:[%s347 + $0x178] sm:$0xff]
        %v396 = vld [vmem:[%s347 + $0x180] sm:$0xff]
        %v397 = vld [vmem:[%s347 + $0x188] sm:$0xff]
        %v398 = vld [vmem:[%s347 + $0x190] sm:$0xff]
        %v399 = vld [vmem:[%s347 + $0x198] sm:$0xff]
        %v400 = vld [vmem:[%s347 + $0x1a0] sm:$0xff]
        %v401 = vld [vmem:[%s347 + $0x1a8] sm:$0xff]
        %v402 = vld [vmem:[%s347 + $0x1b0] sm:$0xff]
        %v403 = vld [vmem:[%s347 + $0x1b8] sm:$0xff]
        %v404 = vld [vmem:[%s347 + $0x1c0] sm:$0xff]
        %v405 = vld [vmem:[%s347 + $0x1c8] sm:$0xff]
        %v406 = vld [vmem:[%s347 + $0x1d0] sm:$0xff]
        %v407 = vld [vmem:[%s347 + $0x1d8] sm:$0xff]
        %v408 = vld [vmem:[%s347 + $0x1e0] sm:$0xff]
        %v409 = vld [vmem:[%s347 + $0x1e8] sm:$0xff]
        %v410 = vld [vmem:[%s347 + $0x1f0] sm:$0xff]
        %v411 = vld [vmem:[%s347 + $0x1f8] sm:$0xff]
        %v412 = vld [vmem:[%s225] sm:$0xff]
        %v413 = vld [vmem:[%s225 + $0x8] sm:$0xff]
        %v414 = vld [vmem:[%s225 + $0x10] sm:$0xff]
        %v415 = vld [vmem:[%s225 + $0x18] sm:$0xff]
        %v416 = vld [vmem:[%s225 + $0x20] sm:$0xff]
        %v417 = vld [vmem:[%s225 + $0x28] sm:$0xff]
        %v418 = vld [vmem:[%s225 + $0x30] sm:$0xff]
        %v419 = vld [vmem:[%s225 + $0x38] sm:$0xff]
        %v420 = vld [vmem:[%s225 + $0x40] sm:$0xff]
        %v421 = vld [vmem:[%s225 + $0x48] sm:$0xff]
        %v422 = vld [vmem:[%s225 + $0x50] sm:$0xff]
        %v423 = vld [vmem:[%s225 + $0x58] sm:$0xff]
        %v424 = vld [vmem:[%s225 + $0x60] sm:$0xff]
        %v425 = vld [vmem:[%s225 + $0x68] sm:$0xff]
        %v426 = vld [vmem:[%s225 + $0x70] sm:$0xff]
        %v427 = vld [vmem:[%s225 + $0x78] sm:$0xff]
        %v428 = vld [vmem:[%s225 + $0x80] sm:$0xff]
        %v429 = vld [vmem:[%s225 + $0x88] sm:$0xff]
        %v430 = vld [vmem:[%s225 + $0x90] sm:$0xff]
        %v431 = vld [vmem:[%s225 + $0x98] sm:$0xff]
        %v432 = vld [vmem:[%s225 + $0xa0] sm:$0xff]
        %v433 = vld [vmem:[%s225 + $0xa8] sm:$0xff]
        %v434 = vld [vmem:[%s225 + $0xb0] sm:$0xff]
        %v435 = vld [vmem:[%s225 + $0xb8] sm:$0xff]
        %v436 = vld [vmem:[%s225 + $0xc0] sm:$0xff]
        %v437 = vld [vmem:[%s225 + $0xc8] sm:$0xff]
        %v438 = vld [vmem:[%s225 + $0xd0] sm:$0xff]
        %v439 = vld [vmem:[%s225 + $0xd8] sm:$0xff]
        %v440 = vld [vmem:[%s225 + $0xe0] sm:$0xff]
        %v441 = vld [vmem:[%s225 + $0xe8] sm:$0xff]
        %v442 = vld [vmem:[%s225 + $0xf0] sm:$0xff]
        %v443 = vld [vmem:[%s225 + $0xf8] sm:$0xff]
        %v444 = vld [vmem:[%s225 + $0x100] sm:$0xff]
        %v445 = vld [vmem:[%s225 + $0x108] sm:$0xff]
        %v446 = vld [vmem:[%s225 + $0x110] sm:$0xff]
        %v447 = vld [vmem:[%s225 + $0x118] sm:$0xff]
        %v448 = vld [vmem:[%s225 + $0x120] sm:$0xff]
        %v449 = vld [vmem:[%s225 + $0x128] sm:$0xff]
        %v450 = vld [vmem:[%s225 + $0x130] sm:$0xff]
        %v451 = vld [vmem:[%s225 + $0x138] sm:$0xff]
        %v452 = vld [vmem:[%s225 + $0x140] sm:$0xff]
        %v453 = vld [vmem:[%s225 + $0x148] sm:$0xff]
        %v454 = vld [vmem:[%s225 + $0x150] sm:$0xff]
        %v455 = vld [vmem:[%s225 + $0x158] sm:$0xff]
        %v456 = vld [vmem:[%s225 + $0x160] sm:$0xff]
        %v457 = vld [vmem:[%s225 + $0x168] sm:$0xff]
        %v458 = vld [vmem:[%s225 + $0x170] sm:$0xff]
        %v459 = vld [vmem:[%s225 + $0x178] sm:$0xff]
        %v460 = vld [vmem:[%s225 + $0x180] sm:$0xff]
        %v461 = vld [vmem:[%s225 + $0x188] sm:$0xff]
        %v462 = vld [vmem:[%s225 + $0x190] sm:$0xff]
        %v463 = vld [vmem:[%s225 + $0x198] sm:$0xff]
        %v464 = vld [vmem:[%s225 + $0x1a0] sm:$0xff]
        %v465 = vld [vmem:[%s225 + $0x1a8] sm:$0xff]
        %v466 = vld [vmem:[%s225 + $0x1b0] sm:$0xff]
        %v467 = vld [vmem:[%s225 + $0x1b8] sm:$0xff]
        %v468 = vld [vmem:[%s225 + $0x1c0] sm:$0xff]
        %v469 = vld [vmem:[%s225 + $0x1c8] sm:$0xff]
        %v470 = vld [vmem:[%s225 + $0x1d0] sm:$0xff]
        %v471 = vld [vmem:[%s225 + $0x1d8] sm:$0xff]
        %v472 = vld [vmem:[%s225 + $0x1e0] sm:$0xff]
        %v473 = vld [vmem:[%s225 + $0x1e8] sm:$0xff]
        %v474 = vld [vmem:[%s225 + $0x1f0] sm:$0xff]
        %v475 = vld [vmem:[%s225 + $0x1f8] sm:$0xff]
        %v476 = vld [vmem:[%s225 + $0x200] sm:$0xff]
        %v477 = vld [vmem:[%s225 + $0x208] sm:$0xff]
        %v478 = vld [vmem:[%s225 + $0x210] sm:$0xff]
        %v479 = vld [vmem:[%s225 + $0x218] sm:$0xff]
        %v480 = vld [vmem:[%s225 + $0x220] sm:$0xff]
        %v481 = vld [vmem:[%s225 + $0x228] sm:$0xff]
        %v482 = vld [vmem:[%s225 + $0x230] sm:$0xff]
        %v483 = vld [vmem:[%s225 + $0x238] sm:$0xff]
        %v484 = vld [vmem:[%s225 + $0x240] sm:$0xff]
        %v485 = vld [vmem:[%s225 + $0x248] sm:$0xff]
        %v486 = vld [vmem:[%s225 + $0x250] sm:$0xff]
        %v487 = vld [vmem:[%s225 + $0x258] sm:$0xff]
        %v488 = vld [vmem:[%s225 + $0x260] sm:$0xff]
        %v489 = vld [vmem:[%s225 + $0x268] sm:$0xff]
        %v490 = vld [vmem:[%s225 + $0x270] sm:$0xff]
        %v491 = vld [vmem:[%s225 + $0x278] sm:$0xff]
        %v492 = vld [vmem:[%s225 + $0x280] sm:$0xff]
        %v493 = vld [vmem:[%s225 + $0x288] sm:$0xff]
        %v494 = vld [vmem:[%s225 + $0x290] sm:$0xff]
        %v495 = vld [vmem:[%s225 + $0x298] sm:$0xff]
        %v496 = vld [vmem:[%s225 + $0x2a0] sm:$0xff]
        %v497 = vld [vmem:[%s225 + $0x2a8] sm:$0xff]
        %v498 = vld [vmem:[%s225 + $0x2b0] sm:$0xff]
        %v499 = vld [vmem:[%s225 + $0x2b8] sm:$0xff]
        %v500 = vld [vmem:[%s225 + $0x2c0] sm:$0xff]
        %v501 = vld [vmem:[%s225 + $0x2c8] sm:$0xff]
        %v502 = vld [vmem:[%s225 + $0x2d0] sm:$0xff]
        %v503 = vld [vmem:[%s225 + $0x2d8] sm:$0xff]
        %v504 = vld [vmem:[%s225 + $0x2e0] sm:$0xff]
        %v505 = vld [vmem:[%s225 + $0x2e8] sm:$0xff]
        %v506 = vld [vmem:[%s225 + $0x2f0] sm:$0xff]
        %v507 = vld [vmem:[%s225 + $0x2f8] sm:$0xff]
        %v508 = vld [vmem:[%s225 + $0x300] sm:$0xff]
        %v509 = vld [vmem:[%s225 + $0x308] sm:$0xff]
        %v510 = vld [vmem:[%s225 + $0x310] sm:$0xff]
        %v511 = vld [vmem:[%s225 + $0x318] sm:$0xff]
        %v512 = vld [vmem:[%s225 + $0x320] sm:$0xff]
        %v513 = vld [vmem:[%s225 + $0x328] sm:$0xff]
        %v514 = vld [vmem:[%s225 + $0x330] sm:$0xff]
        %v515 = vld [vmem:[%s225 + $0x338] sm:$0xff]
        %v516 = vld [vmem:[%s225 + $0x340] sm:$0xff]
        %v517 = vld [vmem:[%s225 + $0x348] sm:$0xff]
        %v518 = vld [vmem:[%s225 + $0x350] sm:$0xff]
        %v519 = vld [vmem:[%s225 + $0x358] sm:$0xff]
        %v520 = vld [vmem:[%s225 + $0x360] sm:$0xff]
        %v521 = vld [vmem:[%s225 + $0x368] sm:$0xff]
        %v522 = vld [vmem:[%s225 + $0x370] sm:$0xff]
        %v523 = vld [vmem:[%s225 + $0x378] sm:$0xff]
        %v524 = vld [vmem:[%s225 + $0x380] sm:$0xff]
        %v525 = vld [vmem:[%s225 + $0x388] sm:$0xff]
        %v526 = vld [vmem:[%s225 + $0x390] sm:$0xff]
        %v527 = vld [vmem:[%s225 + $0x398] sm:$0xff]
        %v528 = vld [vmem:[%s225 + $0x3a0] sm:$0xff]
        %v529 = vld [vmem:[%s225 + $0x3a8] sm:$0xff]
        %v530 = vld [vmem:[%s225 + $0x3b0] sm:$0xff]
        %v531 = vld [vmem:[%s225 + $0x3b8] sm:$0xff]
        %v532 = vld [vmem:[%s225 + $0x3c0] sm:$0xff]
        %v533 = vld [vmem:[%s225 + $0x3c8] sm:$0xff]
        %v534 = vld [vmem:[%s225 + $0x3d0] sm:$0xff]
        %v535 = vld [vmem:[%s225 + $0x3d8] sm:$0xff]
        %v536 = vld [vmem:[%s225 + $0x3e0] sm:$0xff]
        %v537 = vld [vmem:[%s225 + $0x3e8] sm:$0xff]
        %v538 = vld [vmem:[%s225 + $0x3f0] sm:$0xff]
        %v539 = vld [vmem:[%s225 + $0x3f8] sm:$0xff]
        %v604 = vunpack.c.l.b16 %v348
        %v605 = vunpack.c.h.b16 %v348
        %v606 = vunpack.c.l.b16 %v349
        %v607 = vunpack.c.h.b16 %v349
        %v608 = vunpack.c.l.b16 %v350
        %v609 = vunpack.c.h.b16 %v350
        %v610 = vunpack.c.l.b16 %v351
        %v611 = vunpack.c.h.b16 %v351
        %v612 = vunpack.c.l.b16 %v352
        %v613 = vunpack.c.h.b16 %v352
        %v614 = vunpack.c.l.b16 %v353
        %v615 = vunpack.c.h.b16 %v353
        %v616 = vunpack.c.l.b16 %v354
        %v617 = vunpack.c.h.b16 %v354
        %v618 = vunpack.c.l.b16 %v355
        %v619 = vunpack.c.h.b16 %v355
        %v620 = vunpack.c.l.b16 %v356
        %v621 = vunpack.c.h.b16 %v356
        %v622 = vunpack.c.l.b16 %v357
        %v623 = vunpack.c.h.b16 %v357
        %v624 = vunpack.c.l.b16 %v358
        %v625 = vunpack.c.h.b16 %v358
        %v626 = vunpack.c.l.b16 %v359
        %v627 = vunpack.c.h.b16 %v359
        %v628 = vunpack.c.l.b16 %v360
        %v629 = vunpack.c.h.b16 %v360
        %v630 = vunpack.c.l.b16 %v361
        %v631 = vunpack.c.h.b16 %v361
        %v632 = vunpack.c.l.b16 %v362
        %v633 = vunpack.c.h.b16 %v362
        %v634 = vunpack.c.l.b16 %v363
        %v635 = vunpack.c.h.b16 %v363
        %v636 = vunpack.c.l.b16 %v364
        %v637 = vunpack.c.h.b16 %v364
        %v638 = vunpack.c.l.b16 %v365
        %v639 = vunpack.c.h.b16 %v365
        %v640 = vunpack.c.l.b16 %v366
        %v641 = vunpack.c.h.b16 %v366
        %v642 = vunpack.c.l.b16 %v367
        %v643 = vunpack.c.h.b16 %v367
        %v644 = vunpack.c.l.b16 %v368
        %v645 = vunpack.c.h.b16 %v368
        %v646 = vunpack.c.l.b16 %v369
        %v647 = vunpack.c.h.b16 %v369
        %v648 = vunpack.c.l.b16 %v370
        %v649 = vunpack.c.h.b16 %v370
        %v650 = vunpack.c.l.b16 %v371
        %v651 = vunpack.c.h.b16 %v371
        %v652 = vunpack.c.l.b16 %v372
        %v653 = vunpack.c.h.b16 %v372
        %v654 = vunpack.c.l.b16 %v373
        %v655 = vunpack.c.h.b16 %v373
        %v656 = vunpack.c.l.b16 %v374
        %v657 = vunpack.c.h.b16 %v374
        %v658 = vunpack.c.l.b16 %v375
        %v659 = vunpack.c.h.b16 %v375
        %v660 = vunpack.c.l.b16 %v376
        %v661 = vunpack.c.h.b16 %v376
        %v662 = vunpack.c.l.b16 %v377
        %v663 = vunpack.c.h.b16 %v377
        %v664 = vunpack.c.l.b16 %v378
        %v665 = vunpack.c.h.b16 %v378
        %v666 = vunpack.c.l.b16 %v379
        %v667 = vunpack.c.h.b16 %v379
        %v668 = vunpack.c.l.b16 %v380
        %v669 = vunpack.c.h.b16 %v380
        %v670 = vunpack.c.l.b16 %v381
        %v671 = vunpack.c.h.b16 %v381
        %v672 = vunpack.c.l.b16 %v382
        %v673 = vunpack.c.h.b16 %v382
        %v674 = vunpack.c.l.b16 %v383
        %v675 = vunpack.c.h.b16 %v383
        %v676 = vunpack.c.l.b16 %v384
        %v677 = vunpack.c.h.b16 %v384
        %v678 = vunpack.c.l.b16 %v385
        %v679 = vunpack.c.h.b16 %v385
        %v680 = vunpack.c.l.b16 %v386
        %v681 = vunpack.c.h.b16 %v386
        %v682 = vunpack.c.l.b16 %v387
        %v683 = vunpack.c.h.b16 %v387
        %v684 = vunpack.c.l.b16 %v388
        %v685 = vunpack.c.h.b16 %v388
        %v686 = vunpack.c.l.b16 %v389
        %v687 = vunpack.c.h.b16 %v389
        %v688 = vunpack.c.l.b16 %v390
        %v689 = vunpack.c.h.b16 %v390
        %v690 = vunpack.c.l.b16 %v391
        %v691 = vunpack.c.h.b16 %v391
        %v692 = vunpack.c.l.b16 %v392
        %v693 = vunpack.c.h.b16 %v392
        %v694 = vunpack.c.l.b16 %v393
        %v695 = vunpack.c.h.b16 %v393
        %v696 = vunpack.c.l.b16 %v394
        %v697 = vunpack.c.h.b16 %v394
        %v698 = vunpack.c.l.b16 %v395
        %v699 = vunpack.c.h.b16 %v395
        %v700 = vunpack.c.l.b16 %v396
        %v701 = vunpack.c.h.b16 %v396
        %v702 = vunpack.c.l.b16 %v397
        %v703 = vunpack.c.h.b16 %v397
        %v704 = vunpack.c.l.b16 %v398
        %v705 = vunpack.c.h.b16 %v398
        %v706 = vunpack.c.l.b16 %v399
        %v707 = vunpack.c.h.b16 %v399
        %v708 = vunpack.c.l.b16 %v400
        %v709 = vunpack.c.h.b16 %v400
        %v710 = vunpack.c.l.b16 %v401
        %v711 = vunpack.c.h.b16 %v401
        %v712 = vunpack.c.l.b16 %v402
        %v713 = vunpack.c.h.b16 %v402
        %v714 = vunpack.c.l.b16 %v403
        %v715 = vunpack.c.h.b16 %v403
        %v716 = vunpack.c.l.b16 %v404
        %v717 = vunpack.c.h.b16 %v404
        %v718 = vunpack.c.l.b16 %v405
        %v719 = vunpack.c.h.b16 %v405
        %v720 = vunpack.c.l.b16 %v406
        %v721 = vunpack.c.h.b16 %v406
        %v722 = vunpack.c.l.b16 %v407
        %v723 = vunpack.c.h.b16 %v407
        %v724 = vunpack.c.l.b16 %v408
        %v725 = vunpack.c.h.b16 %v408
        %v726 = vunpack.c.l.b16 %v409
        %v727 = vunpack.c.h.b16 %v409
        %v728 = vunpack.c.l.b16 %v410
        %v729 = vunpack.c.h.b16 %v410
        %v730 = vunpack.c.l.b16 %v411
        %v731 = vunpack.c.h.b16 %v411
        %v732 = vpack.c.b16 %v612, %v604
        %v733 = vpack.c.b16 %v613, %v605
        %v734 = vpack.c.b16 %v614, %v606
        %v735 = vpack.c.b16 %v615, %v607
        %v736 = vpack.c.b16 %v616, %v608
        %v737 = vpack.c.b16 %v617, %v609
        %v738 = vpack.c.b16 %v618, %v610
        %v739 = vpack.c.b16 %v619, %v611
        %v740 = vpack.c.b16 %v628, %v620
        %v741 = vpack.c.b16 %v629, %v621
        %v742 = vpack.c.b16 %v630, %v622
        %v743 = vpack.c.b16 %v631, %v623
        %v744 = vpack.c.b16 %v632, %v624
        %v745 = vpack.c.b16 %v633, %v625
        %v746 = vpack.c.b16 %v634, %v626
        %v747 = vpack.c.b16 %v635, %v627
        %v748 = vpack.c.b16 %v644, %v636
        %v749 = vpack.c.b16 %v645, %v637
        %v750 = vpack.c.b16 %v646, %v638
        %v751 = vpack.c.b16 %v647, %v639
        %v752 = vpack.c.b16 %v648, %v640
        %v753 = vpack.c.b16 %v649, %v641
        %v754 = vpack.c.b16 %v650, %v642
        %v755 = vpack.c.b16 %v651, %v643
        %v756 = vpack.c.b16 %v660, %v652
        %v757 = vpack.c.b16 %v661, %v653
        %v758 = vpack.c.b16 %v662, %v654
        %v759 = vpack.c.b16 %v663, %v655
        %v760 = vpack.c.b16 %v664, %v656
        %v761 = vpack.c.b16 %v665, %v657
        %v762 = vpack.c.b16 %v666, %v658
        %v763 = vpack.c.b16 %v667, %v659
        %v764 = vpack.c.b16 %v676, %v668
        %v765 = vpack.c.b16 %v677, %v669
        %v766 = vpack.c.b16 %v678, %v670
        %v767 = vpack.c.b16 %v679, %v671
        %v768 = vpack.c.b16 %v680, %v672
        %v769 = vpack.c.b16 %v681, %v673
        %v770 = vpack.c.b16 %v682, %v674
        %v771 = vpack.c.b16 %v683, %v675
        %v772 = vpack.c.b16 %v692, %v684
        %v773 = vpack.c.b16 %v693, %v685
        %v774 = vpack.c.b16 %v694, %v686
        %v775 = vpack.c.b16 %v695, %v687
        %v776 = vpack.c.b16 %v696, %v688
        %v777 = vpack.c.b16 %v697, %v689
        %v778 = vpack.c.b16 %v698, %v690
        %v779 = vpack.c.b16 %v699, %v691
        %v780 = vpack.c.b16 %v708, %v700
        %v781 = vpack.c.b16 %v709, %v701
        %v782 = vpack.c.b16 %v710, %v702
        %v783 = vpack.c.b16 %v711, %v703
        %v784 = vpack.c.b16 %v712, %v704
        %v785 = vpack.c.b16 %v713, %v705
        %v786 = vpack.c.b16 %v714, %v706
        %v787 = vpack.c.b16 %v715, %v707
        %v788 = vpack.c.b16 %v724, %v716
        %v789 = vpack.c.b16 %v725, %v717
        %v790 = vpack.c.b16 %v726, %v718
        %v791 = vpack.c.b16 %v727, %v719
        %v792 = vpack.c.b16 %v728, %v720
        %v793 = vpack.c.b16 %v729, %v721
        %v794 = vpack.c.b16 %v730, %v722
        %v795 = vpack.c.b16 %v731, %v723
        %v988 = vunpack.c.l.b16 %v412
        %v989 = vunpack.c.h.b16 %v412
        %v990 = vunpack.c.l.b16 %v413
        %v991 = vunpack.c.h.b16 %v413
        %v992 = vunpack.c.l.b16 %v414
        %v993 = vunpack.c.h.b16 %v414
        %v994 = vunpack.c.l.b16 %v415
        %v995 = vunpack.c.h.b16 %v415
        %v996 = vunpack.c.l.b16 %v416
        %v997 = vunpack.c.h.b16 %v416
        %v998 = vunpack.c.l.b16 %v417
        %v999 = vunpack.c.h.b16 %v417
        %v1000 = vunpack.c.l.b16 %v418
        %v1001 = vunpack.c.h.b16 %v418
        %v1002 = vunpack.c.l.b16 %v419
        %v1003 = vunpack.c.h.b16 %v419
        %v1004 = vunpack.c.l.b16 %v420
        %v1005 = vunpack.c.h.b16 %v420
        %v1006 = vunpack.c.l.b16 %v421
        %v1007 = vunpack.c.h.b16 %v421
        %v1008 = vunpack.c.l.b16 %v422
        %v1009 = vunpack.c.h.b16 %v422
        %v1010 = vunpack.c.l.b16 %v423
        %v1011 = vunpack.c.h.b16 %v423
        %v1012 = vunpack.c.l.b16 %v424
        %v1013 = vunpack.c.h.b16 %v424
        %v1014 = vunpack.c.l.b16 %v425
        %v1015 = vunpack.c.h.b16 %v425
        %v1016 = vunpack.c.l.b16 %v426
        %v1017 = vunpack.c.h.b16 %v426
        %v1018 = vunpack.c.l.b16 %v427
        %v1019 = vunpack.c.h.b16 %v427
        %v1020 = vunpack.c.l.b16 %v428
        %v1021 = vunpack.c.h.b16 %v428
        %v1022 = vunpack.c.l.b16 %v429
        %v1023 = vunpack.c.h.b16 %v429
        %v1024 = vunpack.c.l.b16 %v430
        %v1025 = vunpack.c.h.b16 %v430
        %v1026 = vunpack.c.l.b16 %v431
        %v1027 = vunpack.c.h.b16 %v431
        %v1028 = vunpack.c.l.b16 %v432
        %v1029 = vunpack.c.h.b16 %v432
        %v1030 = vunpack.c.l.b16 %v433
        %v1031 = vunpack.c.h.b16 %v433
        %v1032 = vunpack.c.l.b16 %v434
        %v1033 = vunpack.c.h.b16 %v434
        %v1034 = vunpack.c.l.b16 %v435
        %v1035 = vunpack.c.h.b16 %v435
        %v1036 = vunpack.c.l.b16 %v436
        %v1037 = vunpack.c.h.b16 %v436
        %v1038 = vunpack.c.l.b16 %v437
        %v1039 = vunpack.c.h.b16 %v437
        %v1040 = vunpack.c.l.b16 %v438
        %v1041 = vunpack.c.h.b16 %v438
        %v1042 = vunpack.c.l.b16 %v439
        %v1043 = vunpack.c.h.b16 %v439
        %v1044 = vunpack.c.l.b16 %v440
        %v1045 = vunpack.c.h.b16 %v440
        %v1046 = vunpack.c.l.b16 %v441
        %v1047 = vunpack.c.h.b16 %v441
        %v1048 = vunpack.c.l.b16 %v442
        %v1049 = vunpack.c.h.b16 %v442
        %v1050 = vunpack.c.l.b16 %v443
        %v1051 = vunpack.c.h.b16 %v443
        %v1052 = vunpack.c.l.b16 %v444
        %v1053 = vunpack.c.h.b16 %v444
        %v1054 = vunpack.c.l.b16 %v445
        %v1055 = vunpack.c.h.b16 %v445
        %v1056 = vunpack.c.l.b16 %v446
        %v1057 = vunpack.c.h.b16 %v446
        %v1058 = vunpack.c.l.b16 %v447
        %v1059 = vunpack.c.h.b16 %v447
        %v1060 = vunpack.c.l.b16 %v448
        %v1061 = vunpack.c.h.b16 %v448
        %v1062 = vunpack.c.l.b16 %v449
        %v1063 = vunpack.c.h.b16 %v449
        %v1064 = vunpack.c.l.b16 %v450
        %v1065 = vunpack.c.h.b16 %v450
        %v1066 = vunpack.c.l.b16 %v451
        %v1067 = vunpack.c.h.b16 %v451
        %v1068 = vunpack.c.l.b16 %v452
        %v1069 = vunpack.c.h.b16 %v452
        %v1070 = vunpack.c.l.b16 %v453
        %v1071 = vunpack.c.h.b16 %v453
        %v1072 = vunpack.c.l.b16 %v454
        %v1073 = vunpack.c.h.b16 %v454
        %v1074 = vunpack.c.l.b16 %v455
        %v1075 = vunpack.c.h.b16 %v455
        %v1076 = vunpack.c.l.b16 %v456
        %v1077 = vunpack.c.h.b16 %v456
        %v1078 = vunpack.c.l.b16 %v457
        %v1079 = vunpack.c.h.b16 %v457
        %v1080 = vunpack.c.l.b16 %v458
        %v1081 = vunpack.c.h.b16 %v458
        %v1082 = vunpack.c.l.b16 %v459
        %v1083 = vunpack.c.h.b16 %v459
        %v1084 = vunpack.c.l.b16 %v460
        %v1085 = vunpack.c.h.b16 %v460
        %v1086 = vunpack.c.l.b16 %v461
        %v1087 = vunpack.c.h.b16 %v461
        %v1088 = vunpack.c.l.b16 %v462
        %v1089 = vunpack.c.h.b16 %v462
        %v1090 = vunpack.c.l.b16 %v463
        %v1091 = vunpack.c.h.b16 %v463
        %v1092 = vunpack.c.l.b16 %v464
        %v1093 = vunpack.c.h.b16 %v464
        %v1094 = vunpack.c.l.b16 %v465
        %v1095 = vunpack.c.h.b16 %v465
        %v1096 = vunpack.c.l.b16 %v466
        %v1097 = vunpack.c.h.b16 %v466
        %v1098 = vunpack.c.l.b16 %v467
        %v1099 = vunpack.c.h.b16 %v467
        %v1100 = vunpack.c.l.b16 %v468
        %v1101 = vunpack.c.h.b16 %v468
        %v1102 = vunpack.c.l.b16 %v469
        %v1103 = vunpack.c.h.b16 %v469
        %v1104 = vunpack.c.l.b16 %v470
        %v1105 = vunpack.c.h.b16 %v470
        %v1106 = vunpack.c.l.b16 %v471
        %v1107 = vunpack.c.h.b16 %v471
        %v1108 = vunpack.c.l.b16 %v472
        %v1109 = vunpack.c.h.b16 %v472
        %v1110 = vunpack.c.l.b16 %v473
        %v1111 = vunpack.c.h.b16 %v473
        %v1112 = vunpack.c.l.b16 %v474
        %v1113 = vunpack.c.h.b16 %v474
        %v1114 = vunpack.c.l.b16 %v475
        %v1115 = vunpack.c.h.b16 %v475
        %v1116 = vunpack.c.l.b16 %v476
        %v1117 = vunpack.c.h.b16 %v476
        %v1118 = vunpack.c.l.b16 %v477
        %v1119 = vunpack.c.h.b16 %v477
        %v1120 = vunpack.c.l.b16 %v478
        %v1121 = vunpack.c.h.b16 %v478
        %v1122 = vunpack.c.l.b16 %v479
        %v1123 = vunpack.c.h.b16 %v479
        %v1124 = vunpack.c.l.b16 %v480
        %v1125 = vunpack.c.h.b16 %v480
        %v1126 = vunpack.c.l.b16 %v481
        %v1127 = vunpack.c.h.b16 %v481
        %v1128 = vunpack.c.l.b16 %v482
        %v1129 = vunpack.c.h.b16 %v482
        %v1130 = vunpack.c.l.b16 %v483
        %v1131 = vunpack.c.h.b16 %v483
        %v1132 = vunpack.c.l.b16 %v484
        %v1133 = vunpack.c.h.b16 %v484
        %v1134 = vunpack.c.l.b16 %v485
        %v1135 = vunpack.c.h.b16 %v485
        %v1136 = vunpack.c.l.b16 %v486
        %v1137 = vunpack.c.h.b16 %v486
        %v1138 = vunpack.c.l.b16 %v487
        %v1139 = vunpack.c.h.b16 %v487
        %v1140 = vunpack.c.l.b16 %v488
        %v1141 = vunpack.c.h.b16 %v488
        %v1142 = vunpack.c.l.b16 %v489
        %v1143 = vunpack.c.h.b16 %v489
        %v1144 = vunpack.c.l.b16 %v490
        %v1145 = vunpack.c.h.b16 %v490
        %v1146 = vunpack.c.l.b16 %v491
        %v1147 = vunpack.c.h.b16 %v491
        %v1148 = vunpack.c.l.b16 %v492
        %v1149 = vunpack.c.h.b16 %v492
        %v1150 = vunpack.c.l.b16 %v493
        %v1151 = vunpack.c.h.b16 %v493
        %v1152 = vunpack.c.l.b16 %v494
        %v1153 = vunpack.c.h.b16 %v494
        %v1154 = vunpack.c.l.b16 %v495
        %v1155 = vunpack.c.h.b16 %v495
        %v1156 = vunpack.c.l.b16 %v496
        %v1157 = vunpack.c.h.b16 %v496
        %v1158 = vunpack.c.l.b16 %v497
        %v1159 = vunpack.c.h.b16 %v497
        %v1160 = vunpack.c.l.b16 %v498
        %v1161 = vunpack.c.h.b16 %v498
        %v1162 = vunpack.c.l.b16 %v499
        %v1163 = vunpack.c.h.b16 %v499
        %v1164 = vunpack.c.l.b16 %v500
        %v1165 = vunpack.c.h.b16 %v500
        %v1166 = vunpack.c.l.b16 %v501
        %v1167 = vunpack.c.h.b16 %v501
        %v1168 = vunpack.c.l.b16 %v502
        %v1169 = vunpack.c.h.b16 %v502
        %v1170 = vunpack.c.l.b16 %v503
        %v1171 = vunpack.c.h.b16 %v503
        %v1172 = vunpack.c.l.b16 %v504
        %v1173 = vunpack.c.h.b16 %v504
        %v1174 = vunpack.c.l.b16 %v505
        %v1175 = vunpack.c.h.b16 %v505
        %v1176 = vunpack.c.l.b16 %v506
        %v1177 = vunpack.c.h.b16 %v506
        %v1178 = vunpack.c.l.b16 %v507
        %v1179 = vunpack.c.h.b16 %v507
        %v1180 = vunpack.c.l.b16 %v508
        %v1181 = vunpack.c.h.b16 %v508
        %v1182 = vunpack.c.l.b16 %v509
        %v1183 = vunpack.c.h.b16 %v509
        %v1184 = vunpack.c.l.b16 %v510
        %v1185 = vunpack.c.h.b16 %v510
        %v1186 = vunpack.c.l.b16 %v511
        %v1187 = vunpack.c.h.b16 %v511
        %v1188 = vunpack.c.l.b16 %v512
        %v1189 = vunpack.c.h.b16 %v512
        %v1190 = vunpack.c.l.b16 %v513
        %v1191 = vunpack.c.h.b16 %v513
        %v1192 = vunpack.c.l.b16 %v514
        %v1193 = vunpack.c.h.b16 %v514
        %v1194 = vunpack.c.l.b16 %v515
        %v1195 = vunpack.c.h.b16 %v515
        %v1196 = vunpack.c.l.b16 %v516
        %v1197 = vunpack.c.h.b16 %v516
        %v1198 = vunpack.c.l.b16 %v517
        %v1199 = vunpack.c.h.b16 %v517
        %v1200 = vunpack.c.l.b16 %v518
        %v1201 = vunpack.c.h.b16 %v518
        %v1202 = vunpack.c.l.b16 %v519
        %v1203 = vunpack.c.h.b16 %v519
        %v1204 = vunpack.c.l.b16 %v520
        %v1205 = vunpack.c.h.b16 %v520
        %v1206 = vunpack.c.l.b16 %v521
        %v1207 = vunpack.c.h.b16 %v521
        %v1208 = vunpack.c.l.b16 %v522
        %v1209 = vunpack.c.h.b16 %v522
        %v1210 = vunpack.c.l.b16 %v523
        %v1211 = vunpack.c.h.b16 %v523
        %v1212 = vunpack.c.l.b16 %v524
        %v1213 = vunpack.c.h.b16 %v524
        %v1214 = vunpack.c.l.b16 %v525
        %v1215 = vunpack.c.h.b16 %v525
        %v1216 = vunpack.c.l.b16 %v526
        %v1217 = vunpack.c.h.b16 %v526
        %v1218 = vunpack.c.l.b16 %v527
        %v1219 = vunpack.c.h.b16 %v527
        %v1220 = vunpack.c.l.b16 %v528
        %v1221 = vunpack.c.h.b16 %v528
        %v1222 = vunpack.c.l.b16 %v529
        %v1223 = vunpack.c.h.b16 %v529
        %v1224 = vunpack.c.l.b16 %v530
        %v1225 = vunpack.c.h.b16 %v530
        %v1226 = vunpack.c.l.b16 %v531
        %v1227 = vunpack.c.h.b16 %v531
        %v1228 = vunpack.c.l.b16 %v532
        %v1229 = vunpack.c.h.b16 %v532
        %v1230 = vunpack.c.l.b16 %v533
        %v1231 = vunpack.c.h.b16 %v533
        %v1232 = vunpack.c.l.b16 %v534
        %v1233 = vunpack.c.h.b16 %v534
        %v1234 = vunpack.c.l.b16 %v535
        %v1235 = vunpack.c.h.b16 %v535
        %v1236 = vunpack.c.l.b16 %v536
        %v1237 = vunpack.c.h.b16 %v536
        %v1238 = vunpack.c.l.b16 %v537
        %v1239 = vunpack.c.h.b16 %v537
        %v1240 = vunpack.c.l.b16 %v538
        %v1241 = vunpack.c.h.b16 %v538
        %v1242 = vunpack.c.l.b16 %v539
        %v1243 = vunpack.c.h.b16 %v539
        %v1244 = vpack.c.b16 %v990, %v988
        %v1245 = vpack.c.b16 %v991, %v989
        %v1246 = vpack.c.b16 %v994, %v992
        %v1247 = vpack.c.b16 %v995, %v993
        %v1248 = vpack.c.b16 %v998, %v996
        %v1249 = vpack.c.b16 %v999, %v997
        %v1250 = vpack.c.b16 %v1002, %v1000
        %v1251 = vpack.c.b16 %v1003, %v1001
        %v1252 = vpack.c.b16 %v1006, %v1004
        %v1253 = vpack.c.b16 %v1007, %v1005
        %v1254 = vpack.c.b16 %v1010, %v1008
        %v1255 = vpack.c.b16 %v1011, %v1009
        %v1256 = vpack.c.b16 %v1014, %v1012
        %v1257 = vpack.c.b16 %v1015, %v1013
        %v1258 = vpack.c.b16 %v1018, %v1016
        %v1259 = vpack.c.b16 %v1019, %v1017
        %v1260 = vpack.c.b16 %v1022, %v1020
        %v1261 = vpack.c.b16 %v1023, %v1021
        %v1262 = vpack.c.b16 %v1026, %v1024
        %v1263 = vpack.c.b16 %v1027, %v1025
        %v1264 = vpack.c.b16 %v1030, %v1028
        %v1265 = vpack.c.b16 %v1031, %v1029
        %v1266 = vpack.c.b16 %v1034, %v1032
        %v1267 = vpack.c.b16 %v1035, %v1033
        %v1268 = vpack.c.b16 %v1038, %v1036
        %v1269 = vpack.c.b16 %v1039, %v1037
        %v1270 = vpack.c.b16 %v1042, %v1040
        %v1271 = vpack.c.b16 %v1043, %v1041
        %v1272 = vpack.c.b16 %v1046, %v1044
        %v1273 = vpack.c.b16 %v1047, %v1045
        %v1274 = vpack.c.b16 %v1050, %v1048
        %v1275 = vpack.c.b16 %v1051, %v1049
        %v1276 = vpack.c.b16 %v1054, %v1052
        %v1277 = vpack.c.b16 %v1055, %v1053
        %v1278 = vpack.c.b16 %v1058, %v1056
        %v1279 = vpack.c.b16 %v1059, %v1057
        %v1280 = vpack.c.b16 %v1062, %v1060
        %v1281 = vpack.c.b16 %v1063, %v1061
        %v1282 = vpack.c.b16 %v1066, %v1064
        %v1283 = vpack.c.b16 %v1067, %v1065
        %v1284 = vpack.c.b16 %v1070, %v1068
        %v1285 = vpack.c.b16 %v1071, %v1069
        %v1286 = vpack.c.b16 %v1074, %v1072
        %v1287 = vpack.c.b16 %v1075, %v1073
        %v1288 = vpack.c.b16 %v1078, %v1076
        %v1289 = vpack.c.b16 %v1079, %v1077
        %v1290 = vpack.c.b16 %v1082, %v1080
        %v1291 = vpack.c.b16 %v1083, %v1081
        %v1292 = vpack.c.b16 %v1086, %v1084
        %v1293 = vpack.c.b16 %v1087, %v1085
        %v1294 = vpack.c.b16 %v1090, %v1088
        %v1295 = vpack.c.b16 %v1091, %v1089
        %v1296 = vpack.c.b16 %v1094, %v1092
        %v1297 = vpack.c.b16 %v1095, %v1093
        %v1298 = vpack.c.b16 %v1098, %v1096
        %v1299 = vpack.c.b16 %v1099, %v1097
        %v1300 = vpack.c.b16 %v1102, %v1100
        %v1301 = vpack.c.b16 %v1103, %v1101
        %v1302 = vpack.c.b16 %v1106, %v1104
        %v1303 = vpack.c.b16 %v1107, %v1105
        %v1304 = vpack.c.b16 %v1110, %v1108
        %v1305 = vpack.c.b16 %v1111, %v1109
        %v1306 = vpack.c.b16 %v1114, %v1112
        %v1307 = vpack.c.b16 %v1115, %v1113
        %v1308 = vpack.c.b16 %v1118, %v1116
        %v1309 = vpack.c.b16 %v1119, %v1117
        %v1310 = vpack.c.b16 %v1122, %v1120
        %v1311 = vpack.c.b16 %v1123, %v1121
        %v1312 = vpack.c.b16 %v1126, %v1124
        %v1313 = vpack.c.b16 %v1127, %v1125
        %v1314 = vpack.c.b16 %v1130, %v1128
        %v1315 = vpack.c.b16 %v1131, %v1129
        %v1316 = vpack.c.b16 %v1134, %v1132
        %v1317 = vpack.c.b16 %v1135, %v1133
        %v1318 = vpack.c.b16 %v1138, %v1136
        %v1319 = vpack.c.b16 %v1139, %v1137
        %v1320 = vpack.c.b16 %v1142, %v1140
        %v1321 = vpack.c.b16 %v1143, %v1141
        %v1322 = vpack.c.b16 %v1146, %v1144
        %v1323 = vpack.c.b16 %v1147, %v1145
        %v1324 = vpack.c.b16 %v1150, %v1148
        %v1325 = vpack.c.b16 %v1151, %v1149
        %v1326 = vpack.c.b16 %v1154, %v1152
        %v1327 = vpack.c.b16 %v1155, %v1153
        %v1328 = vpack.c.b16 %v1158, %v1156
        %v1329 = vpack.c.b16 %v1159, %v1157
        %v1330 = vpack.c.b16 %v1162, %v1160
        %v1331 = vpack.c.b16 %v1163, %v1161
        %v1332 = vpack.c.b16 %v1166, %v1164
        %v1333 = vpack.c.b16 %v1167, %v1165
        %v1334 = vpack.c.b16 %v1170, %v1168
        %v1335 = vpack.c.b16 %v1171, %v1169
        %v1336 = vpack.c.b16 %v1174, %v1172
        %v1337 = vpack.c.b16 %v1175, %v1173
        %v1338 = vpack.c.b16 %v1178, %v1176
        %v1339 = vpack.c.b16 %v1179, %v1177
        %v1340 = vpack.c.b16 %v1182, %v1180
        %v1341 = vpack.c.b16 %v1183, %v1181
        %v1342 = vpack.c.b16 %v1186, %v1184
        %v1343 = vpack.c.b16 %v1187, %v1185
        %v1344 = vpack.c.b16 %v1190, %v1188
        %v1345 = vpack.c.b16 %v1191, %v1189
        %v1346 = vpack.c.b16 %v1194, %v1192
        %v1347 = vpack.c.b16 %v1195, %v1193
        %v1348 = vpack.c.b16 %v1198, %v1196
        %v1349 = vpack.c.b16 %v1199, %v1197
        %v1350 = vpack.c.b16 %v1202, %v1200
        %v1351 = vpack.c.b16 %v1203, %v1201
        %v1352 = vpack.c.b16 %v1206, %v1204
        %v1353 = vpack.c.b16 %v1207, %v1205
        %v1354 = vpack.c.b16 %v1210, %v1208
        %v1355 = vpack.c.b16 %v1211, %v1209
        %v1356 = vpack.c.b16 %v1214, %v1212
        %v1357 = vpack.c.b16 %v1215, %v1213
        %v1358 = vpack.c.b16 %v1218, %v1216
        %v1359 = vpack.c.b16 %v1219, %v1217
        %v1360 = vpack.c.b16 %v1222, %v1220
        %v1361 = vpack.c.b16 %v1223, %v1221
        %v1362 = vpack.c.b16 %v1226, %v1224
        %v1363 = vpack.c.b16 %v1227, %v1225
        %v1364 = vpack.c.b16 %v1230, %v1228
        %v1365 = vpack.c.b16 %v1231, %v1229
        %v1366 = vpack.c.b16 %v1234, %v1232
        %v1367 = vpack.c.b16 %v1235, %v1233
        %v1368 = vpack.c.b16 %v1238, %v1236
        %v1369 = vpack.c.b16 %v1239, %v1237
        %v1370 = vpack.c.b16 %v1242, %v1240
        %v1371 = vpack.c.b16 %v1243, %v1241
        %1500 = vmatprep.subr.bf16.mxu0 %v1245
        %1501 = vmatpush1.bf16.msra.mxu0 %v1244
        %1502 = vmatprep.subr.bf16.mxu0 %v1247
        %1503 = vmatpush1.bf16.msra.mxu0 %v1246
        %1504 = vmatprep.subr.bf16.mxu0 %v1249
        %1505 = vmatpush1.bf16.msra.mxu0 %v1248
        %1506 = vmatprep.subr.bf16.mxu0 %v1251
        %1507 = vmatpush1.bf16.msra.mxu0 %v1250
        %1508 = vmatprep.subr.bf16.mxu0 %v1253
        %1509 = vmatpush1.bf16.msra.mxu0 %v1252
        %1510 = vmatprep.subr.bf16.mxu0 %v1255
        %1511 = vmatpush1.bf16.msra.mxu0 %v1254
        %1512 = vmatprep.subr.bf16.mxu0 %v1257
        %1513 = vmatpush1.bf16.msra.mxu0 %v1256
        %1514 = vmatprep.subr.bf16.mxu0 %v1259
        %1515 = vmatpush1.bf16.msra.mxu0 %v1258
        %1516 = vmatprep.subr.bf16.mxu0 %v1261
        %1517 = vmatpush1.bf16.msra.mxu0 %v1260
        %1518 = vmatprep.subr.bf16.mxu0 %v1263
        %1519 = vmatpush1.bf16.msra.mxu0 %v1262
        %1520 = vmatprep.subr.bf16.mxu0 %v1265
        %1521 = vmatpush1.bf16.msra.mxu0 %v1264
        %1522 = vmatprep.subr.bf16.mxu0 %v1267
        %1523 = vmatpush1.bf16.msra.mxu0 %v1266
        %1524 = vmatprep.subr.bf16.mxu0 %v1269
        %1525 = vmatpush1.bf16.msra.mxu0 %v1268
        %1526 = vmatprep.subr.bf16.mxu0 %v1271
        %1527 = vmatpush1.bf16.msra.mxu0 %v1270
        %1528 = vmatprep.subr.bf16.mxu0 %v1273
        %1529 = vmatpush1.bf16.msra.mxu0 %v1272
        %1530 = vmatprep.subr.bf16.mxu0 %v1275
        %1531 = vmatpush1.bf16.msra.mxu0 %v1274
        %1532 = vmatprep.mubr.bf16.mxu0 %v733
        %1533 = vmatmul.mubr.bf16.gmra.mrb[0].mxu0 %v732
        %v1534 = vpop.f32.mrb[0].mxu0
        %v1535 = vadd.f32 0.0, %v1534
        %v1536 = vpop.f32.mrb[0].mxu0
        %v1537 = vadd.f32 0.0, %v1536
        %v1538 = vpop.f32.mrb[0].mxu0
        %v1539 = vadd.f32 0.0, %v1538
        %v1540 = vpop.f32.mrb[0].mxu0
        %v1541 = vadd.f32 0.0, %v1540
        %1542 = vmatprep.mubr.bf16.mxu0 %v741
        %1543 = vmatmul.mubr.bf16.gmra.mrb[0].mxu0 %v740
        %v1544 = vpop.f32.mrb[0].mxu0
        %v1545 = vadd.f32 0.0, %v1544
        %v1546 = vpop.f32.mrb[0].mxu0
        %v1547 = vadd.f32 0.0, %v1546
        %v1548 = vpop.f32.mrb[0].mxu0
        %v1549 = vadd.f32 0.0, %v1548
        %v1550 = vpop.f32.mrb[0].mxu0
        %v1551 = vadd.f32 0.0, %v1550
        %1552 = vmatprep.mubr.bf16.mxu0 %v749
        %1553 = vmatmul.mubr.bf16.gmra.mrb[0].mxu0 %v748
        %v1554 = vpop.f32.mrb[0].mxu0
        %v1555 = vadd.f32 0.0, %v1554
        %v1556 = vpop.f32.mrb[0].mxu0
        %v1557 = vadd.f32 0.0, %v1556
        %v1558 = vpop.f32.mrb[0].mxu0
        %v1559 = vadd.f32 0.0, %v1558
        %v1560 = vpop.f32.mrb[0].mxu0
        %v1561 = vadd.f32 0.0, %v1560
        %1562 = vmatprep.mubr.bf16.mxu0 %v757
        %1563 = vmatmul.mubr.bf16.gmra.mrb[0].mxu0 %v756
        %v1564 = vpop.f32.mrb[0].mxu0
        %v1565 = vadd.f32 0.0, %v1564
        %v1566 = vpop.f32.mrb[0].mxu0
        %v1567 = vadd.f32 0.0, %v1566
        %v1568 = vpop.f32.mrb[0].mxu0
        %v1569 = vadd.f32 0.0, %v1568
        %v1570 = vpop.f32.mrb[0].mxu0
        %v1571 = vadd.f32 0.0, %v1570
        %1572 = vmatprep.mubr.bf16.mxu0 %v765
        %1573 = vmatmul.mubr.bf16.gmra.mrb[0].mxu0 %v764
        %v1574 = vpop.f32.mrb[0].mxu0
        %v1575 = vadd.f32 0.0, %v1574
        %v1576 = vpop.f32.mrb[0].mxu0
        %v1577 = vadd.f32 0.0, %v1576
        %v1578 = vpop.f32.mrb[0].mxu0
        %v1579 = vadd.f32 0.0, %v1578
        %v1580 = vpop.f32.mrb[0].mxu0
        %v1581 = vadd.f32 0.0, %v1580
        %1582 = vmatprep.mubr.bf16.mxu0 %v773
        %1583 = vmatmul.mubr.bf16.gmra.mrb[0].mxu0 %v772
        %v1584 = vpop.f32.mrb[0].mxu0
        %v1585 = vadd.f32 0.0, %v1584
        %v1586 = vpop.f32.mrb[0].mxu0
        %v1587 = vadd.f32 0.0, %v1586
        %v1588 = vpop.f32.mrb[0].mxu0
        %v1589 = vadd.f32 0.0, %v1588
        %v1590 = vpop.f32.mrb[0].mxu0
        %v1591 = vadd.f32 0.0, %v1590
        %1592 = vmatprep.mubr.bf16.mxu0 %v781
        %1593 = vmatmul.mubr.bf16.gmra.mrb[0].mxu0 %v780
        %v1594 = vpop.f32.mrb[0].mxu0
        %v1595 = vadd.f32 0.0, %v1594
        %v1596 = vpop.f32.mrb[0].mxu0
        %v1597 = vadd.f32 0.0, %v1596
        %v1598 = vpop.f32.mrb[0].mxu0
        %v1599 = vadd.f32 0.0, %v1598
        %v1600 = vpop.f32.mrb[0].mxu0
        %v1601 = vadd.f32 0.0, %v1600
        %1602 = vmatprep.mubr.bf16.mxu0 %v789
        %1603 = vmatmul.mubr.bf16.gmra.mrb[0].mxu0 %v788
        %v1604 = vpop.f32.mrb[0].mxu0
        %v1605 = vadd.f32 0.0, %v1604
        %v1606 = vpop.f32.mrb[0].mxu0
        %v1607 = vadd.f32 0.0, %v1606
        %v1608 = vpop.f32.mrb[0].mxu0
        %v1609 = vadd.f32 0.0, %v1608
        %v1610 = vpop.f32.mrb[0].mxu0
        %v1611 = vadd.f32 0.0, %v1610
        %1612 = vdwg.mxu0
        %1613 = vmatprep.subr.bf16.mxu0 %v1277
        %1614 = vmatpush1.bf16.msra.mxu0 %v1276
        %1615 = vmatprep.subr.bf16.mxu0 %v1279
        %1616 = vmatpush1.bf16.msra.mxu0 %v1278
        %1617 = vmatprep.subr.bf16.mxu0 %v1281
        %1618 = vmatpush1.bf16.msra.mxu0 %v1280
        %1619 = vmatprep.subr.bf16.mxu0 %v1283
        %1620 = vmatpush1.bf16.msra.mxu0 %v1282
        %1621 = vmatprep.subr.bf16.mxu0 %v1285
        %1622 = vmatpush1.bf16.msra.mxu0 %v1284
        %1623 = vmatprep.subr.bf16.mxu0 %v1287
        %1624 = vmatpush1.bf16.msra.mxu0 %v1286
        %1625 = vmatprep.subr.bf16.mxu0 %v1289
        %1626 = vmatpush1.bf16.msra.mxu0 %v1288
        %1627 = vmatprep.subr.bf16.mxu0 %v1291
        %1628 = vmatpush1.bf16.msra.mxu0 %v1290
        %1629 = vmatprep.subr.bf16.mxu0 %v1293
        %1630 = vmatpush1.bf16.msra.mxu0 %v1292
        %1631 = vmatprep.subr.bf16.mxu0 %v1295
        %1632 = vmatpush1.bf16.msra.mxu0 %v1294
        %1633 = vmatprep.subr.bf16.mxu0 %v1297
        %1634 = vmatpush1.bf16.msra.mxu0 %v1296
        %1635 = vmatprep.subr.bf16.mxu0 %v1299
        %1636 = vmatpush1.bf16.msra.mxu0 %v1298
        %1637 = vmatprep.subr.bf16.mxu0 %v1301
        %1638 = vmatpush1.bf16.msra.mxu0 %v1300
        %1639 = vmatprep.subr.bf16.mxu0 %v1303
        %1640 = vmatpush1.bf16.msra.mxu0 %v1302
        %1641 = vmatprep.subr.bf16.mxu0 %v1305
        %1642 = vmatpush1.bf16.msra.mxu0 %v1304
        %1643 = vmatprep.subr.bf16.mxu0 %v1307
        %1644 = vmatpush1.bf16.msra.mxu0 %v1306
        %1645 = vmatprep.mubr.bf16.mxu0 %v735
        %1646 = vmatmul.mubr.bf16.gmra.mrb[0].mxu0 %v734
        %v1647 = vpop.f32.mrb[0].mxu0
        %v1648 = vadd.f32 %v1535, %v1647
        %v1649 = vpop.f32.mrb[0].mxu0
        %v1650 = vadd.f32 %v1537, %v1649
        %v1651 = vpop.f32.mrb[0].mxu0
        %v1652 = vadd.f32 %v1539, %v1651
        %v1653 = vpop.f32.mrb[0].mxu0
        %v1654 = vadd.f32 %v1541, %v1653
        %1655 = vmatprep.mubr.bf16.mxu0 %v743
        %1656 = vmatmul.mubr.bf16.gmra.mrb[0].mxu0 %v742
        %v1657 = vpop.f32.mrb[0].mxu0
        %v1658 = vadd.f32 %v1545, %v1657
        %v1659 = vpop.f32.mrb[0].mxu0
        %v1660 = vadd.f32 %v1547, %v1659
        %v1661 = vpop.f32.mrb[0].mxu0
        %v1662 = vadd.f32 %v1549, %v1661
        %v1663 = vpop.f32.mrb[0].mxu0
        %v1664 = vadd.f32 %v1551, %v1663
        %1665 = vmatprep.mubr.bf16.mxu0 %v751
        %1666 = vmatmul.mubr.bf16.gmra.mrb[0].mxu0 %v750
        %v1667 = vpop.f32.mrb[0].mxu0
        %v1668 = vadd.f32 %v1555, %v1667
        %v1669 = vpop.f32.mrb[0].mxu0
        %v1670 = vadd.f32 %v1557, %v1669
        %v1671 = vpop.f32.mrb[0].mxu0
        %v1672 = vadd.f32 %v1559, %v1671
        %v1673 = vpop.f32.mrb[0].mxu0
        %v1674 = vadd.f32 %v1561, %v1673
        %1675 = vmatprep.mubr.bf16.mxu0 %v759
        %1676 = vmatmul.mubr.bf16.gmra.mrb[0].mxu0 %v758
        %v1677 = vpop.f32.mrb[0].mxu0
        %v1678 = vadd.f32 %v1565, %v1677
        %v1679 = vpop.f32.mrb[0].mxu0
        %v1680 = vadd.f32 %v1567, %v1679
        %v1681 = vpop.f32.mrb[0].mxu0
        %v1682 = vadd.f32 %v1569, %v1681
        %v1683 = vpop.f32.mrb[0].mxu0
        %v1684 = vadd.f32 %v1571, %v1683
        %1685 = vmatprep.mubr.bf16.mxu0 %v767
        %1686 = vmatmul.mubr.bf16.gmra.mrb[0].mxu0 %v766
        %v1687 = vpop.f32.mrb[0].mxu0
        %v1688 = vadd.f32 %v1575, %v1687
        %v1689 = vpop.f32.mrb[0].mxu0
        %v1690 = vadd.f32 %v1577, %v1689
        %v1691 = vpop.f32.mrb[0].mxu0
        %v1692 = vadd.f32 %v1579, %v1691
        %v1693 = vpop.f32.mrb[0].mxu0
        %v1694 = vadd.f32 %v1581, %v1693
        %1695 = vmatprep.mubr.bf16.mxu0 %v775
        %1696 = vmatmul.mubr.bf16.gmra.mrb[0].mxu0 %v774
        %v1697 = vpop.f32.mrb[0].mxu0
        %v1698 = vadd.f32 %v1585, %v1697
        %v1699 = vpop.f32.mrb[0].mxu0
        %v1700 = vadd.f32 %v1587, %v1699
        %v1701 = vpop.f32.mrb[0].mxu0
        %v1702 = vadd.f32 %v1589, %v1701
        %v1703 = vpop.f32.mrb[0].mxu0
        %v1704 = vadd.f32 %v1591, %v1703
        %1705 = vmatprep.mubr.bf16.mxu0 %v783
        %1706 = vmatmul.mubr.bf16.gmra.mrb[0].mxu0 %v782
        %v1707 = vpop.f32.mrb[0].mxu0
        %v1708 = vadd.f32 %v1595, %v1707
        %v1709 = vpop.f32.mrb[0].mxu0
        %v1710 = vadd.f32 %v1597, %v1709
        %v1711 = vpop.f32.mrb[0].mxu0
        %v1712 = vadd.f32 %v1599, %v1711
        %v1713 = vpop.f32.mrb[0].mxu0
        %v1714 = vadd.f32 %v1601, %v1713
        %1715 = vmatprep.mubr.bf16.mxu0 %v791
        %1716 = vmatmul.mubr.bf16.gmra.mrb[0].mxu0 %v790
        %v1717 = vpop.f32.mrb[0].mxu0
        %v1718 = vadd.f32 %v1605, %v1717
        %v1719 = vpop.f32.mrb[0].mxu0
        %v1720 = vadd.f32 %v1607, %v1719
        %v1721 = vpop.f32.mrb[0].mxu0
        %v1722 = vadd.f32 %v1609, %v1721
        %v1723 = vpop.f32.mrb[0].mxu0
        %v1724 = vadd.f32 %v1611, %v1723
        %1725 = vdwg.mxu0
        %1726 = vmatprep.subr.bf16.mxu0 %v1309
        %1727 = vmatpush1.bf16.msra.mxu0 %v1308
        %1728 = vmatprep.subr.bf16.mxu0 %v1311
        %1729 = vmatpush1.bf16.msra.mxu0 %v1310
        %1730 = vmatprep.subr.bf16.mxu0 %v1313
        %1731 = vmatpush1.bf16.msra.mxu0 %v1312
        %1732 = vmatprep.subr.bf16.mxu0 %v1315
        %1733 = vmatpush1.bf16.msra.mxu0 %v1314
        %1734 = vmatprep.subr.bf16.mxu0 %v1317
        %1735 = vmatpush1.bf16.msra.mxu0 %v1316
        %1736 = vmatprep.subr.bf16.mxu0 %v1319
        %1737 = vmatpush1.bf16.msra.mxu0 %v1318
        %1738 = vmatprep.subr.bf16.mxu0 %v1321
        %1739 = vmatpush1.bf16.msra.mxu0 %v1320
        %1740 = vmatprep.subr.bf16.mxu0 %v1323
        %1741 = vmatpush1.bf16.msra.mxu0 %v1322
        %1742 = vmatprep.subr.bf16.mxu0 %v1325
        %1743 = vmatpush1.bf16.msra.mxu0 %v1324
        %1744 = vmatprep.subr.bf16.mxu0 %v1327
        %1745 = vmatpush1.bf16.msra.mxu0 %v1326
        %1746 = vmatprep.subr.bf16.mxu0 %v1329
        %1747 = vmatpush1.bf16.msra.mxu0 %v1328
        %1748 = vmatprep.subr.bf16.mxu0 %v1331
        %1749 = vmatpush1.bf16.msra.mxu0 %v1330
        %1750 = vmatprep.subr.bf16.mxu0 %v1333
        %1751 = vmatpush1.bf16.msra.mxu0 %v1332
        %1752 = vmatprep.subr.bf16.mxu0 %v1335
        %1753 = vmatpush1.bf16.msra.mxu0 %v1334
        %1754 = vmatprep.subr.bf16.mxu0 %v1337
        %1755 = vmatpush1.bf16.msra.mxu0 %v1336
        %1756 = vmatprep.subr.bf16.mxu0 %v1339
        %1757 = vmatpush1.bf16.msra.mxu0 %v1338
        %1758 = vmatprep.mubr.bf16.mxu0 %v737
        %1759 = vmatmul.mubr.bf16.gmra.mrb[0].mxu0 %v736
        %v1760 = vpop.f32.mrb[0].mxu0
        %v1761 = vadd.f32 %v1648, %v1760
        %v1762 = vpop.f32.mrb[0].mxu0
        %v1763 = vadd.f32 %v1650, %v1762
        %v1764 = vpop.f32.mrb[0].mxu0
        %v1765 = vadd.f32 %v1652, %v1764
        %v1766 = vpop.f32.mrb[0].mxu0
        %v1767 = vadd.f32 %v1654, %v1766
        %1768 = vmatprep.mubr.bf16.mxu0 %v745
        %1769 = vmatmul.mubr.bf16.gmra.mrb[0].mxu0 %v744
        %v1770 = vpop.f32.mrb[0].mxu0
        %v1771 = vadd.f32 %v1658, %v1770
        %v1772 = vpop.f32.mrb[0].mxu0
        %v1773 = vadd.f32 %v1660, %v1772
        %v1774 = vpop.f32.mrb[0].mxu0
        %v1775 = vadd.f32 %v1662, %v1774
        %v1776 = vpop.f32.mrb[0].mxu0
        %v1777 = vadd.f32 %v1664, %v1776
        %1778 = vmatprep.mubr.bf16.mxu0 %v753
        %1779 = vmatmul.mubr.bf16.gmra.mrb[0].mxu0 %v752
        %v1780 = vpop.f32.mrb[0].mxu0
        %v1781 = vadd.f32 %v1668, %v1780
        %v1782 = vpop.f32.mrb[0].mxu0
        %v1783 = vadd.f32 %v1670, %v1782
        %v1784 = vpop.f32.mrb[0].mxu0
        %v1785 = vadd.f32 %v1672, %v1784
        %v1786 = vpop.f32.mrb[0].mxu0
        %v1787 = vadd.f32 %v1674, %v1786
        %1788 = vmatprep.mubr.bf16.mxu0 %v761
        %1789 = vmatmul.mubr.bf16.gmra.mrb[0].mxu0 %v760
        %v1790 = vpop.f32.mrb[0].mxu0
        %v1791 = vadd.f32 %v1678, %v1790
        %v1792 = vpop.f32.mrb[0].mxu0
        %v1793 = vadd.f32 %v1680, %v1792
        %v1794 = vpop.f32.mrb[0].mxu0
        %v1795 = vadd.f32 %v1682, %v1794
        %v1796 = vpop.f32.mrb[0].mxu0
        %v1797 = vadd.f32 %v1684, %v1796
        %1798 = vmatprep.mubr.bf16.mxu0 %v769
        %1799 = vmatmul.mubr.bf16.gmra.mrb[0].mxu0 %v768
        %v1800 = vpop.f32.mrb[0].mxu0
        %v1801 = vadd.f32 %v1688, %v1800
        %v1802 = vpop.f32.mrb[0].mxu0
        %v1803 = vadd.f32 %v1690, %v1802
        %v1804 = vpop.f32.mrb[0].mxu0
        %v1805 = vadd.f32 %v1692, %v1804
        %v1806 = vpop.f32.mrb[0].mxu0
        %v1807 = vadd.f32 %v1694, %v1806
        %1808 = vmatprep.mubr.bf16.mxu0 %v777
        %1809 = vmatmul.mubr.bf16.gmra.mrb[0].mxu0 %v776
        %v1810 = vpop.f32.mrb[0].mxu0
        %v1811 = vadd.f32 %v1698, %v1810
        %v1812 = vpop.f32.mrb[0].mxu0
        %v1813 = vadd.f32 %v1700, %v1812
        %v1814 = vpop.f32.mrb[0].mxu0
        %v1815 = vadd.f32 %v1702, %v1814
        %v1816 = vpop.f32.mrb[0].mxu0
        %v1817 = vadd.f32 %v1704, %v1816
        %1818 = vmatprep.mubr.bf16.mxu0 %v785
        %1819 = vmatmul.mubr.bf16.gmra.mrb[0].mxu0 %v784
        %v1820 = vpop.f32.mrb[0].mxu0
        %v1821 = vadd.f32 %v1708, %v1820
        %v1822 = vpop.f32.mrb[0].mxu0
        %v1823 = vadd.f32 %v1710, %v1822
        %v1824 = vpop.f32.mrb[0].mxu0
        %v1825 = vadd.f32 %v1712, %v1824
        %v1826 = vpop.f32.mrb[0].mxu0
        %v1827 = vadd.f32 %v1714, %v1826
        %1828 = vmatprep.mubr.bf16.mxu0 %v793
        %1829 = vmatmul.mubr.bf16.gmra.mrb[0].mxu0 %v792
        %v1830 = vpop.f32.mrb[0].mxu0
        %v1831 = vadd.f32 %v1718, %v1830
        %v1832 = vpop.f32.mrb[0].mxu0
        %v1833 = vadd.f32 %v1720, %v1832
        %v1834 = vpop.f32.mrb[0].mxu0
        %v1835 = vadd.f32 %v1722, %v1834
        %v1836 = vpop.f32.mrb[0].mxu0
        %v1837 = vadd.f32 %v1724, %v1836
        %1838 = vdwg.mxu0
        %1839 = vmatprep.subr.bf16.mxu0 %v1341
        %1840 = vmatpush1.bf16.msra.mxu0 %v1340
        %1841 = vmatprep.subr.bf16.mxu0 %v1343
        %1842 = vmatpush1.bf16.msra.mxu0 %v1342
        %1843 = vmatprep.subr.bf16.mxu0 %v1345
        %1844 = vmatpush1.bf16.msra.mxu0 %v1344
        %1845 = vmatprep.subr.bf16.mxu0 %v1347
        %1846 = vmatpush1.bf16.msra.mxu0 %v1346
        %1847 = vmatprep.subr.bf16.mxu0 %v1349
        %1848 = vmatpush1.bf16.msra.mxu0 %v1348
        %1849 = vmatprep.subr.bf16.mxu0 %v1351
        %1850 = vmatpush1.bf16.msra.mxu0 %v1350
        %1851 = vmatprep.subr.bf16.mxu0 %v1353
        %1852 = vmatpush1.bf16.msra.mxu0 %v1352
        %1853 = vmatprep.subr.bf16.mxu0 %v1355
        %1854 = vmatpush1.bf16.msra.mxu0 %v1354
        %1855 = vmatprep.subr.bf16.mxu0 %v1357
        %1856 = vmatpush1.bf16.msra.mxu0 %v1356
        %1857 = vmatprep.subr.bf16.mxu0 %v1359
        %1858 = vmatpush1.bf16.msra.mxu0 %v1358
        %1859 = vmatprep.subr.bf16.mxu0 %v1361
        %1860 = vmatpush1.bf16.msra.mxu0 %v1360
        %1861 = vmatprep.subr.bf16.mxu0 %v1363
        %1862 = vmatpush1.bf16.msra.mxu0 %v1362
        %1863 = vmatprep.subr.bf16.mxu0 %v1365
        %1864 = vmatpush1.bf16.msra.mxu0 %v1364
        %1865 = vmatprep.subr.bf16.mxu0 %v1367
        %1866 = vmatpush1.bf16.msra.mxu0 %v1366
        %1867 = vmatprep.subr.bf16.mxu0 %v1369
        %1868 = vmatpush1.bf16.msra.mxu0 %v1368
        %1869 = vmatprep.subr.bf16.mxu0 %v1371
        %1870 = vmatpush1.bf16.msra.mxu0 %v1370
        %1871 = vmatprep.mubr.bf16.mxu0 %v739
        %1872 = vmatmul.mubr.bf16.gmra.mrb[0].mxu0 %v738
        %v1873 = vpop.f32.mrb[0].mxu0
        %v1874 = vadd.f32 %v1761, %v1873
        %v1875 = vpop.f32.mrb[0].mxu0
        %v1876 = vadd.f32 %v1763, %v1875
        %v1877 = vpop.f32.mrb[0].mxu0
        %v1878 = vadd.f32 %v1765, %v1877
        %v1879 = vpop.f32.mrb[0].mxu0
        %v1880 = vadd.f32 %v1767, %v1879
        %1881 = vmatprep.mubr.bf16.mxu0 %v747
        %1882 = vmatmul.mubr.bf16.gmra.mrb[0].mxu0 %v746
        %v1883 = vpop.f32.mrb[0].mxu0
        %v1884 = vadd.f32 %v1771, %v1883
        %v1885 = vpop.f32.mrb[0].mxu0
        %v1886 = vadd.f32 %v1773, %v1885
        %v1887 = vpop.f32.mrb[0].mxu0
        %v1888 = vadd.f32 %v1775, %v1887
        %v1889 = vpop.f32.mrb[0].mxu0
        %v1890 = vadd.f32 %v1777, %v1889
        %1891 = vmatprep.mubr.bf16.mxu0 %v755
        %1892 = vmatmul.mubr.bf16.gmra.mrb[0].mxu0 %v754
        %v1893 = vpop.f32.mrb[0].mxu0
        %v1894 = vadd.f32 %v1781, %v1893
        %v1895 = vpop.f32.mrb[0].mxu0
        %v1896 = vadd.f32 %v1783, %v1895
        %v1897 = vpop.f32.mrb[0].mxu0
        %v1898 = vadd.f32 %v1785, %v1897
        %v1899 = vpop.f32.mrb[0].mxu0
        %v1900 = vadd.f32 %v1787, %v1899
        %1901 = vmatprep.mubr.bf16.mxu0 %v763
        %1902 = vmatmul.mubr.bf16.gmra.mrb[0].mxu0 %v762
        %v1903 = vpop.f32.mrb[0].mxu0
        %v1904 = vadd.f32 %v1791, %v1903
        %v1905 = vpop.f32.mrb[0].mxu0
        %v1906 = vadd.f32 %v1793, %v1905
        %v1907 = vpop.f32.mrb[0].mxu0
        %v1908 = vadd.f32 %v1795, %v1907
        %v1909 = vpop.f32.mrb[0].mxu0
        %v1910 = vadd.f32 %v1797, %v1909
        %1911 = vmatprep.mubr.bf16.mxu0 %v771
        %1912 = vmatmul.mubr.bf16.gmra.mrb[0].mxu0 %v770
        %v1913 = vpop.f32.mrb[0].mxu0
        %v1914 = vadd.f32 %v1801, %v1913
        %v1915 = vpop.f32.mrb[0].mxu0
        %v1916 = vadd.f32 %v1803, %v1915
        %v1917 = vpop.f32.mrb[0].mxu0
        %v1918 = vadd.f32 %v1805, %v1917
        %v1919 = vpop.f32.mrb[0].mxu0
        %v1920 = vadd.f32 %v1807, %v1919
        %1921 = vmatprep.mubr.bf16.mxu0 %v779
        %1922 = vmatmul.mubr.bf16.gmra.mrb[0].mxu0 %v778
        %v1923 = vpop.f32.mrb[0].mxu0
        %v1924 = vadd.f32 %v1811, %v1923
        %v1925 = vpop.f32.mrb[0].mxu0
        %v1926 = vadd.f32 %v1813, %v1925
        %v1927 = vpop.f32.mrb[0].mxu0
        %v1928 = vadd.f32 %v1815, %v1927
        %v1929 = vpop.f32.mrb[0].mxu0
        %v1930 = vadd.f32 %v1817, %v1929
        %1931 = vmatprep.mubr.bf16.mxu0 %v787
        %1932 = vmatmul.mubr.bf16.gmra.mrb[0].mxu0 %v786
        %v1933 = vpop.f32.mrb[0].mxu0
        %v1934 = vadd.f32 %v1821, %v1933
        %v1935 = vpop.f32.mrb[0].mxu0
        %v1936 = vadd.f32 %v1823, %v1935
        %v1937 = vpop.f32.mrb[0].mxu0
        %v1938 = vadd.f32 %v1825, %v1937
        %v1939 = vpop.f32.mrb[0].mxu0
        %v1940 = vadd.f32 %v1827, %v1939
        %1941 = vmatprep.mubr.bf16.mxu0 %v795
        %1942 = vmatmul.mubr.bf16.gmra.mrb[0].mxu0 %v794
        %v1943 = vpop.f32.mrb[0].mxu0
        %v1944 = vadd.f32 %v1831, %v1943
        %v1945 = vpop.f32.mrb[0].mxu0
        %v1946 = vadd.f32 %v1833, %v1945
        %v1947 = vpop.f32.mrb[0].mxu0
        %v1948 = vadd.f32 %v1835, %v1947
        %v1949 = vpop.f32.mrb[0].mxu0
        %v1950 = vadd.f32 %v1837, %v1949
        %1951 = vdwg.mxu0
        %v1952 = vadd.f32 %v313, %v1874
        %v1953 = vadd.f32 %v314, %v1876
        %v1954 = vadd.f32 %v315, %v1878
        %v1955 = vadd.f32 %v316, %v1880
        %v1956 = vadd.f32 %v317, %v1884
        %v1957 = vadd.f32 %v318, %v1886
        %v1958 = vadd.f32 %v319, %v1888
        %v1959 = vadd.f32 %v320, %v1890
        %v1960 = vadd.f32 %v321, %v1894
        %v1961 = vadd.f32 %v322, %v1896
        %v1962 = vadd.f32 %v323, %v1898
        %v1963 = vadd.f32 %v324, %v1900
        %v1964 = vadd.f32 %v325, %v1904
        %v1965 = vadd.f32 %v326, %v1906
        %v1966 = vadd.f32 %v327, %v1908
        %v1967 = vadd.f32 %v328, %v1910
        %v1968 = vadd.f32 %v329, %v1914
        %v1969 = vadd.f32 %v330, %v1916
        %v1970 = vadd.f32 %v331, %v1918
        %v1971 = vadd.f32 %v332, %v1920
        %v1972 = vadd.f32 %v333, %v1924
        %v1973 = vadd.f32 %v334, %v1926
        %v1974 = vadd.f32 %v335, %v1928
        %v1975 = vadd.f32 %v336, %v1930
        %v1976 = vadd.f32 %v337, %v1934
        %v1977 = vadd.f32 %v338, %v1936
        %v1978 = vadd.f32 %v339, %v1938
        %v1979 = vadd.f32 %v340, %v1940
        %v1980 = vadd.f32 %v341, %v1944
        %v1981 = vadd.f32 %v342, %v1946
        %v1982 = vadd.f32 %v343, %v1948
        %v1983 = vadd.f32 %v344, %v1950
        %1984 = vst [vmem:[#allocation2] sm:$0xff] %v1952
        %1985 = vst [vmem:[#allocation2 + $0x8] sm:$0xff] %v1953
        %1986 = vst [vmem:[#allocation2 + $0x10] sm:$0xff] %v1954
        %1987 = vst [vmem:[#allocation2 + $0x18] sm:$0xff] %v1955
        %1988 = vst [vmem:[#allocation2 + $0x20] sm:$0xff] %v1956
        %1989 = vst [vmem:[#allocation2 + $0x28] sm:$0xff] %v1957
        %1990 = vst [vmem:[#allocation2 + $0x30] sm:$0xff] %v1958
        %1991 = vst [vmem:[#allocation2 + $0x38] sm:$0xff] %v1959
        %1992 = vst [vmem:[#allocation2 + $0x40] sm:$0xff] %v1960
        %1993 = vst [vmem:[#allocation2 + $0x48] sm:$0xff] %v1961
        %1994 = vst [vmem:[#allocation2 + $0x50] sm:$0xff] %v1962
        %1995 = vst [vmem:[#allocation2 + $0x58] sm:$0xff] %v1963
        %1996 = vst [vmem:[#allocation2 + $0x60] sm:$0xff] %v1964
        %1997 = vst [vmem:[#allocation2 + $0x68] sm:$0xff] %v1965
        %1998 = vst [vmem:[#allocation2 + $0x70] sm:$0xff] %v1966
        %1999 = vst [vmem:[#allocation2 + $0x78] sm:$0xff] %v1967
        %2000 = vst [vmem:[#allocation2 + $0x80] sm:$0xff] %v1968
        %2001 = vst [vmem:[#allocation2 + $0x88] sm:$0xff] %v1969
        %2002 = vst [vmem:[#allocation2 + $0x90] sm:$0xff] %v1970
        %2003 = vst [vmem:[#allocation2 + $0x98] sm:$0xff] %v1971
        %2004 = vst [vmem:[#allocation2 + $0xa0] sm:$0xff] %v1972
        %2005 = vst [vmem:[#allocation2 + $0xa8] sm:$0xff] %v1973
        %2006 = vst [vmem:[#allocation2 + $0xb0] sm:$0xff] %v1974
        %2007 = vst [vmem:[#allocation2 + $0xb8] sm:$0xff] %v1975
        %2008 = vst [vmem:[#allocation2 + $0xc0] sm:$0xff] %v1976
        %2009 = vst [vmem:[#allocation2 + $0xc8] sm:$0xff] %v1977
        %2010 = vst [vmem:[#allocation2 + $0xd0] sm:$0xff] %v1978
        %2011 = vst [vmem:[#allocation2 + $0xd8] sm:$0xff] %v1979
        %2012 = vst [vmem:[#allocation2 + $0xe0] sm:$0xff] %v1980
        %2013 = vst [vmem:[#allocation2 + $0xe8] sm:$0xff] %v1981
        %2014 = vst [vmem:[#allocation2 + $0xf0] sm:$0xff] %v1982
        %2015 = vst [vmem:[#allocation2 + $0xf8] sm:$0xff] %v1983
        %p2016 = scmp.eq.s32.totalorder %s23, 8
        // Predicated region
        $region45: #{vehicle_detection_forward.5} parent=35 // pred_check
          %p2017 = pneg %p2016
        $region46: #{vehicle_detection_forward.5} parent=35 // pred_check_branch
          %2019 = sbr.rel (%p2017) target = $region48
        $region47: #{vehicle_detection_forward.5} parent=35 // pred_region
          %v2020 = vld [vmem:[#allocation2] sm:$0xff]
          %v2021 = vld [vmem:[#allocation2 + $0x8] sm:$0xff]
          %v2022 = vld [vmem:[#allocation2 + $0x10] sm:$0xff]
          %v2023 = vld [vmem:[#allocation2 + $0x18] sm:$0xff]
          %v2024 = vld [vmem:[#allocation2 + $0x20] sm:$0xff]
          %v2025 = vld [vmem:[#allocation2 + $0x28] sm:$0xff]
          %v2026 = vld [vmem:[#allocation2 + $0x30] sm:$0xff]
          %v2027 = vld [vmem:[#allocation2 + $0x38] sm:$0xff]
          %v2028 = vld [vmem:[#allocation2 + $0x40] sm:$0xff]
          %v2029 = vld [vmem:[#allocation2 + $0x48] sm:$0xff]
          %v2030 = vld [vmem:[#allocation2 + $0x50] sm:$0xff]
          %v2031 = vld [vmem:[#allocation2 + $0x58] sm:$0xff]
          %v2032 = vld [vmem:[#allocation2 + $0x60] sm:$0xff]
          %v2033 = vld [vmem:[#allocation2 + $0x68] sm:$0xff]
          %v2034 = vld [vmem:[#allocation2 + $0x70] sm:$0xff]
          %v2035 = vld [vmem:[#allocation2 + $0x78] sm:$0xff]
          %v2036 = vld [vmem:[#allocation2 + $0x80] sm:$0xff]
          %v2037 = vld [vmem:[#allocation2 + $0x88] sm:$0xff]
          %v2038 = vld [vmem:[#allocation2 + $0x90] sm:$0xff]
          %v2039 = vld [vmem:[#allocation2 + $0x98] sm:$0xff]
          %v2040 = vld [vmem:[#allocation2 + $0xa0] sm:$0xff]
          %v2041 = vld [vmem:[#allocation2 + $0xa8] sm:$0xff]
          %v2042 = vld [vmem:[#allocation2 + $0xb0] sm:$0xff]
          %v2043 = vld [vmem:[#allocation2 + $0xb8] sm:$0xff]
          %v2044 = vld [vmem:[#allocation2 + $0xc0] sm:$0xff]
          %v2045 = vld [vmem:[#allocation2 + $0xc8] sm:$0xff]
          %v2046 = vld [vmem:[#allocation2 + $0xd0] sm:$0xff]
          %v2047 = vld [vmem:[#allocation2 + $0xd8] sm:$0xff]
          %v2048 = vld [vmem:[#allocation2 + $0xe0] sm:$0xff]
          %v2049 = vld [vmem:[#allocation2 + $0xe8] sm:$0xff]
          %v2050 = vld [vmem:[#allocation2 + $0xf0] sm:$0xff]
          %v2051 = vld [vmem:[#allocation2 + $0xf8] sm:$0xff]
          %v2052 = vld [vmem:[%s263] sm:$0x3]
          %v2054 = vlaneseq
          %v2055 = vshrl.u32 %v2054, 7
          %v2056 = vsub.s32 0, %v2055
          %v2057 = vrot.slane %v2052, %v2056
          %v2058 = vlaneseq
          %v2059 = vshrl.u32 %v2058, 7
          %v2060 = vsub.s32 1, %v2059
          %v2061 = vrot.slane %v2052, %v2060
          %v2064 = vadd.f32 %v2020, %v2057
          %v2065 = vadd.f32 %v2021, %v2061
          %v2066 = vadd.f32 %v2022, %v2057
          %v2067 = vadd.f32 %v2023, %v2061
          %v2068 = vadd.f32 %v2024, %v2057
          %v2069 = vadd.f32 %v2025, %v2061
          %v2070 = vadd.f32 %v2026, %v2057
          %v2071 = vadd.f32 %v2027, %v2061
          %v2072 = vadd.f32 %v2028, %v2057
          %v2073 = vadd.f32 %v2029, %v2061
          %v2074 = vadd.f32 %v2030, %v2057
          %v2075 = vadd.f32 %v2031, %v2061
          %v2076 = vadd.f32 %v2032, %v2057
          %v2077 = vadd.f32 %v2033, %v2061
          %v2078 = vadd.f32 %v2034, %v2057
          %v2079 = vadd.f32 %v2035, %v2061
          %v2080 = vadd.f32 %v2036, %v2057
          %v2081 = vadd.f32 %v2037, %v2061
          %v2082 = vadd.f32 %v2038, %v2057
          %v2083 = vadd.f32 %v2039, %v2061
          %v2084 = vadd.f32 %v2040, %v2057
          %v2085 = vadd.f32 %v2041, %v2061
          %v2086 = vadd.f32 %v2042, %v2057
          %v2087 = vadd.f32 %v2043, %v2061
          %v2088 = vadd.f32 %v2044, %v2057
          %v2089 = vadd.f32 %v2045, %v2061
          %v2090 = vadd.f32 %v2046, %v2057
          %v2091 = vadd.f32 %v2047, %v2061
          %v2092 = vadd.f32 %v2048, %v2057
          %v2093 = vadd.f32 %v2049, %v2061
          %v2094 = vadd.f32 %v2050, %v2057
          %v2095 = vadd.f32 %v2051, %v2061
          %v2096 = vmax.f32 %v2064, 0.0
          %v2097 = vmax.f32 %v2065, 0.0
          %v2098 = vmax.f32 %v2066, 0.0
          %v2099 = vmax.f32 %v2067, 0.0
          %v2100 = vmax.f32 %v2068, 0.0
          %v2101 = vmax.f32 %v2069, 0.0
          %v2102 = vmax.f32 %v2070, 0.0
          %v2103 = vmax.f32 %v2071, 0.0
          %v2104 = vmax.f32 %v2072, 0.0
          %v2105 = vmax.f32 %v2073, 0.0
          %v2106 = vmax.f32 %v2074, 0.0
          %v2107 = vmax.f32 %v2075, 0.0
          %v2108 = vmax.f32 %v2076, 0.0
          %v2109 = vmax.f32 %v2077, 0.0
          %v2110 = vmax.f32 %v2078, 0.0
          %v2111 = vmax.f32 %v2079, 0.0
          %v2112 = vmax.f32 %v2080, 0.0
          %v2113 = vmax.f32 %v2081, 0.0
          %v2114 = vmax.f32 %v2082, 0.0
          %v2115 = vmax.f32 %v2083, 0.0
          %v2116 = vmax.f32 %v2084, 0.0
          %v2117 = vmax.f32 %v2085, 0.0
          %v2118 = vmax.f32 %v2086, 0.0
          %v2119 = vmax.f32 %v2087, 0.0
          %v2120 = vmax.f32 %v2088, 0.0
          %v2121 = vmax.f32 %v2089, 0.0
          %v2122 = vmax.f32 %v2090, 0.0
          %v2123 = vmax.f32 %v2091, 0.0
          %v2124 = vmax.f32 %v2092, 0.0
          %v2125 = vmax.f32 %v2093, 0.0
          %v2126 = vmax.f32 %v2094, 0.0
          %v2127 = vmax.f32 %v2095, 0.0
          %v2128 = vpack.c.bf16 %v2098, %v2096
          %v2129 = vpack.c.bf16 %v2099, %v2097
          %v2130 = vpack.c.bf16 %v2102, %v2100
          %v2131 = vpack.c.bf16 %v2103, %v2101
          %v2132 = vpack.c.bf16 %v2106, %v2104
          %v2133 = vpack.c.bf16 %v2107, %v2105
          %v2134 = vpack.c.bf16 %v2110, %v2108
          %v2135 = vpack.c.bf16 %v2111, %v2109
          %v2136 = vpack.c.bf16 %v2114, %v2112
          %v2137 = vpack.c.bf16 %v2115, %v2113
          %v2138 = vpack.c.bf16 %v2118, %v2116
          %v2139 = vpack.c.bf16 %v2119, %v2117
          %v2140 = vpack.c.bf16 %v2122, %v2120
          %v2141 = vpack.c.bf16 %v2123, %v2121
          %v2142 = vpack.c.bf16 %v2126, %v2124
          %v2143 = vpack.c.bf16 %v2127, %v2125
          %v2144 = vld [vmem:[%s269] sm:$0xf]
          %v2145 = vld [vmem:[%s269 + $0x4] sm:$0xf]
          %v2146 = vld [vmem:[%s269 + $0x8] sm:$0xf]
          %v2147 = vld [vmem:[%s269 + $0xc] sm:$0xf]
          %v2148 = vld [vmem:[%s269 + $0x10] sm:$0xf]
          %v2149 = vld [vmem:[%s269 + $0x14] sm:$0xf]
          %v2150 = vld [vmem:[%s269 + $0x18] sm:$0xf]
          %v2151 = vld [vmem:[%s269 + $0x1c] sm:$0xf]
          %v2152 = vld [vmem:[%s269 + $0x20] sm:$0xf]
          %v2153 = vld [vmem:[%s269 + $0x24] sm:$0xf]
          %v2154 = vld [vmem:[%s269 + $0x28] sm:$0xf]
          %v2155 = vld [vmem:[%s269 + $0x2c] sm:$0xf]
          %v2156 = vld [vmem:[%s269 + $0x30] sm:$0xf]
          %v2157 = vld [vmem:[%s269 + $0x34] sm:$0xf]
          %v2158 = vld [vmem:[%s269 + $0x38] sm:$0xf]
          %v2159 = vld [vmem:[%s269 + $0x3c] sm:$0xf]
          %v2160 = vld [vmem:[%s269 + $0x40] sm:$0xf]
          %v2161 = vld [vmem:[%s269 + $0x44] sm:$0xf]
          %v2162 = vld [vmem:[%s269 + $0x48] sm:$0xf]
          %v2163 = vld [vmem:[%s269 + $0x4c] sm:$0xf]
          %v2164 = vld [vmem:[%s269 + $0x50] sm:$0xf]
          %v2165 = vld [vmem:[%s269 + $0x54] sm:$0xf]
          %v2166 = vld [vmem:[%s269 + $0x58] sm:$0xf]
          %v2167 = vld [vmem:[%s269 + $0x5c] sm:$0xf]
          %v2168 = vld [vmem:[%s269 + $0x60] sm:$0xf]
          %v2169 = vld [vmem:[%s269 + $0x64] sm:$0xf]
          %v2170 = vld [vmem:[%s269 + $0x68] sm:$0xf]
          %v2171 = vld [vmem:[%s269 + $0x6c] sm:$0xf]
          %v2172 = vld [vmem:[%s269 + $0x70] sm:$0xf]
          %v2173 = vld [vmem:[%s269 + $0x74] sm:$0xf]
          %v2174 = vld [vmem:[%s269 + $0x78] sm:$0xf]
          %v2175 = vld [vmem:[%s269 + $0x7c] sm:$0xf]
          %v2208 = vunpack.c.l.b16 %v2144
          %v2209 = vunpack.c.l.b16 %v2145
          %v2210 = vunpack.c.l.b16 %v2146
          %v2211 = vunpack.c.l.b16 %v2147
          %v2212 = vunpack.c.l.b16 %v2148
          %v2213 = vunpack.c.l.b16 %v2149
          %v2214 = vunpack.c.l.b16 %v2150
          %v2215 = vunpack.c.l.b16 %v2151
          %v2216 = vunpack.c.l.b16 %v2152
          %v2217 = vunpack.c.l.b16 %v2153
          %v2218 = vunpack.c.l.b16 %v2154
          %v2219 = vunpack.c.l.b16 %v2155
          %v2220 = vunpack.c.l.b16 %v2156
          %v2221 = vunpack.c.l.b16 %v2157
          %v2222 = vunpack.c.l.b16 %v2158
          %v2223 = vunpack.c.l.b16 %v2159
          %v2224 = vunpack.c.l.b16 %v2160
          %v2225 = vunpack.c.l.b16 %v2161
          %v2226 = vunpack.c.l.b16 %v2162
          %v2227 = vunpack.c.l.b16 %v2163
          %v2228 = vunpack.c.l.b16 %v2164
          %v2229 = vunpack.c.l.b16 %v2165
          %v2230 = vunpack.c.l.b16 %v2166
          %v2231 = vunpack.c.l.b16 %v2167
          %v2232 = vunpack.c.l.b16 %v2168
          %v2233 = vunpack.c.l.b16 %v2169
          %v2234 = vunpack.c.l.b16 %v2170
          %v2235 = vunpack.c.l.b16 %v2171
          %v2236 = vunpack.c.l.b16 %v2172
          %v2237 = vunpack.c.l.b16 %v2173
          %v2238 = vunpack.c.l.b16 %v2174
          %v2239 = vunpack.c.l.b16 %v2175
          %v2240 = vpack.c.b16 %v2209, %v2208
          %v2241 = vpack.c.b16 %v2211, %v2210
          %v2242 = vpack.c.b16 %v2213, %v2212
          %v2243 = vpack.c.b16 %v2215, %v2214
          %v2244 = vpack.c.b16 %v2217, %v2216
          %v2245 = vpack.c.b16 %v2219, %v2218
          %v2246 = vpack.c.b16 %v2221, %v2220
          %v2247 = vpack.c.b16 %v2223, %v2222
          %v2248 = vpack.c.b16 %v2225, %v2224
          %v2249 = vpack.c.b16 %v2227, %v2226
          %v2250 = vpack.c.b16 %v2229, %v2228
          %v2251 = vpack.c.b16 %v2231, %v2230
          %v2252 = vpack.c.b16 %v2233, %v2232
          %v2253 = vpack.c.b16 %v2235, %v2234
          %v2254 = vpack.c.b16 %v2237, %v2236
          %v2255 = vpack.c.b16 %v2239, %v2238
          %2272 = vmatprep.subr.bf16.mxu0 0
          %2273 = vmatpush1.bf16.msra.mxu0 %v2240
          %2274 = vmatprep.subr.bf16.mxu0 0
          %2275 = vmatpush1.bf16.msra.mxu0 %v2241
          %2276 = vmatprep.subr.bf16.mxu0 0
          %2277 = vmatpush1.bf16.msra.mxu0 %v2242
          %2278 = vmatprep.subr.bf16.mxu0 0
          %2279 = vmatpush1.bf16.msra.mxu0 %v2243
          %2280 = vmatprep.subr.bf16.mxu0 0
          %2281 = vmatpush1.bf16.msra.mxu0 %v2244
          %2282 = vmatprep.subr.bf16.mxu0 0
          %2283 = vmatpush1.bf16.msra.mxu0 %v2245
          %2284 = vmatprep.subr.bf16.mxu0 0
          %2285 = vmatpush1.bf16.msra.mxu0 %v2246
          %2286 = vmatprep.subr.bf16.mxu0 0
          %2287 = vmatpush1.bf16.msra.mxu0 %v2247
          %2288 = vmatprep.subr.bf16.mxu0 0
          %2289 = vmatpush1.bf16.msra.mxu0 %v2248
          %2290 = vmatprep.subr.bf16.mxu0 0
          %2291 = vmatpush1.bf16.msra.mxu0 %v2249
          %2292 = vmatprep.subr.bf16.mxu0 0
          %2293 = vmatpush1.bf16.msra.mxu0 %v2250
          %2294 = vmatprep.subr.bf16.mxu0 0
          %2295 = vmatpush1.bf16.msra.mxu0 %v2251
          %2296 = vmatprep.subr.bf16.mxu0 0
          %2297 = vmatpush1.bf16.msra.mxu0 %v2252
          %2298 = vmatprep.subr.bf16.mxu0 0
          %2299 = vmatpush1.bf16.msra.mxu0 %v2253
          %2300 = vmatprep.subr.bf16.mxu0 0
          %2301 = vmatpush1.bf16.msra.mxu0 %v2254
          %2302 = vmatprep.subr.bf16.mxu0 0
          %2303 = vmatpush1.bf16.msra.mxu0 %v2255
          %2304 = vmatprep.mubr.bf16.mxu0 %v2129
          %2305 = vmatmul.mubr.bf16.gmra.mrb[0].mxu0 %v2128
          %v2306 = vpop.f32.mrb[0].mxu0
          %v2307 = vadd.f32 0.0, %v2306
          %v2308 = vpop.f32.mrb[0].mxu0
          %v2309 = vpop.f32.mrb[0].mxu0
          %v2310 = vadd.f32 0.0, %v2309
          %v2311 = vpop.f32.mrb[0].mxu0
          %2312 = vmatprep.mubr.bf16.mxu0 %v2131
          %2313 = vmatmul.mubr.bf16.gmra.mrb[0].mxu0 %v2130
          %v2314 = vpop.f32.mrb[0].mxu0
          %v2315 = vadd.f32 0.0, %v2314
          %v2316 = vpop.f32.mrb[0].mxu0
          %v2317 = vpop.f32.mrb[0].mxu0
          %v2318 = vadd.f32 0.0, %v2317
          %v2319 = vpop.f32.mrb[0].mxu0
          %2320 = vmatprep.mubr.bf16.mxu0 %v2133
          %2321 = vmatmul.mubr.bf16.gmra.mrb[0].mxu0 %v2132
          %v2322 = vpop.f32.mrb[0].mxu0
          %v2323 = vadd.f32 0.0, %v2322
          %v2324 = vpop.f32.mrb[0].mxu0
          %v2325 = vpop.f32.mrb[0].mxu0
          %v2326 = vadd.f32 0.0, %v2325
          %v2327 = vpop.f32.mrb[0].mxu0
          %2328 = vmatprep.mubr.bf16.mxu0 %v2135
          %2329 = vmatmul.mubr.bf16.gmra.mrb[0].mxu0 %v2134
          %v2330 = vpop.f32.mrb[0].mxu0
          %v2331 = vadd.f32 0.0, %v2330
          %v2332 = vpop.f32.mrb[0].mxu0
          %v2333 = vpop.f32.mrb[0].mxu0
          %v2334 = vadd.f32 0.0, %v2333
          %v2335 = vpop.f32.mrb[0].mxu0
          %2336 = vmatprep.mubr.bf16.mxu0 %v2137
          %2337 = vmatmul.mubr.bf16.gmra.mrb[0].mxu0 %v2136
          %v2338 = vpop.f32.mrb[0].mxu0
          %v2339 = vadd.f32 0.0, %v2338
          %v2340 = vpop.f32.mrb[0].mxu0
          %v2341 = vpop.f32.mrb[0].mxu0
          %v2342 = vadd.f32 0.0, %v2341
          %v2343 = vpop.f32.mrb[0].mxu0
          %2344 = vmatprep.mubr.bf16.mxu0 %v2139
          %2345 = vmatmul.mubr.bf16.gmra.mrb[0].mxu0 %v2138
          %v2346 = vpop.f32.mrb[0].mxu0
          %v2347 = vadd.f32 0.0, %v2346
          %v2348 = vpop.f32.mrb[0].mxu0
          %v2349 = vpop.f32.mrb[0].mxu0
          %v2350 = vadd.f32 0.0, %v2349
          %v2351 = vpop.f32.mrb[0].mxu0
          %2352 = vmatprep.mubr.bf16.mxu0 %v2141
          %2353 = vmatmul.mubr.bf16.gmra.mrb[0].mxu0 %v2140
          %v2354 = vpop.f32.mrb[0].mxu0
          %v2355 = vadd.f32 0.0, %v2354
          %v2356 = vpop.f32.mrb[0].mxu0
          %v2357 = vpop.f32.mrb[0].mxu0
          %v2358 = vadd.f32 0.0, %v2357
          %v2359 = vpop.f32.mrb[0].mxu0
          %2360 = vmatprep.mubr.bf16.mxu0 %v2143
          %2361 = vmatmul.mubr.bf16.gmra.mrb[0].mxu0 %v2142
          %v2362 = vpop.f32.mrb[0].mxu0
          %v2363 = vadd.f32 0.0, %v2362
          %v2364 = vpop.f32.mrb[0].mxu0
          %v2365 = vpop.f32.mrb[0].mxu0
          %v2366 = vadd.f32 0.0, %v2365
          %v2367 = vpop.f32.mrb[0].mxu0
          %2368 = vdwg.mxu0
          %2369 = vst [vmem:[%s275] sm:$0xff] %v2307
          %2370 = vst [vmem:[%s275 + $0x8] sm:$0xff] %v2310
          %2371 = vst [vmem:[%s275 + $0x10] sm:$0xff] %v2315
          %2372 = vst [vmem:[%s275 + $0x18] sm:$0xff] %v2318
          %2373 = vst [vmem:[%s275 + $0x20] sm:$0xff] %v2323
          %2374 = vst [vmem:[%s275 + $0x28] sm:$0xff] %v2326
          %2375 = vst [vmem:[%s275 + $0x30] sm:$0xff] %v2331
          %2376 = vst [vmem:[%s275 + $0x38] sm:$0xff] %v2334
          %2377 = vst [vmem:[%s275 + $0x40] sm:$0xff] %v2339
          %2378 = vst [vmem:[%s275 + $0x48] sm:$0xff] %v2342
          %2379 = vst [vmem:[%s275 + $0x50] sm:$0xff] %v2347
          %2380 = vst [vmem:[%s275 + $0x58] sm:$0xff] %v2350
          %2381 = vst [vmem:[%s275 + $0x60] sm:$0xff] %v2355
          %2382 = vst [vmem:[%s275 + $0x68] sm:$0xff] %v2358
          %2383 = vst [vmem:[%s275 + $0x70] sm:$0xff] %v2363
          %2384 = vst [vmem:[%s275 + $0x78] sm:$0xff] %v2366
        $region48: #{vehicle_detection_forward.5} parent=35 // pred_fallthru
          _
        %p2385 = scmp.lt.s32.totalorder %s22, 3
        %s2386 = scalar_select %p2385, %s22, 3
        %s2387 = smul.addr %s2386, 16
        %s2388 = smul.addr %s2387, 8
        %s2389 = scalar_lea.vmem %s4, %s2388
        // Predicated region
        $region49: #{vehicle_detection_forward.5} parent=35 // pred_check
          %p2390 = pneg %p149
        $region50: #{vehicle_detection_forward.5} parent=35 // pred_check_branch
          %2392 = sbr.rel (%p2390) target = $region52
        $region51: #{vehicle_detection_forward.5} parent=35 // pred_region
          _
        $region52: #{vehicle_detection_forward.5} parent=35 // pred_fallthru
          _
      $region36: #{vehicle_detection_forward.5} parent=5 // pred_fallthru
        _
      %p2393 = scmp.le.s32.totalorder 2, %s13
      // Predicated region
      $region53: #{vehicle_detection_forward.5} parent=5 // pred_check
        %p2394 = pneg %p2393
      $region54: #{vehicle_detection_forward.5} parent=5 // pred_check_branch
        %2396 = sbr.rel (%p2394) target = $region56
      $region55: #{vehicle_detection_forward.5} parent=5 // pred_region
        %s2397 = ssub.s32 %s13, 2
        // Predicated region
        $region57: #{vehicle_detection_forward.5} parent=55 // pred_check
          %p2398 = pneg %p155
        $region58: #{vehicle_detection_forward.5} parent=55 // pred_check_branch
          %2400 = sbr.rel (%p2398) target = $region60
        $region59: #{vehicle_detection_forward.5} parent=55 // pred_region
          %p2401 = scmp.lt.s32.totalorder %s24, 3
          %s2402 = scalar_select %p2401, %s24, 3
          %s2403 = smul.addr %s2402, 16
          %s2404 = smul.addr %s2403, 8
          %s2405 = scalar_lea.vmem %s4, %s2404
        $region60: #{vehicle_detection_forward.5} parent=55 // pred_fallthru
          _
      $region56: #{vehicle_detection_forward.5} parent=5 // pred_fallthru
        _
    $region6: #{vehicle_detection_forward.5} parent=1 // loop_footer
      %s17 = sadd.s32 1, %s13
    $region7: #{vehicle_detection_forward.5} parent=1 // loop_footer_branch
      %12 = sbr.rel target = $region3
    $region8: #{vehicle_detection_forward.5} parent=1 // loop_exit
      _
    %2406 = vsyncpa [#allocation4], 1
    %s2407 = scalar_lea.sflag [#allocation4], 1
    %2408 = vsyncpa %s2407, 1

// kernel: vehicle_detection_forward.4
$region0: #{vehicle_detection_forward.4}
  #allocation0 [shape = 'u32[]', space=smem, size = 0x4, offset = 0x4, fixed_abs, tag = 'smem constant byte address 0x4 - core index']
  #allocation1 [shape = 'u32[144,128]{1,0:T(1,128)}', space=vmem, size = 0x12000, scoped, tag = 'internal scratch']
  %s0 = inlined_call_operand.vmem [shape: bf16[128,1024], index: 0, kind: input, shape index: {}]
  %s1 = inlined_call_operand.vmem [shape: bf16[1024,256], index: 1, kind: input, shape index: {}]
  %s2 = inlined_call_operand.vmem [shape: f32[1,256], index: 2, kind: input, shape index: {}]
  %s3 = inlined_call_operand.hbm [shape: f32[128,256], index: 3, kind: output, shape index: {}]
  %s4 = sld [smem:[#allocation0]]
  $region86: #{vehicle_detection_forward.4} parent=0
    _
  %s6 = ssub.s32 1, %s4
  %s7 = scalar_select 0, %s6, %s4
  $region1: #{vehicle_detection_forward.4} parent=0
    #allocation2 [shape = 'u8[524288]{0}', space=vmem, size = 0x80000, scoped, tag = 'input window, operand 1']
    #allocation3 [shape = 'u8[131072]{0}', space=vmem, size = 0x20000, scoped, tag = 'output window, operand 0']
    #allocation4 [shape = 's32[2]{0}', space=sflag, size = 0x8, scoped, tag = 'scoped memory for vehicle_detection_forward.4']
    %8 = vsyncpa [#allocation4], 0
    %s9 = scalar_lea.sflag [#allocation4], 1
    %10 = vsyncpa %s9, 0
    loop: start=0, step=1, limit=4
    $region2: #{vehicle_detection_forward.4} parent=1 // loop_pre_header
      _
    $region3: #{vehicle_detection_forward.4} parent=1 // loop_header
      %s12 = sphi 0, %s16
      %p13 = scmp.ge.s32.totalorder %s12, 4
      %s19 = sphi 0, %s31
      %s20 = sphi 0, %s27
      %s21 = sphi 0, %s19
      %s22 = sphi 0, %s20
      %s23 = sphi 0, %s21
      %s24 = sphi 0, %s22
      %s34 = sphi 0, %s36
      %s37 = sphi 0, %s34
      %s38 = sphi 0, %s37
      %s54 = sphi 0, %s38
      %s60 = sphi 0, %s62
      %s63 = sphi 0, %s60
      %s64 = sphi 0, %s63
      %s80 = sphi 0, %s64
      %s86 = sphi 0, %s88
      %s89 = sphi 0, %s86
      %s90 = sphi 0, %s89
      %s106 = sphi 0, %s90
      %s114 = sphi 0, %s116
      %s117 = sphi 0, %s114
      %s118 = sphi 0, %s117
      %s134 = sphi 0, %s118
    $region4: #{vehicle_detection_forward.4} parent=1 // loop_header_branch
      %15 = sbr.rel (%p13) target = $region8
    $region5: #{vehicle_detection_forward.4} parent=1 // loop_body
      %s17 = ssub.s32 %s12, 1
      %s18 = ssub.s32 %s12, 2
      %s25 = sadd.s32 1, %s20
      %p26 = scmp.ge.s32.totalorder %s25, 2
      %s27 = scalar_select %p26, 0, %s25
      %s28 = sadd.s32 1, %s19
      %s29 = scalar_select %p26, %s28, %s19
      %p30 = scmp.ge.s32.totalorder %s29, 1
      %s31 = scalar_select %p30, 0, %s29
      %s32 = ssub.s32 %s19, %s31
      %p33 = scmp.eq.s32.totalorder %s32, 0
      %s35 = sadd.s32 %s34, 1
      %s36 = scalar_select %p33, %s34, %s35
      %p39 = pneg %p33
      %p40 = scmp.eq.s32.totalorder %s12, 1
      %p41 = por %p39, %p40
      %p42 = scmp.ne.s32.totalorder %s34, %s37
      %p43 = scmp.eq.s32.totalorder %s12, 0
      %p44 = por %p42, %p43
      %p45 = scmp.ne.s32.totalorder %s34, %s37
      %p46 = scmp.eq.s32.totalorder %s17, 1
      %p47 = por %p45, %p46
      %p48 = scmp.ne.s32.totalorder %s37, %s38
      %p49 = scmp.eq.s32.totalorder %s17, 0
      %p50 = por %p48, %p49
      %p51 = scmp.ne.s32.totalorder %s37, %s38
      %p52 = scmp.eq.s32.totalorder %s18, 1
      %p53 = por %p51, %p52
      %p55 = scmp.ne.s32.totalorder %s38, %s54
      %p56 = scmp.eq.s32.totalorder %s18, 0
      %p57 = por %p55, %p56
      %s58 = ssub.s32 %s20, %s27
      %p59 = scmp.eq.s32.totalorder %s58, 0
      %s61 = sadd.s32 %s60, 1
      %s62 = scalar_select %p59, %s60, %s61
      %p65 = pneg %p59
      %p66 = scmp.eq.s32.totalorder %s12, 1
      %p67 = por %p65, %p66
      %p68 = scmp.ne.s32.totalorder %s60, %s63
      %p69 = scmp.eq.s32.totalorder %s12, 0
      %p70 = por %p68, %p69
      %p71 = scmp.ne.s32.totalorder %s60, %s63
      %p72 = scmp.eq.s32.totalorder %s17, 1
      %p73 = por %p71, %p72
      %p74 = scmp.ne.s32.totalorder %s63, %s64
      %p75 = scmp.eq.s32.totalorder %s17, 0
      %p76 = por %p74, %p75
      %p77 = scmp.ne.s32.totalorder %s63, %s64
      %p78 = scmp.eq.s32.totalorder %s18, 1
      %p79 = por %p77, %p78
      %p81 = scmp.ne.s32.totalorder %s64, %s80
      %p82 = scmp.eq.s32.totalorder %s18, 0
      %p83 = por %p81, %p82
      %s84 = ssub.s32 %s20, %s27
      %p85 = scmp.eq.s32.totalorder %s84, 0
      %s87 = sadd.s32 %s86, 1
      %s88 = scalar_select %p85, %s86, %s87
      %p91 = pneg %p85
      %p92 = scmp.eq.s32.totalorder %s12, 1
      %p93 = por %p91, %p92
      %p94 = scmp.ne.s32.totalorder %s86, %s89
      %p95 = scmp.eq.s32.totalorder %s12, 0
      %p96 = por %p94, %p95
      %p97 = scmp.ne.s32.totalorder %s86, %s89
      %p98 = scmp.eq.s32.totalorder %s17, 1
      %p99 = por %p97, %p98
      %p100 = scmp.ne.s32.totalorder %s89, %s90
      %p101 = scmp.eq.s32.totalorder %s17, 0
      %p102 = por %p100, %p101
      %p103 = scmp.ne.s32.totalorder %s89, %s90
      %p104 = scmp.eq.s32.totalorder %s18, 1
      %p105 = por %p103, %p104
      %p107 = scmp.ne.s32.totalorder %s90, %s106
      %p108 = scmp.eq.s32.totalorder %s18, 0
      %p109 = por %p107, %p108
      %s110 = ssub.s32 %s19, %s31
      %s111 = ssub.s32 %s20, %s27
      %s112 = sor.u32 %s110, %s111
      %p113 = scmp.eq.s32.totalorder %s112, 0
      %s115 = sadd.s32 %s114, 1
      %s116 = scalar_select %p113, %s114, %s115
      %p119 = pneg %p113
      %p120 = scmp.eq.s32.totalorder %s12, 1
      %p121 = por %p119, %p120
      %p122 = scmp.ne.s32.totalorder %s114, %s117
      %p123 = scmp.eq.s32.totalorder %s12, 0
      %p124 = por %p122, %p123
      %p125 = scmp.ne.s32.totalorder %s114, %s117
      %p126 = scmp.eq.s32.totalorder %s17, 1
      %p127 = por %p125, %p126
      %p128 = scmp.ne.s32.totalorder %s117, %s118
      %p129 = scmp.eq.s32.totalorder %s17, 0
      %p130 = por %p128, %p129
      %p131 = scmp.ne.s32.totalorder %s117, %s118
      %p132 = scmp.eq.s32.totalorder %s18, 1
      %p133 = por %p131, %p132
      %p135 = scmp.ne.s32.totalorder %s118, %s134
      %p136 = scmp.eq.s32.totalorder %s18, 0
      %p137 = por %p135, %p136
      %p138 = scmp.le.s32.totalorder 1, %s12
      %p139 = scmp.lt.s32.totalorder %s12, 3
      %p140 = pnand %p138, %p139
      %p141 = pneg %p140
      // Predicated region
      $region9: #{vehicle_detection_forward.4} parent=5 // pred_check
        _
      $region10: #{vehicle_detection_forward.4} parent=5 // pred_check_branch
        %143 = sbr.rel (%p140) target = $region12
      $region11: #{vehicle_detection_forward.4} parent=5 // pred_region
        %s144 = ssub.s32 %s12, 1
        // Predicated region
        $region13: #{vehicle_detection_forward.4} parent=11 // pred_check
          %p145 = pneg %p50
        $region14: #{vehicle_detection_forward.4} parent=11 // pred_check_branch
          %147 = sbr.rel (%p145) target = $region16
        $region15: #{vehicle_detection_forward.4} parent=11 // pred_region
          %s148 = smul.u32 16, %s21
          %p149 = scmp.lt.s32.totalorder %s148, 15
          %s150 = scalar_select %p149, %s148, 15
          %s151 = smul.addr %s150, 8
          %s152 = smul.addr %s151, 4
          %s153 = scalar_lea.vmem %s0, %s152
          %s154 = smul.u32 16, %s21
        $region16: #{vehicle_detection_forward.4} parent=11 // pred_fallthru
          _
      $region12: #{vehicle_detection_forward.4} parent=5 // pred_fallthru
        _
      %p155 = scmp.lt.s32.totalorder %s12, 2
      // Predicated region
      $region17: #{vehicle_detection_forward.4} parent=5 // pred_check
        %p156 = pneg %p155
      $region18: #{vehicle_detection_forward.4} parent=5 // pred_check_branch
        %158 = sbr.rel (%p156) target = $region20
      $region19: #{vehicle_detection_forward.4} parent=5 // pred_region
        // Predicated region
        $region21: #{vehicle_detection_forward.4} parent=19 // pred_check
          %p159 = pneg %p70
        $region22: #{vehicle_detection_forward.4} parent=19 // pred_check_branch
          %161 = sbr.rel (%p159) target = $region24
        $region23: #{vehicle_detection_forward.4} parent=19 // pred_region
          %s162 = sand.u32 %s60, 1
          %s163 = sand.u32 %s60, 1
          %s164 = smul.addr %s163, 512
          %s165 = scalar_lea.vmem [#allocation2], %s164
          %s166 = smul.addr %s20, 4
          %s167 = scalar_lea.vmem %s1, %s166
          // Predicated region
          $region25: #{vehicle_detection_forward.4} parent=23 // pred_check
            _
          $region26: #{vehicle_detection_forward.4} parent=23 // pred_check_branch
            %169 = sbr.rel (0) target = $region28
          $region27: #{vehicle_detection_forward.4} parent=23 // pred_region
            // Predicated region
            $region29: #{vehicle_detection_forward.4} parent=27 // pred_check
              _
            $region30: #{vehicle_detection_forward.4} parent=27 // pred_check_branch
              %171 = sbr.rel target = $region32
            $region31: #{vehicle_detection_forward.4} parent=27 // pred_region
              // Predicated region
              $region44: #{vehicle_detection_forward.4} parent=31 // pred_check
                _
              $region45: #{vehicle_detection_forward.4} parent=31 // pred_check_branch
                %440 = sbr.rel (0) target = $region47
              $region46: #{vehicle_detection_forward.4} parent=31 // pred_region
                loop: start=0, step=1, limit=1
                $region48: #{vehicle_detection_forward.4} parent=46 // loop_pre_header
                  _
                $region49: #{vehicle_detection_forward.4} parent=46 // loop_header
                  %s442 = sphi 0, %s446
                  %p443 = scmp.ge.s32.totalorder %s442, 1
                  %s447 = sphi %s167, %s167
                  %s448 = sphi %s165, %s165
                $region50: #{vehicle_detection_forward.4} parent=46 // loop_header_branch
                  %445 = sbr.rel (%p443) target = $region54
                $region51: #{vehicle_detection_forward.4} parent=46 // loop_body
                  _
                $region52: #{vehicle_detection_forward.4} parent=46 // loop_footer
                  %s446 = sadd.s32 1, %s442
                $region53: #{vehicle_detection_forward.4} parent=46 // loop_footer_branch
                  %441 = sbr.rel target = $region49
                $region54: #{vehicle_detection_forward.4} parent=46 // loop_exit
                  _
                loop: start=0, step=1, limit=1
                $region55: #{vehicle_detection_forward.4} parent=46 // loop_pre_header
                  _
                $region56: #{vehicle_detection_forward.4} parent=46 // loop_header
                  %s451 = sphi 0, %s455
                  %p452 = scmp.ge.s32.totalorder %s451, 1
                  %s456 = sphi %s167, %s167
                  %s457 = sphi %s165, %s165
                $region57: #{vehicle_detection_forward.4} parent=46 // loop_header_branch
                  %454 = sbr.rel (%p452) target = $region61
                $region58: #{vehicle_detection_forward.4} parent=46 // loop_body
                  %v458 = vld [vmem:[%s456] sm:$0xf]
                  %459 = vst [vmem:[%s457] sm:$0xf] %v458
                  %v460 = vld [vmem:[%s456 + $0x8] sm:$0xf]
                  %461 = vst [vmem:[%s457 + $0x4] sm:$0xf] %v460
                  %v462 = vld [vmem:[%s456 + $0x10] sm:$0xf]
                  %463 = vst [vmem:[%s457 + $0x8] sm:$0xf] %v462
                  %v464 = vld [vmem:[%s456 + $0x18] sm:$0xf]
                  %465 = vst [vmem:[%s457 + $0xc] sm:$0xf] %v464
                  %v466 = vld [vmem:[%s456 + $0x20] sm:$0xf]
                  %467 = vst [vmem:[%s457 + $0x10] sm:$0xf] %v466
                  %v468 = vld [vmem:[%s456 + $0x28] sm:$0xf]
                  %469 = vst [vmem:[%s457 + $0x14] sm:$0xf] %v468
                  %v470 = vld [vmem:[%s456 + $0x30] sm:$0xf]
                  %471 = vst [vmem:[%s457 + $0x18] sm:$0xf] %v470
                  %v472 = vld [vmem:[%s456 + $0x38] sm:$0xf]
                  %473 = vst [vmem:[%s457 + $0x1c] sm:$0xf] %v472
                  %v474 = vld [vmem:[%s456 + $0x40] sm:$0xf]
                  %475 = vst [vmem:[%s457 + $0x20] sm:$0xf] %v474
                  %v476 = vld [vmem:[%s456 + $0x48] sm:$0xf]
                  %477 = vst [vmem:[%s457 + $0x24] sm:$0xf] %v476
                  %v478 = vld [vmem:[%s456 + $0x50] sm:$0xf]
                  %479 = vst [vmem:[%s457 + $0x28] sm:$0xf] %v478
                  %v480 = vld [vmem:[%s456 + $0x58] sm:$0xf]
                  %481 = vst [vmem:[%s457 + $0x2c] sm:$0xf] %v480
                  %v482 = vld [vmem:[%s456 + $0x60] sm:$0xf]
                  %483 = vst [vmem:[%s457 + $0x30] sm:$0xf] %v482
                  %v484 = vld [vmem:[%s456 + $0x68] sm:$0xf]
                  %485 = vst [vmem:[%s457 + $0x34] sm:$0xf] %v484
                  %v486 = vld [vmem:[%s456 + $0x70] sm:$0xf]
                  %487 = vst [vmem:[%s457 + $0x38] sm:$0xf] %v486
                  %v488 = vld [vmem:[%s456 + $0x78] sm:$0xf]
                  %489 = vst [vmem:[%s457 + $0x3c] sm:$0xf] %v488
                  %v490 = vld [vmem:[%s456 + $0x80] sm:$0xf]
                  %491 = vst [vmem:[%s457 + $0x40] sm:$0xf] %v490
                  %v492 = vld [vmem:[%s456 + $0x88] sm:$0xf]
                  %493 = vst [vmem:[%s457 + $0x44] sm:$0xf] %v492
                  %v494 = vld [vmem:[%s456 + $0x90] sm:$0xf]
                  %495 = vst [vmem:[%s457 + $0x48] sm:$0xf] %v494
                  %v496 = vld [vmem:[%s456 + $0x98] sm:$0xf]
                  %497 = vst [vmem:[%s457 + $0x4c] sm:$0xf] %v496
                  %v498 = vld [vmem:[%s456 + $0xa0] sm:$0xf]
                  %499 = vst [vmem:[%s457 + $0x50] sm:$0xf] %v498
                  %v500 = vld [vmem:[%s456 + $0xa8] sm:$0xf]
                  %501 = vst [vmem:[%s457 + $0x54] sm:$0xf] %v500
                  %v502 = vld [vmem:[%s456 + $0xb0] sm:$0xf]
                  %503 = vst [vmem:[%s457 + $0x58] sm:$0xf] %v502
                  %v504 = vld [vmem:[%s456 + $0xb8] sm:$0xf]
                  %505 = vst [vmem:[%s457 + $0x5c] sm:$0xf] %v504
                  %v506 = vld [vmem:[%s456 + $0xc0] sm:$0xf]
                  %507 = vst [vmem:[%s457 + $0x60] sm:$0xf] %v506
                  %v508 = vld [vmem:[%s456 + $0xc8] sm:$0xf]
                  %509 = vst [vmem:[%s457 + $0x64] sm:$0xf] %v508
                  %v510 = vld [vmem:[%s456 + $0xd0] sm:$0xf]
                  %511 = vst [vmem:[%s457 + $0x68] sm:$0xf] %v510
                  %v512 = vld [vmem:[%s456 + $0xd8] sm:$0xf]
                  %513 = vst [vmem:[%s457 + $0x6c] sm:$0xf] %v512
                  %v514 = vld [vmem:[%s456 + $0xe0] sm:$0xf]
                  %515 = vst [vmem:[%s457 + $0x70] sm:$0xf] %v514
                  %v516 = vld [vmem:[%s456 + $0xe8] sm:$0xf]
                  %517 = vst [vmem:[%s457 + $0x74] sm:$0xf] %v516
                  %v518 = vld [vmem:[%s456 + $0xf0] sm:$0xf]
                  %519 = vst [vmem:[%s457 + $0x78] sm:$0xf] %v518
                  %v520 = vld [vmem:[%s456 + $0xf8] sm:$0xf]
                  %521 = vst [vmem:[%s457 + $0x7c] sm:$0xf] %v520
                  %v522 = vld [vmem:[%s456 + $0x100] sm:$0xf]
                  %523 = vst [vmem:[%s457 + $0x80] sm:$0xf] %v522
                  %v524 = vld [vmem:[%s456 + $0x108] sm:$0xf]
                  %525 = vst [vmem:[%s457 + $0x84] sm:$0xf] %v524
                  %v526 = vld [vmem:[%s456 + $0x110] sm:$0xf]
                  %527 = vst [vmem:[%s457 + $0x88] sm:$0xf] %v526
                  %v528 = vld [vmem:[%s456 + $0x118] sm:$0xf]
                  %529 = vst [vmem:[%s457 + $0x8c] sm:$0xf] %v528
                  %v530 = vld [vmem:[%s456 + $0x120] sm:$0xf]
                  %531 = vst [vmem:[%s457 + $0x90] sm:$0xf] %v530
                  %v532 = vld [vmem:[%s456 + $0x128] sm:$0xf]
                  %533 = vst [vmem:[%s457 + $0x94] sm:$0xf] %v532
                  %v534 = vld [vmem:[%s456 + $0x130] sm:$0xf]
                  %535 = vst [vmem:[%s457 + $0x98] sm:$0xf] %v534
                  %v536 = vld [vmem:[%s456 + $0x138] sm:$0xf]
                  %537 = vst [vmem:[%s457 + $0x9c] sm:$0xf] %v536
                  %v538 = vld [vmem:[%s456 + $0x140] sm:$0xf]
                  %539 = vst [vmem:[%s457 + $0xa0] sm:$0xf] %v538
                  %v540 = vld [vmem:[%s456 + $0x148] sm:$0xf]
                  %541 = vst [vmem:[%s457 + $0xa4] sm:$0xf] %v540
                  %v542 = vld [vmem:[%s456 + $0x150] sm:$0xf]
                  %543 = vst [vmem:[%s457 + $0xa8] sm:$0xf] %v542
                  %v544 = vld [vmem:[%s456 + $0x158] sm:$0xf]
                  %545 = vst [vmem:[%s457 + $0xac] sm:$0xf] %v544
                  %v546 = vld [vmem:[%s456 + $0x160] sm:$0xf]
                  %547 = vst [vmem:[%s457 + $0xb0] sm:$0xf] %v546
                  %v548 = vld [vmem:[%s456 + $0x168] sm:$0xf]
                  %549 = vst [vmem:[%s457 + $0xb4] sm:$0xf] %v548
                  %v550 = vld [vmem:[%s456 + $0x170] sm:$0xf]
                  %551 = vst [vmem:[%s457 + $0xb8] sm:$0xf] %v550
                  %v552 = vld [vmem:[%s456 + $0x178] sm:$0xf]
                  %553 = vst [vmem:[%s457 + $0xbc] sm:$0xf] %v552
                  %v554 = vld [vmem:[%s456 + $0x180] sm:$0xf]
                  %555 = vst [vmem:[%s457 + $0xc0] sm:$0xf] %v554
                  %v556 = vld [vmem:[%s456 + $0x188] sm:$0xf]
                  %557 = vst [vmem:[%s457 + $0xc4] sm:$0xf] %v556
                  %v558 = vld [vmem:[%s456 + $0x190] sm:$0xf]
                  %559 = vst [vmem:[%s457 + $0xc8] sm:$0xf] %v558
                  %v560 = vld [vmem:[%s456 + $0x198] sm:$0xf]
                  %561 = vst [vmem:[%s457 + $0xcc] sm:$0xf] %v560
                  %v562 = vld [vmem:[%s456 + $0x1a0] sm:$0xf]
                  %563 = vst [vmem:[%s457 + $0xd0] sm:$0xf] %v562
                  %v564 = vld [vmem:[%s456 + $0x1a8] sm:$0xf]
                  %565 = vst [vmem:[%s457 + $0xd4] sm:$0xf] %v564
                  %v566 = vld [vmem:[%s456 + $0x1b0] sm:$0xf]
                  %567 = vst [vmem:[%s457 + $0xd8] sm:$0xf] %v566
                  %v568 = vld [vmem:[%s456 + $0x1b8] sm:$0xf]
                  %569 = vst [vmem:[%s457 + $0xdc] sm:$0xf] %v568
                  %v570 = vld [vmem:[%s456 + $0x1c0] sm:$0xf]
                  %571 = vst [vmem:[%s457 + $0xe0] sm:$0xf] %v570
                  %v572 = vld [vmem:[%s456 + $0x1c8] sm:$0xf]
                  %573 = vst [vmem:[%s457 + $0xe4] sm:$0xf] %v572
                  %v574 = vld [vmem:[%s456 + $0x1d0] sm:$0xf]
                  %575 = vst [vmem:[%s457 + $0xe8] sm:$0xf] %v574
                  %v576 = vld [vmem:[%s456 + $0x1d8] sm:$0xf]
                  %577 = vst [vmem:[%s457 + $0xec] sm:$0xf] %v576
                  %v578 = vld [vmem:[%s456 + $0x1e0] sm:$0xf]
                  %579 = vst [vmem:[%s457 + $0xf0] sm:$0xf] %v578
                  %v580 = vld [vmem:[%s456 + $0x1e8] sm:$0xf]
                  %581 = vst [vmem:[%s457 + $0xf4] sm:$0xf] %v580
                  %v582 = vld [vmem:[%s456 + $0x1f0] sm:$0xf]
                  %583 = vst [vmem:[%s457 + $0xf8] sm:$0xf] %v582
                  %v584 = vld [vmem:[%s456 + $0x1f8] sm:$0xf]
                  %585 = vst [vmem:[%s457 + $0xfc] sm:$0xf] %v584
                  %v586 = vld [vmem:[%s456 + $0x200] sm:$0xf]
                  %587 = vst [vmem:[%s457 + $0x100] sm:$0xf] %v586
                  %v588 = vld [vmem:[%s456 + $0x208] sm:$0xf]
                  %589 = vst [vmem:[%s457 + $0x104] sm:$0xf] %v588
                  %v590 = vld [vmem:[%s456 + $0x210] sm:$0xf]
                  %591 = vst [vmem:[%s457 + $0x108] sm:$0xf] %v590
                  %v592 = vld [vmem:[%s456 + $0x218] sm:$0xf]
                  %593 = vst [vmem:[%s457 + $0x10c] sm:$0xf] %v592
                  %v594 = vld [vmem:[%s456 + $0x220] sm:$0xf]
                  %595 = vst [vmem:[%s457 + $0x110] sm:$0xf] %v594
                  %v596 = vld [vmem:[%s456 + $0x228] sm:$0xf]
                  %597 = vst [vmem:[%s457 + $0x114] sm:$0xf] %v596
                  %v598 = vld [vmem:[%s456 + $0x230] sm:$0xf]
                  %599 = vst [vmem:[%s457 + $0x118] sm:$0xf] %v598
                  %v600 = vld [vmem:[%s456 + $0x238] sm:$0xf]
                  %601 = vst [vmem:[%s457 + $0x11c] sm:$0xf] %v600
                  %v602 = vld [vmem:[%s456 + $0x240] sm:$0xf]
                  %603 = vst [vmem:[%s457 + $0x120] sm:$0xf] %v602
                  %v604 = vld [vmem:[%s456 + $0x248] sm:$0xf]
                  %605 = vst [vmem:[%s457 + $0x124] sm:$0xf] %v604
                  %v606 = vld [vmem:[%s456 + $0x250] sm:$0xf]
                  %607 = vst [vmem:[%s457 + $0x128] sm:$0xf] %v606
                  %v608 = vld [vmem:[%s456 + $0x258] sm:$0xf]
                  %609 = vst [vmem:[%s457 + $0x12c] sm:$0xf] %v608
                  %v610 = vld [vmem:[%s456 + $0x260] sm:$0xf]
                  %611 = vst [vmem:[%s457 + $0x130] sm:$0xf] %v610
                  %v612 = vld [vmem:[%s456 + $0x268] sm:$0xf]
                  %613 = vst [vmem:[%s457 + $0x134] sm:$0xf] %v612
                  %v614 = vld [vmem:[%s456 + $0x270] sm:$0xf]
                  %615 = vst [vmem:[%s457 + $0x138] sm:$0xf] %v614
                  %v616 = vld [vmem:[%s456 + $0x278] sm:$0xf]
                  %617 = vst [vmem:[%s457 + $0x13c] sm:$0xf] %v616
                  %v618 = vld [vmem:[%s456 + $0x280] sm:$0xf]
                  %619 = vst [vmem:[%s457 + $0x140] sm:$0xf] %v618
                  %v620 = vld [vmem:[%s456 + $0x288] sm:$0xf]
                  %621 = vst [vmem:[%s457 + $0x144] sm:$0xf] %v620
                  %v622 = vld [vmem:[%s456 + $0x290] sm:$0xf]
                  %623 = vst [vmem:[%s457 + $0x148] sm:$0xf] %v622
                  %v624 = vld [vmem:[%s456 + $0x298] sm:$0xf]
                  %625 = vst [vmem:[%s457 + $0x14c] sm:$0xf] %v624
                  %v626 = vld [vmem:[%s456 + $0x2a0] sm:$0xf]
                  %627 = vst [vmem:[%s457 + $0x150] sm:$0xf] %v626
                  %v628 = vld [vmem:[%s456 + $0x2a8] sm:$0xf]
                  %629 = vst [vmem:[%s457 + $0x154] sm:$0xf] %v628
                  %v630 = vld [vmem:[%s456 + $0x2b0] sm:$0xf]
                  %631 = vst [vmem:[%s457 + $0x158] sm:$0xf] %v630
                  %v632 = vld [vmem:[%s456 + $0x2b8] sm:$0xf]
                  %633 = vst [vmem:[%s457 + $0x15c] sm:$0xf] %v632
                  %v634 = vld [vmem:[%s456 + $0x2c0] sm:$0xf]
                  %635 = vst [vmem:[%s457 + $0x160] sm:$0xf] %v634
                  %v636 = vld [vmem:[%s456 + $0x2c8] sm:$0xf]
                  %637 = vst [vmem:[%s457 + $0x164] sm:$0xf] %v636
                  %v638 = vld [vmem:[%s456 + $0x2d0] sm:$0xf]
                  %639 = vst [vmem:[%s457 + $0x168] sm:$0xf] %v638
                  %v640 = vld [vmem:[%s456 + $0x2d8] sm:$0xf]
                  %641 = vst [vmem:[%s457 + $0x16c] sm:$0xf] %v640
                  %v642 = vld [vmem:[%s456 + $0x2e0] sm:$0xf]
                  %643 = vst [vmem:[%s457 + $0x170] sm:$0xf] %v642
                  %v644 = vld [vmem:[%s456 + $0x2e8] sm:$0xf]
                  %645 = vst [vmem:[%s457 + $0x174] sm:$0xf] %v644
                  %v646 = vld [vmem:[%s456 + $0x2f0] sm:$0xf]
                  %647 = vst [vmem:[%s457 + $0x178] sm:$0xf] %v646
                  %v648 = vld [vmem:[%s456 + $0x2f8] sm:$0xf]
                  %649 = vst [vmem:[%s457 + $0x17c] sm:$0xf] %v648
                  %v650 = vld [vmem:[%s456 + $0x300] sm:$0xf]
                  %651 = vst [vmem:[%s457 + $0x180] sm:$0xf] %v650
                  %v652 = vld [vmem:[%s456 + $0x308] sm:$0xf]
                  %653 = vst [vmem:[%s457 + $0x184] sm:$0xf] %v652
                  %v654 = vld [vmem:[%s456 + $0x310] sm:$0xf]
                  %655 = vst [vmem:[%s457 + $0x188] sm:$0xf] %v654
                  %v656 = vld [vmem:[%s456 + $0x318] sm:$0xf]
                  %657 = vst [vmem:[%s457 + $0x18c] sm:$0xf] %v656
                  %v658 = vld [vmem:[%s456 + $0x320] sm:$0xf]
                  %659 = vst [vmem:[%s457 + $0x190] sm:$0xf] %v658
                  %v660 = vld [vmem:[%s456 + $0x328] sm:$0xf]
                  %661 = vst [vmem:[%s457 + $0x194] sm:$0xf] %v660
                  %v662 = vld [vmem:[%s456 + $0x330] sm:$0xf]
                  %663 = vst [vmem:[%s457 + $0x198] sm:$0xf] %v662
                  %v664 = vld [vmem:[%s456 + $0x338] sm:$0xf]
                  %665 = vst [vmem:[%s457 + $0x19c] sm:$0xf] %v664
                  %v666 = vld [vmem:[%s456 + $0x340] sm:$0xf]
                  %667 = vst [vmem:[%s457 + $0x1a0] sm:$0xf] %v666
                  %v668 = vld [vmem:[%s456 + $0x348] sm:$0xf]
                  %669 = vst [vmem:[%s457 + $0x1a4] sm:$0xf] %v668
                  %v670 = vld [vmem:[%s456 + $0x350] sm:$0xf]
                  %671 = vst [vmem:[%s457 + $0x1a8] sm:$0xf] %v670
                  %v672 = vld [vmem:[%s456 + $0x358] sm:$0xf]
                  %673 = vst [vmem:[%s457 + $0x1ac] sm:$0xf] %v672
                  %v674 = vld [vmem:[%s456 + $0x360] sm:$0xf]
                  %675 = vst [vmem:[%s457 + $0x1b0] sm:$0xf] %v674
                  %v676 = vld [vmem:[%s456 + $0x368] sm:$0xf]
                  %677 = vst [vmem:[%s457 + $0x1b4] sm:$0xf] %v676
                  %v678 = vld [vmem:[%s456 + $0x370] sm:$0xf]
                  %679 = vst [vmem:[%s457 + $0x1b8] sm:$0xf] %v678
                  %v680 = vld [vmem:[%s456 + $0x378] sm:$0xf]
                  %681 = vst [vmem:[%s457 + $0x1bc] sm:$0xf] %v680
                  %v682 = vld [vmem:[%s456 + $0x380] sm:$0xf]
                  %683 = vst [vmem:[%s457 + $0x1c0] sm:$0xf] %v682
                  %v684 = vld [vmem:[%s456 + $0x388] sm:$0xf]
                  %685 = vst [vmem:[%s457 + $0x1c4] sm:$0xf] %v684
                  %v686 = vld [vmem:[%s456 + $0x390] sm:$0xf]
                  %687 = vst [vmem:[%s457 + $0x1c8] sm:$0xf] %v686
                  %v688 = vld [vmem:[%s456 + $0x398] sm:$0xf]
                  %689 = vst [vmem:[%s457 + $0x1cc] sm:$0xf] %v688
                  %v690 = vld [vmem:[%s456 + $0x3a0] sm:$0xf]
                  %691 = vst [vmem:[%s457 + $0x1d0] sm:$0xf] %v690
                  %v692 = vld [vmem:[%s456 + $0x3a8] sm:$0xf]
                  %693 = vst [vmem:[%s457 + $0x1d4] sm:$0xf] %v692
                  %v694 = vld [vmem:[%s456 + $0x3b0] sm:$0xf]
                  %695 = vst [vmem:[%s457 + $0x1d8] sm:$0xf] %v694
                  %v696 = vld [vmem:[%s456 + $0x3b8] sm:$0xf]
                  %697 = vst [vmem:[%s457 + $0x1dc] sm:$0xf] %v696
                  %v698 = vld [vmem:[%s456 + $0x3c0] sm:$0xf]
                  %699 = vst [vmem:[%s457 + $0x1e0] sm:$0xf] %v698
                  %v700 = vld [vmem:[%s456 + $0x3c8] sm:$0xf]
                  %701 = vst [vmem:[%s457 + $0x1e4] sm:$0xf] %v700
                  %v702 = vld [vmem:[%s456 + $0x3d0] sm:$0xf]
                  %703 = vst [vmem:[%s457 + $0x1e8] sm:$0xf] %v702
                  %v704 = vld [vmem:[%s456 + $0x3d8] sm:$0xf]
                  %705 = vst [vmem:[%s457 + $0x1ec] sm:$0xf] %v704
                  %v706 = vld [vmem:[%s456 + $0x3e0] sm:$0xf]
                  %707 = vst [vmem:[%s457 + $0x1f0] sm:$0xf] %v706
                  %v708 = vld [vmem:[%s456 + $0x3e8] sm:$0xf]
                  %709 = vst [vmem:[%s457 + $0x1f4] sm:$0xf] %v708
                  %v710 = vld [vmem:[%s456 + $0x3f0] sm:$0xf]
                  %711 = vst [vmem:[%s457 + $0x1f8] sm:$0xf] %v710
                  %v712 = vld [vmem:[%s456 + $0x3f8] sm:$0xf]
                  %713 = vst [vmem:[%s457 + $0x1fc] sm:$0xf] %v712
                $region59: #{vehicle_detection_forward.4} parent=46 // loop_footer
                  %s455 = sadd.s32 1, %s451
                $region60: #{vehicle_detection_forward.4} parent=46 // loop_footer_branch
                  %450 = sbr.rel target = $region56
                $region61: #{vehicle_detection_forward.4} parent=46 // loop_exit
                  _
              $region47: #{vehicle_detection_forward.4} parent=31 // pred_fallthru
                _
            $region32: #{vehicle_detection_forward.4} parent=27 // pred_fallthru
              _
            // Predicated region
            $region33: #{vehicle_detection_forward.4} parent=27 // pred_check
              _
            $region34: #{vehicle_detection_forward.4} parent=27 // pred_check_branch
              %173 = sbr.rel (0) target = $region36
            $region35: #{vehicle_detection_forward.4} parent=27 // pred_region
              loop: start=0, step=1, limit=1
              $region37: #{vehicle_detection_forward.4} parent=35 // loop_pre_header
                _
              $region38: #{vehicle_detection_forward.4} parent=35 // loop_header
                %s176 = sphi 0, %s180
                %p177 = scmp.ge.s32.totalorder %s176, 1
                %s181 = sphi %s167, %s167
                %s182 = sphi %s165, %s165
              $region39: #{vehicle_detection_forward.4} parent=35 // loop_header_branch
                %179 = sbr.rel (%p177) target = $region43
              $region40: #{vehicle_detection_forward.4} parent=35 // loop_body
                %v183 = vld [vmem:[%s181] sm:$0xf]
                %184 = vst [vmem:[%s182] sm:$0xf] %v183
                %v185 = vld [vmem:[%s181 + $0x8] sm:$0xf]
                %186 = vst [vmem:[%s182 + $0x4] sm:$0xf] %v185
                %v187 = vld [vmem:[%s181 + $0x10] sm:$0xf]
                %188 = vst [vmem:[%s182 + $0x8] sm:$0xf] %v187
                %v189 = vld [vmem:[%s181 + $0x18] sm:$0xf]
                %190 = vst [vmem:[%s182 + $0xc] sm:$0xf] %v189
                %v191 = vld [vmem:[%s181 + $0x20] sm:$0xf]
                %192 = vst [vmem:[%s182 + $0x10] sm:$0xf] %v191
                %v193 = vld [vmem:[%s181 + $0x28] sm:$0xf]
                %194 = vst [vmem:[%s182 + $0x14] sm:$0xf] %v193
                %v195 = vld [vmem:[%s181 + $0x30] sm:$0xf]
                %196 = vst [vmem:[%s182 + $0x18] sm:$0xf] %v195
                %v197 = vld [vmem:[%s181 + $0x38] sm:$0xf]
                %198 = vst [vmem:[%s182 + $0x1c] sm:$0xf] %v197
                %v199 = vld [vmem:[%s181 + $0x40] sm:$0xf]
                %200 = vst [vmem:[%s182 + $0x20] sm:$0xf] %v199
                %v201 = vld [vmem:[%s181 + $0x48] sm:$0xf]
                %202 = vst [vmem:[%s182 + $0x24] sm:$0xf] %v201
                %v203 = vld [vmem:[%s181 + $0x50] sm:$0xf]
                %204 = vst [vmem:[%s182 + $0x28] sm:$0xf] %v203
                %v205 = vld [vmem:[%s181 + $0x58] sm:$0xf]
                %206 = vst [vmem:[%s182 + $0x2c] sm:$0xf] %v205
                %v207 = vld [vmem:[%s181 + $0x60] sm:$0xf]
                %208 = vst [vmem:[%s182 + $0x30] sm:$0xf] %v207
                %v209 = vld [vmem:[%s181 + $0x68] sm:$0xf]
                %210 = vst [vmem:[%s182 + $0x34] sm:$0xf] %v209
                %v211 = vld [vmem:[%s181 + $0x70] sm:$0xf]
                %212 = vst [vmem:[%s182 + $0x38] sm:$0xf] %v211
                %v213 = vld [vmem:[%s181 + $0x78] sm:$0xf]
                %214 = vst [vmem:[%s182 + $0x3c] sm:$0xf] %v213
                %v215 = vld [vmem:[%s181 + $0x80] sm:$0xf]
                %216 = vst [vmem:[%s182 + $0x40] sm:$0xf] %v215
                %v217 = vld [vmem:[%s181 + $0x88] sm:$0xf]
                %218 = vst [vmem:[%s182 + $0x44] sm:$0xf] %v217
                %v219 = vld [vmem:[%s181 + $0x90] sm:$0xf]
                %220 = vst [vmem:[%s182 + $0x48] sm:$0xf] %v219
                %v221 = vld [vmem:[%s181 + $0x98] sm:$0xf]
                %222 = vst [vmem:[%s182 + $0x4c] sm:$0xf] %v221
                %v223 = vld [vmem:[%s181 + $0xa0] sm:$0xf]
                %224 = vst [vmem:[%s182 + $0x50] sm:$0xf] %v223
                %v225 = vld [vmem:[%s181 + $0xa8] sm:$0xf]
                %226 = vst [vmem:[%s182 + $0x54] sm:$0xf] %v225
                %v227 = vld [vmem:[%s181 + $0xb0] sm:$0xf]
                %228 = vst [vmem:[%s182 + $0x58] sm:$0xf] %v227
                %v229 = vld [vmem:[%s181 + $0xb8] sm:$0xf]
                %230 = vst [vmem:[%s182 + $0x5c] sm:$0xf] %v229
                %v231 = vld [vmem:[%s181 + $0xc0] sm:$0xf]
                %232 = vst [vmem:[%s182 + $0x60] sm:$0xf] %v231
                %v233 = vld [vmem:[%s181 + $0xc8] sm:$0xf]
                %234 = vst [vmem:[%s182 + $0x64] sm:$0xf] %v233
                %v235 = vld [vmem:[%s181 + $0xd0] sm:$0xf]
                %236 = vst [vmem:[%s182 + $0x68] sm:$0xf] %v235
                %v237 = vld [vmem:[%s181 + $0xd8] sm:$0xf]
                %238 = vst [vmem:[%s182 + $0x6c] sm:$0xf] %v237
                %v239 = vld [vmem:[%s181 + $0xe0] sm:$0xf]
                %240 = vst [vmem:[%s182 + $0x70] sm:$0xf] %v239
                %v241 = vld [vmem:[%s181 + $0xe8] sm:$0xf]
                %242 = vst [vmem:[%s182 + $0x74] sm:$0xf] %v241
                %v243 = vld [vmem:[%s181 + $0xf0] sm:$0xf]
                %244 = vst [vmem:[%s182 + $0x78] sm:$0xf] %v243
                %v245 = vld [vmem:[%s181 + $0xf8] sm:$0xf]
                %246 = vst [vmem:[%s182 + $0x7c] sm:$0xf] %v245
                %v247 = vld [vmem:[%s181 + $0x100] sm:$0xf]
                %248 = vst [vmem:[%s182 + $0x80] sm:$0xf] %v247
                %v249 = vld [vmem:[%s181 + $0x108] sm:$0xf]
                %250 = vst [vmem:[%s182 + $0x84] sm:$0xf] %v249
                %v251 = vld [vmem:[%s181 + $0x110] sm:$0xf]
                %252 = vst [vmem:[%s182 + $0x88] sm:$0xf] %v251
                %v253 = vld [vmem:[%s181 + $0x118] sm:$0xf]
                %254 = vst [vmem:[%s182 + $0x8c] sm:$0xf] %v253
                %v255 = vld [vmem:[%s181 + $0x120] sm:$0xf]
                %256 = vst [vmem:[%s182 + $0x90] sm:$0xf] %v255
                %v257 = vld [vmem:[%s181 + $0x128] sm:$0xf]
                %258 = vst [vmem:[%s182 + $0x94] sm:$0xf] %v257
                %v259 = vld [vmem:[%s181 + $0x130] sm:$0xf]
                %260 = vst [vmem:[%s182 + $0x98] sm:$0xf] %v259
                %v261 = vld [vmem:[%s181 + $0x138] sm:$0xf]
                %262 = vst [vmem:[%s182 + $0x9c] sm:$0xf] %v261
                %v263 = vld [vmem:[%s181 + $0x140] sm:$0xf]
                %264 = vst [vmem:[%s182 + $0xa0] sm:$0xf] %v263
                %v265 = vld [vmem:[%s181 + $0x148] sm:$0xf]
                %266 = vst [vmem:[%s182 + $0xa4] sm:$0xf] %v265
                %v267 = vld [vmem:[%s181 + $0x150] sm:$0xf]
                %268 = vst [vmem:[%s182 + $0xa8] sm:$0xf] %v267
                %v269 = vld [vmem:[%s181 + $0x158] sm:$0xf]
                %270 = vst [vmem:[%s182 + $0xac] sm:$0xf] %v269
                %v271 = vld [vmem:[%s181 + $0x160] sm:$0xf]
                %272 = vst [vmem:[%s182 + $0xb0] sm:$0xf] %v271
                %v273 = vld [vmem:[%s181 + $0x168] sm:$0xf]
                %274 = vst [vmem:[%s182 + $0xb4] sm:$0xf] %v273
                %v275 = vld [vmem:[%s181 + $0x170] sm:$0xf]
                %276 = vst [vmem:[%s182 + $0xb8] sm:$0xf] %v275
                %v277 = vld [vmem:[%s181 + $0x178] sm:$0xf]
                %278 = vst [vmem:[%s182 + $0xbc] sm:$0xf] %v277
                %v279 = vld [vmem:[%s181 + $0x180] sm:$0xf]
                %280 = vst [vmem:[%s182 + $0xc0] sm:$0xf] %v279
                %v281 = vld [vmem:[%s181 + $0x188] sm:$0xf]
                %282 = vst [vmem:[%s182 + $0xc4] sm:$0xf] %v281
                %v283 = vld [vmem:[%s181 + $0x190] sm:$0xf]
                %284 = vst [vmem:[%s182 + $0xc8] sm:$0xf] %v283
                %v285 = vld [vmem:[%s181 + $0x198] sm:$0xf]
                %286 = vst [vmem:[%s182 + $0xcc] sm:$0xf] %v285
                %v287 = vld [vmem:[%s181 + $0x1a0] sm:$0xf]
                %288 = vst [vmem:[%s182 + $0xd0] sm:$0xf] %v287
                %v289 = vld [vmem:[%s181 + $0x1a8] sm:$0xf]
                %290 = vst [vmem:[%s182 + $0xd4] sm:$0xf] %v289
                %v291 = vld [vmem:[%s181 + $0x1b0] sm:$0xf]
                %292 = vst [vmem:[%s182 + $0xd8] sm:$0xf] %v291
                %v293 = vld [vmem:[%s181 + $0x1b8] sm:$0xf]
                %294 = vst [vmem:[%s182 + $0xdc] sm:$0xf] %v293
                %v295 = vld [vmem:[%s181 + $0x1c0] sm:$0xf]
                %296 = vst [vmem:[%s182 + $0xe0] sm:$0xf] %v295
                %v297 = vld [vmem:[%s181 + $0x1c8] sm:$0xf]
                %298 = vst [vmem:[%s182 + $0xe4] sm:$0xf] %v297
                %v299 = vld [vmem:[%s181 + $0x1d0] sm:$0xf]
                %300 = vst [vmem:[%s182 + $0xe8] sm:$0xf] %v299
                %v301 = vld [vmem:[%s181 + $0x1d8] sm:$0xf]
                %302 = vst [vmem:[%s182 + $0xec] sm:$0xf] %v301
                %v303 = vld [vmem:[%s181 + $0x1e0] sm:$0xf]
                %304 = vst [vmem:[%s182 + $0xf0] sm:$0xf] %v303
                %v305 = vld [vmem:[%s181 + $0x1e8] sm:$0xf]
                %306 = vst [vmem:[%s182 + $0xf4] sm:$0xf] %v305
                %v307 = vld [vmem:[%s181 + $0x1f0] sm:$0xf]
                %308 = vst [vmem:[%s182 + $0xf8] sm:$0xf] %v307
                %v309 = vld [vmem:[%s181 + $0x1f8] sm:$0xf]
                %310 = vst [vmem:[%s182 + $0xfc] sm:$0xf] %v309
                %v311 = vld [vmem:[%s181 + $0x200] sm:$0xf]
                %312 = vst [vmem:[%s182 + $0x100] sm:$0xf] %v311
                %v313 = vld [vmem:[%s181 + $0x208] sm:$0xf]
                %314 = vst [vmem:[%s182 + $0x104] sm:$0xf] %v313
                %v315 = vld [vmem:[%s181 + $0x210] sm:$0xf]
                %316 = vst [vmem:[%s182 + $0x108] sm:$0xf] %v315
                %v317 = vld [vmem:[%s181 + $0x218] sm:$0xf]
                %318 = vst [vmem:[%s182 + $0x10c] sm:$0xf] %v317
                %v319 = vld [vmem:[%s181 + $0x220] sm:$0xf]
                %320 = vst [vmem:[%s182 + $0x110] sm:$0xf] %v319
                %v321 = vld [vmem:[%s181 + $0x228] sm:$0xf]
                %322 = vst [vmem:[%s182 + $0x114] sm:$0xf] %v321
                %v323 = vld [vmem:[%s181 + $0x230] sm:$0xf]
                %324 = vst [vmem:[%s182 + $0x118] sm:$0xf] %v323
                %v325 = vld [vmem:[%s181 + $0x238] sm:$0xf]
                %326 = vst [vmem:[%s182 + $0x11c] sm:$0xf] %v325
                %v327 = vld [vmem:[%s181 + $0x240] sm:$0xf]
                %328 = vst [vmem:[%s182 + $0x120] sm:$0xf] %v327
                %v329 = vld [vmem:[%s181 + $0x248] sm:$0xf]
                %330 = vst [vmem:[%s182 + $0x124] sm:$0xf] %v329
                %v331 = vld [vmem:[%s181 + $0x250] sm:$0xf]
                %332 = vst [vmem:[%s182 + $0x128] sm:$0xf] %v331
                %v333 = vld [vmem:[%s181 + $0x258] sm:$0xf]
                %334 = vst [vmem:[%s182 + $0x12c] sm:$0xf] %v333
                %v335 = vld [vmem:[%s181 + $0x260] sm:$0xf]
                %336 = vst [vmem:[%s182 + $0x130] sm:$0xf] %v335
                %v337 = vld [vmem:[%s181 + $0x268] sm:$0xf]
                %338 = vst [vmem:[%s182 + $0x134] sm:$0xf] %v337
                %v339 = vld [vmem:[%s181 + $0x270] sm:$0xf]
                %340 = vst [vmem:[%s182 + $0x138] sm:$0xf] %v339
                %v341 = vld [vmem:[%s181 + $0x278] sm:$0xf]
                %342 = vst [vmem:[%s182 + $0x13c] sm:$0xf] %v341
                %v343 = vld [vmem:[%s181 + $0x280] sm:$0xf]
                %344 = vst [vmem:[%s182 + $0x140] sm:$0xf] %v343
                %v345 = vld [vmem:[%s181 + $0x288] sm:$0xf]
                %346 = vst [vmem:[%s182 + $0x144] sm:$0xf] %v345
                %v347 = vld [vmem:[%s181 + $0x290] sm:$0xf]
                %348 = vst [vmem:[%s182 + $0x148] sm:$0xf] %v347
                %v349 = vld [vmem:[%s181 + $0x298] sm:$0xf]
                %350 = vst [vmem:[%s182 + $0x14c] sm:$0xf] %v349
                %v351 = vld [vmem:[%s181 + $0x2a0] sm:$0xf]
                %352 = vst [vmem:[%s182 + $0x150] sm:$0xf] %v351
                %v353 = vld [vmem:[%s181 + $0x2a8] sm:$0xf]
                %354 = vst [vmem:[%s182 + $0x154] sm:$0xf] %v353
                %v355 = vld [vmem:[%s181 + $0x2b0] sm:$0xf]
                %356 = vst [vmem:[%s182 + $0x158] sm:$0xf] %v355
                %v357 = vld [vmem:[%s181 + $0x2b8] sm:$0xf]
                %358 = vst [vmem:[%s182 + $0x15c] sm:$0xf] %v357
                %v359 = vld [vmem:[%s181 + $0x2c0] sm:$0xf]
                %360 = vst [vmem:[%s182 + $0x160] sm:$0xf] %v359
                %v361 = vld [vmem:[%s181 + $0x2c8] sm:$0xf]
                %362 = vst [vmem:[%s182 + $0x164] sm:$0xf] %v361
                %v363 = vld [vmem:[%s181 + $0x2d0] sm:$0xf]
                %364 = vst [vmem:[%s182 + $0x168] sm:$0xf] %v363
                %v365 = vld [vmem:[%s181 + $0x2d8] sm:$0xf]
                %366 = vst [vmem:[%s182 + $0x16c] sm:$0xf] %v365
                %v367 = vld [vmem:[%s181 + $0x2e0] sm:$0xf]
                %368 = vst [vmem:[%s182 + $0x170] sm:$0xf] %v367
                %v369 = vld [vmem:[%s181 + $0x2e8] sm:$0xf]
                %370 = vst [vmem:[%s182 + $0x174] sm:$0xf] %v369
                %v371 = vld [vmem:[%s181 + $0x2f0] sm:$0xf]
                %372 = vst [vmem:[%s182 + $0x178] sm:$0xf] %v371
                %v373 = vld [vmem:[%s181 + $0x2f8] sm:$0xf]
                %374 = vst [vmem:[%s182 + $0x17c] sm:$0xf] %v373
                %v375 = vld [vmem:[%s181 + $0x300] sm:$0xf]
                %376 = vst [vmem:[%s182 + $0x180] sm:$0xf] %v375
                %v377 = vld [vmem:[%s181 + $0x308] sm:$0xf]
                %378 = vst [vmem:[%s182 + $0x184] sm:$0xf] %v377
                %v379 = vld [vmem:[%s181 + $0x310] sm:$0xf]
                %380 = vst [vmem:[%s182 + $0x188] sm:$0xf] %v379
                %v381 = vld [vmem:[%s181 + $0x318] sm:$0xf]
                %382 = vst [vmem:[%s182 + $0x18c] sm:$0xf] %v381
                %v383 = vld [vmem:[%s181 + $0x320] sm:$0xf]
                %384 = vst [vmem:[%s182 + $0x190] sm:$0xf] %v383
                %v385 = vld [vmem:[%s181 + $0x328] sm:$0xf]
                %386 = vst [vmem:[%s182 + $0x194] sm:$0xf] %v385
                %v387 = vld [vmem:[%s181 + $0x330] sm:$0xf]
                %388 = vst [vmem:[%s182 + $0x198] sm:$0xf] %v387
                %v389 = vld [vmem:[%s181 + $0x338] sm:$0xf]
                %390 = vst [vmem:[%s182 + $0x19c] sm:$0xf] %v389
                %v391 = vld [vmem:[%s181 + $0x340] sm:$0xf]
                %392 = vst [vmem:[%s182 + $0x1a0] sm:$0xf] %v391
                %v393 = vld [vmem:[%s181 + $0x348] sm:$0xf]
                %394 = vst [vmem:[%s182 + $0x1a4] sm:$0xf] %v393
                %v395 = vld [vmem:[%s181 + $0x350] sm:$0xf]
                %396 = vst [vmem:[%s182 + $0x1a8] sm:$0xf] %v395
                %v397 = vld [vmem:[%s181 + $0x358] sm:$0xf]
                %398 = vst [vmem:[%s182 + $0x1ac] sm:$0xf] %v397
                %v399 = vld [vmem:[%s181 + $0x360] sm:$0xf]
                %400 = vst [vmem:[%s182 + $0x1b0] sm:$0xf] %v399
                %v401 = vld [vmem:[%s181 + $0x368] sm:$0xf]
                %402 = vst [vmem:[%s182 + $0x1b4] sm:$0xf] %v401
                %v403 = vld [vmem:[%s181 + $0x370] sm:$0xf]
                %404 = vst [vmem:[%s182 + $0x1b8] sm:$0xf] %v403
                %v405 = vld [vmem:[%s181 + $0x378] sm:$0xf]
                %406 = vst [vmem:[%s182 + $0x1bc] sm:$0xf] %v405
                %v407 = vld [vmem:[%s181 + $0x380] sm:$0xf]
                %408 = vst [vmem:[%s182 + $0x1c0] sm:$0xf] %v407
                %v409 = vld [vmem:[%s181 + $0x388] sm:$0xf]
                %410 = vst [vmem:[%s182 + $0x1c4] sm:$0xf] %v409
                %v411 = vld [vmem:[%s181 + $0x390] sm:$0xf]
                %412 = vst [vmem:[%s182 + $0x1c8] sm:$0xf] %v411
                %v413 = vld [vmem:[%s181 + $0x398] sm:$0xf]
                %414 = vst [vmem:[%s182 + $0x1cc] sm:$0xf] %v413
                %v415 = vld [vmem:[%s181 + $0x3a0] sm:$0xf]
                %416 = vst [vmem:[%s182 + $0x1d0] sm:$0xf] %v415
                %v417 = vld [vmem:[%s181 + $0x3a8] sm:$0xf]
                %418 = vst [vmem:[%s182 + $0x1d4] sm:$0xf] %v417
                %v419 = vld [vmem:[%s181 + $0x3b0] sm:$0xf]
                %420 = vst [vmem:[%s182 + $0x1d8] sm:$0xf] %v419
                %v421 = vld [vmem:[%s181 + $0x3b8] sm:$0xf]
                %422 = vst [vmem:[%s182 + $0x1dc] sm:$0xf] %v421
                %v423 = vld [vmem:[%s181 + $0x3c0] sm:$0xf]
                %424 = vst [vmem:[%s182 + $0x1e0] sm:$0xf] %v423
                %v425 = vld [vmem:[%s181 + $0x3c8] sm:$0xf]
                %426 = vst [vmem:[%s182 + $0x1e4] sm:$0xf] %v425
                %v427 = vld [vmem:[%s181 + $0x3d0] sm:$0xf]
                %428 = vst [vmem:[%s182 + $0x1e8] sm:$0xf] %v427
                %v429 = vld [vmem:[%s181 + $0x3d8] sm:$0xf]
                %430 = vst [vmem:[%s182 + $0x1ec] sm:$0xf] %v429
                %v431 = vld [vmem:[%s181 + $0x3e0] sm:$0xf]
                %432 = vst [vmem:[%s182 + $0x1f0] sm:$0xf] %v431
                %v433 = vld [vmem:[%s181 + $0x3e8] sm:$0xf]
                %434 = vst [vmem:[%s182 + $0x1f4] sm:$0xf] %v433
                %v435 = vld [vmem:[%s181 + $0x3f0] sm:$0xf]
                %436 = vst [vmem:[%s182 + $0x1f8] sm:$0xf] %v435
                %v437 = vld [vmem:[%s181 + $0x3f8] sm:$0xf]
                %438 = vst [vmem:[%s182 + $0x1fc] sm:$0xf] %v437
              $region41: #{vehicle_detection_forward.4} parent=35 // loop_footer
                %s180 = sadd.s32 1, %s176
              $region42: #{vehicle_detection_forward.4} parent=35 // loop_footer_branch
                %175 = sbr.rel target = $region38
              $region43: #{vehicle_detection_forward.4} parent=35 // loop_exit
                _
            $region36: #{vehicle_detection_forward.4} parent=27 // pred_fallthru
              _
          $region28: #{vehicle_detection_forward.4} parent=23 // pred_fallthru
            _
          %714 = vnop
        $region24: #{vehicle_detection_forward.4} parent=19 // pred_fallthru
          _
        // Predicated region
        $region62: #{vehicle_detection_forward.4} parent=19 // pred_check
          %p715 = pneg %p96
        $region63: #{vehicle_detection_forward.4} parent=19 // pred_check_branch
          %717 = sbr.rel (%p715) target = $region65
        $region64: #{vehicle_detection_forward.4} parent=19 // pred_region
          %p718 = scmp.lt.s32.totalorder %s20, 1
          %s719 = scalar_select %p718, %s20, 1
          %s720 = scalar_lea.vmem %s2, %s719
        $region65: #{vehicle_detection_forward.4} parent=19 // pred_fallthru
          _
      $region20: #{vehicle_detection_forward.4} parent=5 // pred_fallthru
        _
      %p721 = scmp.le.s32.totalorder 1, %s12
      %p722 = scmp.lt.s32.totalorder %s12, 3
      %p723 = pnand %p721, %p722
      %p724 = pneg %p723
      // Predicated region
      $region66: #{vehicle_detection_forward.4} parent=5 // pred_check
        _
      $region67: #{vehicle_detection_forward.4} parent=5 // pred_check_branch
        %726 = sbr.rel (%p723) target = $region69
      $region68: #{vehicle_detection_forward.4} parent=5 // pred_region
        %s727 = ssub.s32 %s12, 1
        %s728 = sand.u32 %s63, 1
        %s729 = sand.u32 %s63, 1
        %s730 = smul.addr %s729, 512
        %s731 = scalar_lea.vmem [#allocation2], %s730
        // Predicated region
        $region70: #{vehicle_detection_forward.4} parent=68 // pred_check
          %p732 = pneg %p76
        $region71: #{vehicle_detection_forward.4} parent=68 // pred_check_branch
          %734 = sbr.rel (%p732) target = $region73
        $region72: #{vehicle_detection_forward.4} parent=68 // pred_region
          _
        $region73: #{vehicle_detection_forward.4} parent=68 // pred_fallthru
          _
        %s735 = smul.u32 16, %s21
        %p736 = scmp.lt.s32.totalorder %s735, 15
        %s737 = scalar_select %p736, %s735, 15
        %s738 = smul.addr %s737, 8
        %s739 = smul.addr %s738, 4
        %s740 = scalar_lea.vmem %s0, %s739
        %p741 = pneg %p50
        %p742 = pneg %p47
        %s743 = sand.u32 %s63, 1
        %s744 = sand.u32 %s63, 1
        %s745 = smul.addr %s744, 512
        %s746 = scalar_lea.vmem [#allocation2], %s745
        %p747 = pneg %p76
        %p748 = pneg %p73
        %p749 = scmp.lt.s32.totalorder %s22, 1
        %s750 = scalar_select %p749, %s22, 1
        %s751 = scalar_lea.vmem %s2, %s750
        %p752 = pneg %p102
        %p753 = pneg %p99
        %p754 = pneg %p130
        %p755 = pneg %p127
        %s756 = sand.u32 %s117, 1
        %s757 = scalar_lea.sflag [#allocation4], %s756
        %s758 = sand.u32 %s117, 1
        %s759 = smul.addr %s758, 128
        %s760 = scalar_lea.vmem [#allocation3], %s759
        %s761 = smul.u32 16, %s21
        %p762 = scmp.lt.s32.totalorder %s761, 15
        %s763 = scalar_select %p762, %s761, 15
        %s764 = smul.addr %s763, 8
        %s765 = smul.addr %s764, 4
        %s766 = scalar_lea.vmem %s0, %s765
        %s767 = smul.u32 16, %s21
        %p768 = scmp.lt.s32.totalorder %s22, 1
        %s769 = scalar_select %p768, %s22, 1
        %s770 = scalar_lea.vmem %s2, %s769
        %s771 = smul.u32 16, %s21
        %v773 = vld [vmem:[%s766] sm:$0xff]
        %v774 = vld [vmem:[%s766 + $0x8] sm:$0xff]
        %v775 = vld [vmem:[%s766 + $0x10] sm:$0xff]
        %v776 = vld [vmem:[%s766 + $0x18] sm:$0xff]
        %v777 = vld [vmem:[%s766 + $0x20] sm:$0xff]
        %v778 = vld [vmem:[%s766 + $0x28] sm:$0xff]
        %v779 = vld [vmem:[%s766 + $0x30] sm:$0xff]
        %v780 = vld [vmem:[%s766 + $0x38] sm:$0xff]
        %v781 = vld [vmem:[%s766 + $0x40] sm:$0xff]
        %v782 = vld [vmem:[%s766 + $0x48] sm:$0xff]
        %v783 = vld [vmem:[%s766 + $0x50] sm:$0xff]
        %v784 = vld [vmem:[%s766 + $0x58] sm:$0xff]
        %v785 = vld [vmem:[%s766 + $0x60] sm:$0xff]
        %v786 = vld [vmem:[%s766 + $0x68] sm:$0xff]
        %v787 = vld [vmem:[%s766 + $0x70] sm:$0xff]
        %v788 = vld [vmem:[%s766 + $0x78] sm:$0xff]
        %v789 = vld [vmem:[%s766 + $0x80] sm:$0xff]
        %v790 = vld [vmem:[%s766 + $0x88] sm:$0xff]
        %v791 = vld [vmem:[%s766 + $0x90] sm:$0xff]
        %v792 = vld [vmem:[%s766 + $0x98] sm:$0xff]
        %v793 = vld [vmem:[%s766 + $0xa0] sm:$0xff]
        %v794 = vld [vmem:[%s766 + $0xa8] sm:$0xff]
        %v795 = vld [vmem:[%s766 + $0xb0] sm:$0xff]
        %v796 = vld [vmem:[%s766 + $0xb8] sm:$0xff]
        %v797 = vld [vmem:[%s766 + $0xc0] sm:$0xff]
        %v798 = vld [vmem:[%s766 + $0xc8] sm:$0xff]
        %v799 = vld [vmem:[%s766 + $0xd0] sm:$0xff]
        %v800 = vld [vmem:[%s766 + $0xd8] sm:$0xff]
        %v801 = vld [vmem:[%s766 + $0xe0] sm:$0xff]
        %v802 = vld [vmem:[%s766 + $0xe8] sm:$0xff]
        %v803 = vld [vmem:[%s766 + $0xf0] sm:$0xff]
        %v804 = vld [vmem:[%s766 + $0xf8] sm:$0xff]
        %v805 = vld [vmem:[%s766 + $0x100] sm:$0xff]
        %v806 = vld [vmem:[%s766 + $0x108] sm:$0xff]
        %v807 = vld [vmem:[%s766 + $0x110] sm:$0xff]
        %v808 = vld [vmem:[%s766 + $0x118] sm:$0xff]
        %v809 = vld [vmem:[%s766 + $0x120] sm:$0xff]
        %v810 = vld [vmem:[%s766 + $0x128] sm:$0xff]
        %v811 = vld [vmem:[%s766 + $0x130] sm:$0xff]
        %v812 = vld [vmem:[%s766 + $0x138] sm:$0xff]
        %v813 = vld [vmem:[%s766 + $0x140] sm:$0xff]
        %v814 = vld [vmem:[%s766 + $0x148] sm:$0xff]
        %v815 = vld [vmem:[%s766 + $0x150] sm:$0xff]
        %v816 = vld [vmem:[%s766 + $0x158] sm:$0xff]
        %v817 = vld [vmem:[%s766 + $0x160] sm:$0xff]
        %v818 = vld [vmem:[%s766 + $0x168] sm:$0xff]
        %v819 = vld [vmem:[%s766 + $0x170] sm:$0xff]
        %v820 = vld [vmem:[%s766 + $0x178] sm:$0xff]
        %v821 = vld [vmem:[%s766 + $0x180] sm:$0xff]
        %v822 = vld [vmem:[%s766 + $0x188] sm:$0xff]
        %v823 = vld [vmem:[%s766 + $0x190] sm:$0xff]
        %v824 = vld [vmem:[%s766 + $0x198] sm:$0xff]
        %v825 = vld [vmem:[%s766 + $0x1a0] sm:$0xff]
        %v826 = vld [vmem:[%s766 + $0x1a8] sm:$0xff]
        %v827 = vld [vmem:[%s766 + $0x1b0] sm:$0xff]
        %v828 = vld [vmem:[%s766 + $0x1b8] sm:$0xff]
        %v829 = vld [vmem:[%s766 + $0x1c0] sm:$0xff]
        %v830 = vld [vmem:[%s766 + $0x1c8] sm:$0xff]
        %v831 = vld [vmem:[%s766 + $0x1d0] sm:$0xff]
        %v832 = vld [vmem:[%s766 + $0x1d8] sm:$0xff]
        %v833 = vld [vmem:[%s766 + $0x1e0] sm:$0xff]
        %v834 = vld [vmem:[%s766 + $0x1e8] sm:$0xff]
        %v835 = vld [vmem:[%s766 + $0x1f0] sm:$0xff]
        %v836 = vld [vmem:[%s766 + $0x1f8] sm:$0xff]
        %v837 = vld [vmem:[%s731] sm:$0xf]
        %v838 = vld [vmem:[%s731 + $0x4] sm:$0xf]
        %v839 = vld [vmem:[%s731 + $0x8] sm:$0xf]
        %v840 = vld [vmem:[%s731 + $0xc] sm:$0xf]
        %v841 = vld [vmem:[%s731 + $0x10] sm:$0xf]
        %v842 = vld [vmem:[%s731 + $0x14] sm:$0xf]
        %v843 = vld [vmem:[%s731 + $0x18] sm:$0xf]
        %v844 = vld [vmem:[%s731 + $0x1c] sm:$0xf]
        %v845 = vld [vmem:[%s731 + $0x20] sm:$0xf]
        %v846 = vld [vmem:[%s731 + $0x24] sm:$0xf]
        %v847 = vld [vmem:[%s731 + $0x28] sm:$0xf]
        %v848 = vld [vmem:[%s731 + $0x2c] sm:$0xf]
        %v849 = vld [vmem:[%s731 + $0x30] sm:$0xf]
        %v850 = vld [vmem:[%s731 + $0x34] sm:$0xf]
        %v851 = vld [vmem:[%s731 + $0x38] sm:$0xf]
        %v852 = vld [vmem:[%s731 + $0x3c] sm:$0xf]
        %v853 = vld [vmem:[%s731 + $0x40] sm:$0xf]
        %v854 = vld [vmem:[%s731 + $0x44] sm:$0xf]
        %v855 = vld [vmem:[%s731 + $0x48] sm:$0xf]
        %v856 = vld [vmem:[%s731 + $0x4c] sm:$0xf]
        %v857 = vld [vmem:[%s731 + $0x50] sm:$0xf]
        %v858 = vld [vmem:[%s731 + $0x54] sm:$0xf]
        %v859 = vld [vmem:[%s731 + $0x58] sm:$0xf]
        %v860 = vld [vmem:[%s731 + $0x5c] sm:$0xf]
        %v861 = vld [vmem:[%s731 + $0x60] sm:$0xf]
        %v862 = vld [vmem:[%s731 + $0x64] sm:$0xf]
        %v863 = vld [vmem:[%s731 + $0x68] sm:$0xf]
        %v864 = vld [vmem:[%s731 + $0x6c] sm:$0xf]
        %v865 = vld [vmem:[%s731 + $0x70] sm:$0xf]
        %v866 = vld [vmem:[%s731 + $0x74] sm:$0xf]
        %v867 = vld [vmem:[%s731 + $0x78] sm:$0xf]
        %v868 = vld [vmem:[%s731 + $0x7c] sm:$0xf]
        %v869 = vld [vmem:[%s731 + $0x80] sm:$0xf]
        %v870 = vld [vmem:[%s731 + $0x84] sm:$0xf]
        %v871 = vld [vmem:[%s731 + $0x88] sm:$0xf]
        %v872 = vld [vmem:[%s731 + $0x8c] sm:$0xf]
        %v873 = vld [vmem:[%s731 + $0x90] sm:$0xf]
        %v874 = vld [vmem:[%s731 + $0x94] sm:$0xf]
        %v875 = vld [vmem:[%s731 + $0x98] sm:$0xf]
        %v876 = vld [vmem:[%s731 + $0x9c] sm:$0xf]
        %v877 = vld [vmem:[%s731 + $0xa0] sm:$0xf]
        %v878 = vld [vmem:[%s731 + $0xa4] sm:$0xf]
        %v879 = vld [vmem:[%s731 + $0xa8] sm:$0xf]
        %v880 = vld [vmem:[%s731 + $0xac] sm:$0xf]
        %v881 = vld [vmem:[%s731 + $0xb0] sm:$0xf]
        %v882 = vld [vmem:[%s731 + $0xb4] sm:$0xf]
        %v883 = vld [vmem:[%s731 + $0xb8] sm:$0xf]
        %v884 = vld [vmem:[%s731 + $0xbc] sm:$0xf]
        %v885 = vld [vmem:[%s731 + $0xc0] sm:$0xf]
        %v886 = vld [vmem:[%s731 + $0xc4] sm:$0xf]
        %v887 = vld [vmem:[%s731 + $0xc8] sm:$0xf]
        %v888 = vld [vmem:[%s731 + $0xcc] sm:$0xf]
        %v889 = vld [vmem:[%s731 + $0xd0] sm:$0xf]
        %v890 = vld [vmem:[%s731 + $0xd4] sm:$0xf]
        %v891 = vld [vmem:[%s731 + $0xd8] sm:$0xf]
        %v892 = vld [vmem:[%s731 + $0xdc] sm:$0xf]
        %v893 = vld [vmem:[%s731 + $0xe0] sm:$0xf]
        %v894 = vld [vmem:[%s731 + $0xe4] sm:$0xf]
        %v895 = vld [vmem:[%s731 + $0xe8] sm:$0xf]
        %v896 = vld [vmem:[%s731 + $0xec] sm:$0xf]
        %v897 = vld [vmem:[%s731 + $0xf0] sm:$0xf]
        %v898 = vld [vmem:[%s731 + $0xf4] sm:$0xf]
        %v899 = vld [vmem:[%s731 + $0xf8] sm:$0xf]
        %v900 = vld [vmem:[%s731 + $0xfc] sm:$0xf]
        %v901 = vld [vmem:[%s731 + $0x100] sm:$0xf]
        %v902 = vld [vmem:[%s731 + $0x104] sm:$0xf]
        %v903 = vld [vmem:[%s731 + $0x108] sm:$0xf]
        %v904 = vld [vmem:[%s731 + $0x10c] sm:$0xf]
        %v905 = vld [vmem:[%s731 + $0x110] sm:$0xf]
        %v906 = vld [vmem:[%s731 + $0x114] sm:$0xf]
        %v907 = vld [vmem:[%s731 + $0x118] sm:$0xf]
        %v908 = vld [vmem:[%s731 + $0x11c] sm:$0xf]
        %v909 = vld [vmem:[%s731 + $0x120] sm:$0xf]
        %v910 = vld [vmem:[%s731 + $0x124] sm:$0xf]
        %v911 = vld [vmem:[%s731 + $0x128] sm:$0xf]
        %v912 = vld [vmem:[%s731 + $0x12c] sm:$0xf]
        %v913 = vld [vmem:[%s731 + $0x130] sm:$0xf]
        %v914 = vld [vmem:[%s731 + $0x134] sm:$0xf]
        %v915 = vld [vmem:[%s731 + $0x138] sm:$0xf]
        %v916 = vld [vmem:[%s731 + $0x13c] sm:$0xf]
        %v917 = vld [vmem:[%s731 + $0x140] sm:$0xf]
        %v918 = vld [vmem:[%s731 + $0x144] sm:$0xf]
        %v919 = vld [vmem:[%s731 + $0x148] sm:$0xf]
        %v920 = vld [vmem:[%s731 + $0x14c] sm:$0xf]
        %v921 = vld [vmem:[%s731 + $0x150] sm:$0xf]
        %v922 = vld [vmem:[%s731 + $0x154] sm:$0xf]
        %v923 = vld [vmem:[%s731 + $0x158] sm:$0xf]
        %v924 = vld [vmem:[%s731 + $0x15c] sm:$0xf]
        %v925 = vld [vmem:[%s731 + $0x160] sm:$0xf]
        %v926 = vld [vmem:[%s731 + $0x164] sm:$0xf]
        %v927 = vld [vmem:[%s731 + $0x168] sm:$0xf]
        %v928 = vld [vmem:[%s731 + $0x16c] sm:$0xf]
        %v929 = vld [vmem:[%s731 + $0x170] sm:$0xf]
        %v930 = vld [vmem:[%s731 + $0x174] sm:$0xf]
        %v931 = vld [vmem:[%s731 + $0x178] sm:$0xf]
        %v932 = vld [vmem:[%s731 + $0x17c] sm:$0xf]
        %v933 = vld [vmem:[%s731 + $0x180] sm:$0xf]
        %v934 = vld [vmem:[%s731 + $0x184] sm:$0xf]
        %v935 = vld [vmem:[%s731 + $0x188] sm:$0xf]
        %v936 = vld [vmem:[%s731 + $0x18c] sm:$0xf]
        %v937 = vld [vmem:[%s731 + $0x190] sm:$0xf]
        %v938 = vld [vmem:[%s731 + $0x194] sm:$0xf]
        %v939 = vld [vmem:[%s731 + $0x198] sm:$0xf]
        %v940 = vld [vmem:[%s731 + $0x19c] sm:$0xf]
        %v941 = vld [vmem:[%s731 + $0x1a0] sm:$0xf]
        %v942 = vld [vmem:[%s731 + $0x1a4] sm:$0xf]
        %v943 = vld [vmem:[%s731 + $0x1a8] sm:$0xf]
        %v944 = vld [vmem:[%s731 + $0x1ac] sm:$0xf]
        %v945 = vld [vmem:[%s731 + $0x1b0] sm:$0xf]
        %v946 = vld [vmem:[%s731 + $0x1b4] sm:$0xf]
        %v947 = vld [vmem:[%s731 + $0x1b8] sm:$0xf]
        %v948 = vld [vmem:[%s731 + $0x1bc] sm:$0xf]
        %v949 = vld [vmem:[%s731 + $0x1c0] sm:$0xf]
        %v950 = vld [vmem:[%s731 + $0x1c4] sm:$0xf]
        %v951 = vld [vmem:[%s731 + $0x1c8] sm:$0xf]
        %v952 = vld [vmem:[%s731 + $0x1cc] sm:$0xf]
        %v953 = vld [vmem:[%s731 + $0x1d0] sm:$0xf]
        %v954 = vld [vmem:[%s731 + $0x1d4] sm:$0xf]
        %v955 = vld [vmem:[%s731 + $0x1d8] sm:$0xf]
        %v956 = vld [vmem:[%s731 + $0x1dc] sm:$0xf]
        %v957 = vld [vmem:[%s731 + $0x1e0] sm:$0xf]
        %v958 = vld [vmem:[%s731 + $0x1e4] sm:$0xf]
        %v959 = vld [vmem:[%s731 + $0x1e8] sm:$0xf]
        %v960 = vld [vmem:[%s731 + $0x1ec] sm:$0xf]
        %v961 = vld [vmem:[%s731 + $0x1f0] sm:$0xf]
        %v962 = vld [vmem:[%s731 + $0x1f4] sm:$0xf]
        %v963 = vld [vmem:[%s731 + $0x1f8] sm:$0xf]
        %v964 = vld [vmem:[%s731 + $0x1fc] sm:$0xf]
        %v965 = vld [vmem:[%s770] sm:$0x1]
        %v967 = vlaneseq
        %v968 = vshrl.u32 %v967, 7
        %v969 = vsub.s32 0, %v968
        %v970 = vrot.slane %v965, %v969
        %v1036 = vunpack.c.l.b16 %v773
        %v1037 = vunpack.c.h.b16 %v773
        %v1038 = vunpack.c.l.b16 %v774
        %v1039 = vunpack.c.h.b16 %v774
        %v1040 = vunpack.c.l.b16 %v775
        %v1041 = vunpack.c.h.b16 %v775
        %v1042 = vunpack.c.l.b16 %v776
        %v1043 = vunpack.c.h.b16 %v776
        %v1044 = vunpack.c.l.b16 %v777
        %v1045 = vunpack.c.h.b16 %v777
        %v1046 = vunpack.c.l.b16 %v778
        %v1047 = vunpack.c.h.b16 %v778
        %v1048 = vunpack.c.l.b16 %v779
        %v1049 = vunpack.c.h.b16 %v779
        %v1050 = vunpack.c.l.b16 %v780
        %v1051 = vunpack.c.h.b16 %v780
        %v1052 = vunpack.c.l.b16 %v781
        %v1053 = vunpack.c.h.b16 %v781
        %v1054 = vunpack.c.l.b16 %v782
        %v1055 = vunpack.c.h.b16 %v782
        %v1056 = vunpack.c.l.b16 %v783
        %v1057 = vunpack.c.h.b16 %v783
        %v1058 = vunpack.c.l.b16 %v784
        %v1059 = vunpack.c.h.b16 %v784
        %v1060 = vunpack.c.l.b16 %v785
        %v1061 = vunpack.c.h.b16 %v785
        %v1062 = vunpack.c.l.b16 %v786
        %v1063 = vunpack.c.h.b16 %v786
        %v1064 = vunpack.c.l.b16 %v787
        %v1065 = vunpack.c.h.b16 %v787
        %v1066 = vunpack.c.l.b16 %v788
        %v1067 = vunpack.c.h.b16 %v788
        %v1068 = vunpack.c.l.b16 %v789
        %v1069 = vunpack.c.h.b16 %v789
        %v1070 = vunpack.c.l.b16 %v790
        %v1071 = vunpack.c.h.b16 %v790
        %v1072 = vunpack.c.l.b16 %v791
        %v1073 = vunpack.c.h.b16 %v791
        %v1074 = vunpack.c.l.b16 %v792
        %v1075 = vunpack.c.h.b16 %v792
        %v1076 = vunpack.c.l.b16 %v793
        %v1077 = vunpack.c.h.b16 %v793
        %v1078 = vunpack.c.l.b16 %v794
        %v1079 = vunpack.c.h.b16 %v794
        %v1080 = vunpack.c.l.b16 %v795
        %v1081 = vunpack.c.h.b16 %v795
        %v1082 = vunpack.c.l.b16 %v796
        %v1083 = vunpack.c.h.b16 %v796
        %v1084 = vunpack.c.l.b16 %v797
        %v1085 = vunpack.c.h.b16 %v797
        %v1086 = vunpack.c.l.b16 %v798
        %v1087 = vunpack.c.h.b16 %v798
        %v1088 = vunpack.c.l.b16 %v799
        %v1089 = vunpack.c.h.b16 %v799
        %v1090 = vunpack.c.l.b16 %v800
        %v1091 = vunpack.c.h.b16 %v800
        %v1092 = vunpack.c.l.b16 %v801
        %v1093 = vunpack.c.h.b16 %v801
        %v1094 = vunpack.c.l.b16 %v802
        %v1095 = vunpack.c.h.b16 %v802
        %v1096 = vunpack.c.l.b16 %v803
        %v1097 = vunpack.c.h.b16 %v803
        %v1098 = vunpack.c.l.b16 %v804
        %v1099 = vunpack.c.h.b16 %v804
        %v1100 = vunpack.c.l.b16 %v805
        %v1101 = vunpack.c.h.b16 %v805
        %v1102 = vunpack.c.l.b16 %v806
        %v1103 = vunpack.c.h.b16 %v806
        %v1104 = vunpack.c.l.b16 %v807
        %v1105 = vunpack.c.h.b16 %v807
        %v1106 = vunpack.c.l.b16 %v808
        %v1107 = vunpack.c.h.b16 %v808
        %v1108 = vunpack.c.l.b16 %v809
        %v1109 = vunpack.c.h.b16 %v809
        %v1110 = vunpack.c.l.b16 %v810
        %v1111 = vunpack.c.h.b16 %v810
        %v1112 = vunpack.c.l.b16 %v811
        %v1113 = vunpack.c.h.b16 %v811
        %v1114 = vunpack.c.l.b16 %v812
        %v1115 = vunpack.c.h.b16 %v812
        %v1116 = vunpack.c.l.b16 %v813
        %v1117 = vunpack.c.h.b16 %v813
        %v1118 = vunpack.c.l.b16 %v814
        %v1119 = vunpack.c.h.b16 %v814
        %v1120 = vunpack.c.l.b16 %v815
        %v1121 = vunpack.c.h.b16 %v815
        %v1122 = vunpack.c.l.b16 %v816
        %v1123 = vunpack.c.h.b16 %v816
        %v1124 = vunpack.c.l.b16 %v817
        %v1125 = vunpack.c.h.b16 %v817
        %v1126 = vunpack.c.l.b16 %v818
        %v1127 = vunpack.c.h.b16 %v818
        %v1128 = vunpack.c.l.b16 %v819
        %v1129 = vunpack.c.h.b16 %v819
        %v1130 = vunpack.c.l.b16 %v820
        %v1131 = vunpack.c.h.b16 %v820
        %v1132 = vunpack.c.l.b16 %v821
        %v1133 = vunpack.c.h.b16 %v821
        %v1134 = vunpack.c.l.b16 %v822
        %v1135 = vunpack.c.h.b16 %v822
        %v1136 = vunpack.c.l.b16 %v823
        %v1137 = vunpack.c.h.b16 %v823
        %v1138 = vunpack.c.l.b16 %v824
        %v1139 = vunpack.c.h.b16 %v824
        %v1140 = vunpack.c.l.b16 %v825
        %v1141 = vunpack.c.h.b16 %v825
        %v1142 = vunpack.c.l.b16 %v826
        %v1143 = vunpack.c.h.b16 %v826
        %v1144 = vunpack.c.l.b16 %v827
        %v1145 = vunpack.c.h.b16 %v827
        %v1146 = vunpack.c.l.b16 %v828
        %v1147 = vunpack.c.h.b16 %v828
        %v1148 = vunpack.c.l.b16 %v829
        %v1149 = vunpack.c.h.b16 %v829
        %v1150 = vunpack.c.l.b16 %v830
        %v1151 = vunpack.c.h.b16 %v830
        %v1152 = vunpack.c.l.b16 %v831
        %v1153 = vunpack.c.h.b16 %v831
        %v1154 = vunpack.c.l.b16 %v832
        %v1155 = vunpack.c.h.b16 %v832
        %v1156 = vunpack.c.l.b16 %v833
        %v1157 = vunpack.c.h.b16 %v833
        %v1158 = vunpack.c.l.b16 %v834
        %v1159 = vunpack.c.h.b16 %v834
        %v1160 = vunpack.c.l.b16 %v835
        %v1161 = vunpack.c.h.b16 %v835
        %v1162 = vunpack.c.l.b16 %v836
        %v1163 = vunpack.c.h.b16 %v836
        %v1164 = vpack.c.b16 %v1044, %v1036
        %v1165 = vpack.c.b16 %v1045, %v1037
        %v1166 = vpack.c.b16 %v1046, %v1038
        %v1167 = vpack.c.b16 %v1047, %v1039
        %v1168 = vpack.c.b16 %v1048, %v1040
        %v1169 = vpack.c.b16 %v1049, %v1041
        %v1170 = vpack.c.b16 %v1050, %v1042
        %v1171 = vpack.c.b16 %v1051, %v1043
        %v1172 = vpack.c.b16 %v1060, %v1052
        %v1173 = vpack.c.b16 %v1061, %v1053
        %v1174 = vpack.c.b16 %v1062, %v1054
        %v1175 = vpack.c.b16 %v1063, %v1055
        %v1176 = vpack.c.b16 %v1064, %v1056
        %v1177 = vpack.c.b16 %v1065, %v1057
        %v1178 = vpack.c.b16 %v1066, %v1058
        %v1179 = vpack.c.b16 %v1067, %v1059
        %v1180 = vpack.c.b16 %v1076, %v1068
        %v1181 = vpack.c.b16 %v1077, %v1069
        %v1182 = vpack.c.b16 %v1078, %v1070
        %v1183 = vpack.c.b16 %v1079, %v1071
        %v1184 = vpack.c.b16 %v1080, %v1072
        %v1185 = vpack.c.b16 %v1081, %v1073
        %v1186 = vpack.c.b16 %v1082, %v1074
        %v1187 = vpack.c.b16 %v1083, %v1075
        %v1188 = vpack.c.b16 %v1092, %v1084
        %v1189 = vpack.c.b16 %v1093, %v1085
        %v1190 = vpack.c.b16 %v1094, %v1086
        %v1191 = vpack.c.b16 %v1095, %v1087
        %v1192 = vpack.c.b16 %v1096, %v1088
        %v1193 = vpack.c.b16 %v1097, %v1089
        %v1194 = vpack.c.b16 %v1098, %v1090
        %v1195 = vpack.c.b16 %v1099, %v1091
        %v1196 = vpack.c.b16 %v1108, %v1100
        %v1197 = vpack.c.b16 %v1109, %v1101
        %v1198 = vpack.c.b16 %v1110, %v1102
        %v1199 = vpack.c.b16 %v1111, %v1103
        %v1200 = vpack.c.b16 %v1112, %v1104
        %v1201 = vpack.c.b16 %v1113, %v1105
        %v1202 = vpack.c.b16 %v1114, %v1106
        %v1203 = vpack.c.b16 %v1115, %v1107
        %v1204 = vpack.c.b16 %v1124, %v1116
        %v1205 = vpack.c.b16 %v1125, %v1117
        %v1206 = vpack.c.b16 %v1126, %v1118
        %v1207 = vpack.c.b16 %v1127, %v1119
        %v1208 = vpack.c.b16 %v1128, %v1120
        %v1209 = vpack.c.b16 %v1129, %v1121
        %v1210 = vpack.c.b16 %v1130, %v1122
        %v1211 = vpack.c.b16 %v1131, %v1123
        %v1212 = vpack.c.b16 %v1140, %v1132
        %v1213 = vpack.c.b16 %v1141, %v1133
        %v1214 = vpack.c.b16 %v1142, %v1134
        %v1215 = vpack.c.b16 %v1143, %v1135
        %v1216 = vpack.c.b16 %v1144, %v1136
        %v1217 = vpack.c.b16 %v1145, %v1137
        %v1218 = vpack.c.b16 %v1146, %v1138
        %v1219 = vpack.c.b16 %v1147, %v1139
        %v1220 = vpack.c.b16 %v1156, %v1148
        %v1221 = vpack.c.b16 %v1157, %v1149
        %v1222 = vpack.c.b16 %v1158, %v1150
        %v1223 = vpack.c.b16 %v1159, %v1151
        %v1224 = vpack.c.b16 %v1160, %v1152
        %v1225 = vpack.c.b16 %v1161, %v1153
        %v1226 = vpack.c.b16 %v1162, %v1154
        %v1227 = vpack.c.b16 %v1163, %v1155
        %v1420 = vunpack.c.l.b16 %v837
        %v1421 = vunpack.c.l.b16 %v838
        %v1422 = vunpack.c.l.b16 %v839
        %v1423 = vunpack.c.l.b16 %v840
        %v1424 = vunpack.c.l.b16 %v841
        %v1425 = vunpack.c.l.b16 %v842
        %v1426 = vunpack.c.l.b16 %v843
        %v1427 = vunpack.c.l.b16 %v844
        %v1428 = vunpack.c.l.b16 %v845
        %v1429 = vunpack.c.l.b16 %v846
        %v1430 = vunpack.c.l.b16 %v847
        %v1431 = vunpack.c.l.b16 %v848
        %v1432 = vunpack.c.l.b16 %v849
        %v1433 = vunpack.c.l.b16 %v850
        %v1434 = vunpack.c.l.b16 %v851
        %v1435 = vunpack.c.l.b16 %v852
        %v1436 = vunpack.c.l.b16 %v853
        %v1437 = vunpack.c.l.b16 %v854
        %v1438 = vunpack.c.l.b16 %v855
        %v1439 = vunpack.c.l.b16 %v856
        %v1440 = vunpack.c.l.b16 %v857
        %v1441 = vunpack.c.l.b16 %v858
        %v1442 = vunpack.c.l.b16 %v859
        %v1443 = vunpack.c.l.b16 %v860
        %v1444 = vunpack.c.l.b16 %v861
        %v1445 = vunpack.c.l.b16 %v862
        %v1446 = vunpack.c.l.b16 %v863
        %v1447 = vunpack.c.l.b16 %v864
        %v1448 = vunpack.c.l.b16 %v865
        %v1449 = vunpack.c.l.b16 %v866
        %v1450 = vunpack.c.l.b16 %v867
        %v1451 = vunpack.c.l.b16 %v868
        %v1452 = vunpack.c.l.b16 %v869
        %v1453 = vunpack.c.l.b16 %v870
        %v1454 = vunpack.c.l.b16 %v871
        %v1455 = vunpack.c.l.b16 %v872
        %v1456 = vunpack.c.l.b16 %v873
        %v1457 = vunpack.c.l.b16 %v874
        %v1458 = vunpack.c.l.b16 %v875
        %v1459 = vunpack.c.l.b16 %v876
        %v1460 = vunpack.c.l.b16 %v877
        %v1461 = vunpack.c.l.b16 %v878
        %v1462 = vunpack.c.l.b16 %v879
        %v1463 = vunpack.c.l.b16 %v880
        %v1464 = vunpack.c.l.b16 %v881
        %v1465 = vunpack.c.l.b16 %v882
        %v1466 = vunpack.c.l.b16 %v883
        %v1467 = vunpack.c.l.b16 %v884
        %v1468 = vunpack.c.l.b16 %v885
        %v1469 = vunpack.c.l.b16 %v886
        %v1470 = vunpack.c.l.b16 %v887
        %v1471 = vunpack.c.l.b16 %v888
        %v1472 = vunpack.c.l.b16 %v889
        %v1473 = vunpack.c.l.b16 %v890
        %v1474 = vunpack.c.l.b16 %v891
        %v1475 = vunpack.c.l.b16 %v892
        %v1476 = vunpack.c.l.b16 %v893
        %v1477 = vunpack.c.l.b16 %v894
        %v1478 = vunpack.c.l.b16 %v895
        %v1479 = vunpack.c.l.b16 %v896
        %v1480 = vunpack.c.l.b16 %v897
        %v1481 = vunpack.c.l.b16 %v898
        %v1482 = vunpack.c.l.b16 %v899
        %v1483 = vunpack.c.l.b16 %v900
        %v1484 = vunpack.c.l.b16 %v901
        %v1485 = vunpack.c.l.b16 %v902
        %v1486 = vunpack.c.l.b16 %v903
        %v1487 = vunpack.c.l.b16 %v904
        %v1488 = vunpack.c.l.b16 %v905
        %v1489 = vunpack.c.l.b16 %v906
        %v1490 = vunpack.c.l.b16 %v907
        %v1491 = vunpack.c.l.b16 %v908
        %v1492 = vunpack.c.l.b16 %v909
        %v1493 = vunpack.c.l.b16 %v910
        %v1494 = vunpack.c.l.b16 %v911
        %v1495 = vunpack.c.l.b16 %v912
        %v1496 = vunpack.c.l.b16 %v913
        %v1497 = vunpack.c.l.b16 %v914
        %v1498 = vunpack.c.l.b16 %v915
        %v1499 = vunpack.c.l.b16 %v916
        %v1500 = vunpack.c.l.b16 %v917
        %v1501 = vunpack.c.l.b16 %v918
        %v1502 = vunpack.c.l.b16 %v919
        %v1503 = vunpack.c.l.b16 %v920
        %v1504 = vunpack.c.l.b16 %v921
        %v1505 = vunpack.c.l.b16 %v922
        %v1506 = vunpack.c.l.b16 %v923
        %v1507 = vunpack.c.l.b16 %v924
        %v1508 = vunpack.c.l.b16 %v925
        %v1509 = vunpack.c.l.b16 %v926
        %v1510 = vunpack.c.l.b16 %v927
        %v1511 = vunpack.c.l.b16 %v928
        %v1512 = vunpack.c.l.b16 %v929
        %v1513 = vunpack.c.l.b16 %v930
        %v1514 = vunpack.c.l.b16 %v931
        %v1515 = vunpack.c.l.b16 %v932
        %v1516 = vunpack.c.l.b16 %v933
        %v1517 = vunpack.c.l.b16 %v934
        %v1518 = vunpack.c.l.b16 %v935
        %v1519 = vunpack.c.l.b16 %v936
        %v1520 = vunpack.c.l.b16 %v937
        %v1521 = vunpack.c.l.b16 %v938
        %v1522 = vunpack.c.l.b16 %v939
        %v1523 = vunpack.c.l.b16 %v940
        %v1524 = vunpack.c.l.b16 %v941
        %v1525 = vunpack.c.l.b16 %v942
        %v1526 = vunpack.c.l.b16 %v943
        %v1527 = vunpack.c.l.b16 %v944
        %v1528 = vunpack.c.l.b16 %v945
        %v1529 = vunpack.c.l.b16 %v946
        %v1530 = vunpack.c.l.b16 %v947
        %v1531 = vunpack.c.l.b16 %v948
        %v1532 = vunpack.c.l.b16 %v949
        %v1533 = vunpack.c.l.b16 %v950
        %v1534 = vunpack.c.l.b16 %v951
        %v1535 = vunpack.c.l.b16 %v952
        %v1536 = vunpack.c.l.b16 %v953
        %v1537 = vunpack.c.l.b16 %v954
        %v1538 = vunpack.c.l.b16 %v955
        %v1539 = vunpack.c.l.b16 %v956
        %v1540 = vunpack.c.l.b16 %v957
        %v1541 = vunpack.c.l.b16 %v958
        %v1542 = vunpack.c.l.b16 %v959
        %v1543 = vunpack.c.l.b16 %v960
        %v1544 = vunpack.c.l.b16 %v961
        %v1545 = vunpack.c.l.b16 %v962
        %v1546 = vunpack.c.l.b16 %v963
        %v1547 = vunpack.c.l.b16 %v964
        %v1548 = vpack.c.b16 %v1421, %v1420
        %v1549 = vpack.c.b16 %v1423, %v1422
        %v1550 = vpack.c.b16 %v1425, %v1424
        %v1551 = vpack.c.b16 %v1427, %v1426
        %v1552 = vpack.c.b16 %v1429, %v1428
        %v1553 = vpack.c.b16 %v1431, %v1430
        %v1554 = vpack.c.b16 %v1433, %v1432
        %v1555 = vpack.c.b16 %v1435, %v1434
        %v1556 = vpack.c.b16 %v1437, %v1436
        %v1557 = vpack.c.b16 %v1439, %v1438
        %v1558 = vpack.c.b16 %v1441, %v1440
        %v1559 = vpack.c.b16 %v1443, %v1442
        %v1560 = vpack.c.b16 %v1445, %v1444
        %v1561 = vpack.c.b16 %v1447, %v1446
        %v1562 = vpack.c.b16 %v1449, %v1448
        %v1563 = vpack.c.b16 %v1451, %v1450
        %v1564 = vpack.c.b16 %v1453, %v1452
        %v1565 = vpack.c.b16 %v1455, %v1454
        %v1566 = vpack.c.b16 %v1457, %v1456
        %v1567 = vpack.c.b16 %v1459, %v1458
        %v1568 = vpack.c.b16 %v1461, %v1460
        %v1569 = vpack.c.b16 %v1463, %v1462
        %v1570 = vpack.c.b16 %v1465, %v1464
        %v1571 = vpack.c.b16 %v1467, %v1466
        %v1572 = vpack.c.b16 %v1469, %v1468
        %v1573 = vpack.c.b16 %v1471, %v1470
        %v1574 = vpack.c.b16 %v1473, %v1472
        %v1575 = vpack.c.b16 %v1475, %v1474
        %v1576 = vpack.c.b16 %v1477, %v1476
        %v1577 = vpack.c.b16 %v1479, %v1478
        %v1578 = vpack.c.b16 %v1481, %v1480
        %v1579 = vpack.c.b16 %v1483, %v1482
        %v1580 = vpack.c.b16 %v1485, %v1484
        %v1581 = vpack.c.b16 %v1487, %v1486
        %v1582 = vpack.c.b16 %v1489, %v1488
        %v1583 = vpack.c.b16 %v1491, %v1490
        %v1584 = vpack.c.b16 %v1493, %v1492
        %v1585 = vpack.c.b16 %v1495, %v1494
        %v1586 = vpack.c.b16 %v1497, %v1496
        %v1587 = vpack.c.b16 %v1499, %v1498
        %v1588 = vpack.c.b16 %v1501, %v1500
        %v1589 = vpack.c.b16 %v1503, %v1502
        %v1590 = vpack.c.b16 %v1505, %v1504
        %v1591 = vpack.c.b16 %v1507, %v1506
        %v1592 = vpack.c.b16 %v1509, %v1508
        %v1593 = vpack.c.b16 %v1511, %v1510
        %v1594 = vpack.c.b16 %v1513, %v1512
        %v1595 = vpack.c.b16 %v1515, %v1514
        %v1596 = vpack.c.b16 %v1517, %v1516
        %v1597 = vpack.c.b16 %v1519, %v1518
        %v1598 = vpack.c.b16 %v1521, %v1520
        %v1599 = vpack.c.b16 %v1523, %v1522
        %v1600 = vpack.c.b16 %v1525, %v1524
        %v1601 = vpack.c.b16 %v1527, %v1526
        %v1602 = vpack.c.b16 %v1529, %v1528
        %v1603 = vpack.c.b16 %v1531, %v1530
        %v1604 = vpack.c.b16 %v1533, %v1532
        %v1605 = vpack.c.b16 %v1535, %v1534
        %v1606 = vpack.c.b16 %v1537, %v1536
        %v1607 = vpack.c.b16 %v1539, %v1538
        %v1608 = vpack.c.b16 %v1541, %v1540
        %v1609 = vpack.c.b16 %v1543, %v1542
        %v1610 = vpack.c.b16 %v1545, %v1544
        %v1611 = vpack.c.b16 %v1547, %v1546
        %1676 = vmatprep.subr.bf16.mxu0 0
        %1677 = vmatpush1.bf16.msra.mxu0 %v1548
        %1678 = vmatprep.subr.bf16.mxu0 0
        %1679 = vmatpush1.bf16.msra.mxu0 %v1549
        %1680 = vmatprep.subr.bf16.mxu0 0
        %1681 = vmatpush1.bf16.msra.mxu0 %v1550
        %1682 = vmatprep.subr.bf16.mxu0 0
        %1683 = vmatpush1.bf16.msra.mxu0 %v1551
        %1684 = vmatprep.subr.bf16.mxu0 0
        %1685 = vmatpush1.bf16.msra.mxu0 %v1552
        %1686 = vmatprep.subr.bf16.mxu0 0
        %1687 = vmatpush1.bf16.msra.mxu0 %v1553
        %1688 = vmatprep.subr.bf16.mxu0 0
        %1689 = vmatpush1.bf16.msra.mxu0 %v1554
        %1690 = vmatprep.subr.bf16.mxu0 0
        %1691 = vmatpush1.bf16.msra.mxu0 %v1555
        %1692 = vmatprep.subr.bf16.mxu0 0
        %1693 = vmatpush1.bf16.msra.mxu0 %v1556
        %1694 = vmatprep.subr.bf16.mxu0 0
        %1695 = vmatpush1.bf16.msra.mxu0 %v1557
        %1696 = vmatprep.subr.bf16.mxu0 0
        %1697 = vmatpush1.bf16.msra.mxu0 %v1558
        %1698 = vmatprep.subr.bf16.mxu0 0
        %1699 = vmatpush1.bf16.msra.mxu0 %v1559
        %1700 = vmatprep.subr.bf16.mxu0 0
        %1701 = vmatpush1.bf16.msra.mxu0 %v1560
        %1702 = vmatprep.subr.bf16.mxu0 0
        %1703 = vmatpush1.bf16.msra.mxu0 %v1561
        %1704 = vmatprep.subr.bf16.mxu0 0
        %1705 = vmatpush1.bf16.msra.mxu0 %v1562
        %1706 = vmatprep.subr.bf16.mxu0 0
        %1707 = vmatpush1.bf16.msra.mxu0 %v1563
        %1708 = vmatprep.mubr.bf16.mxu0 %v1165
        %1709 = vmatmul.mubr.bf16.gmra.mrb[0].mxu0 %v1164
        %v1710 = vpop.f32.mrb[0].mxu0
        %v1711 = vadd.f32 %v970, %v1710
        %v1712 = vpop.f32.mrb[0].mxu0
        %v1713 = vpop.f32.mrb[0].mxu0
        %v1714 = vadd.f32 %v970, %v1713
        %v1715 = vpop.f32.mrb[0].mxu0
        %1716 = vmatprep.mubr.bf16.mxu0 %v1173
        %1717 = vmatmul.mubr.bf16.gmra.mrb[0].mxu0 %v1172
        %v1718 = vpop.f32.mrb[0].mxu0
        %v1719 = vadd.f32 %v970, %v1718
        %v1720 = vpop.f32.mrb[0].mxu0
        %v1721 = vpop.f32.mrb[0].mxu0
        %v1722 = vadd.f32 %v970, %v1721
        %v1723 = vpop.f32.mrb[0].mxu0
        %1724 = vmatprep.mubr.bf16.mxu0 %v1181
        %1725 = vmatmul.mubr.bf16.gmra.mrb[0].mxu0 %v1180
        %v1726 = vpop.f32.mrb[0].mxu0
        %v1727 = vadd.f32 %v970, %v1726
        %v1728 = vpop.f32.mrb[0].mxu0
        %v1729 = vpop.f32.mrb[0].mxu0
        %v1730 = vadd.f32 %v970, %v1729
        %v1731 = vpop.f32.mrb[0].mxu0
        %1732 = vmatprep.mubr.bf16.mxu0 %v1189
        %1733 = vmatmul.mubr.bf16.gmra.mrb[0].mxu0 %v1188
        %v1734 = vpop.f32.mrb[0].mxu0
        %v1735 = vadd.f32 %v970, %v1734
        %v1736 = vpop.f32.mrb[0].mxu0
        %v1737 = vpop.f32.mrb[0].mxu0
        %v1738 = vadd.f32 %v970, %v1737
        %v1739 = vpop.f32.mrb[0].mxu0
        %1740 = vmatprep.mubr.bf16.mxu0 %v1197
        %1741 = vmatmul.mubr.bf16.gmra.mrb[0].mxu0 %v1196
        %v1742 = vpop.f32.mrb[0].mxu0
        %v1743 = vadd.f32 %v970, %v1742
        %v1744 = vpop.f32.mrb[0].mxu0
        %v1745 = vpop.f32.mrb[0].mxu0
        %v1746 = vadd.f32 %v970, %v1745
        %v1747 = vpop.f32.mrb[0].mxu0
        %1748 = vmatprep.mubr.bf16.mxu0 %v1205
        %1749 = vmatmul.mubr.bf16.gmra.mrb[0].mxu0 %v1204
        %v1750 = vpop.f32.mrb[0].mxu0
        %v1751 = vadd.f32 %v970, %v1750
        %v1752 = vpop.f32.mrb[0].mxu0
        %v1753 = vpop.f32.mrb[0].mxu0
        %v1754 = vadd.f32 %v970, %v1753
        %v1755 = vpop.f32.mrb[0].mxu0
        %1756 = vmatprep.mubr.bf16.mxu0 %v1213
        %1757 = vmatmul.mubr.bf16.gmra.mrb[0].mxu0 %v1212
        %v1758 = vpop.f32.mrb[0].mxu0
        %v1759 = vadd.f32 %v970, %v1758
        %v1760 = vpop.f32.mrb[0].mxu0
        %v1761 = vpop.f32.mrb[0].mxu0
        %v1762 = vadd.f32 %v970, %v1761
        %v1763 = vpop.f32.mrb[0].mxu0
        %1764 = vmatprep.mubr.bf16.mxu0 %v1221
        %1765 = vmatmul.mubr.bf16.gmra.mrb[0].mxu0 %v1220
        %v1766 = vpop.f32.mrb[0].mxu0
        %v1767 = vadd.f32 %v970, %v1766
        %v1768 = vpop.f32.mrb[0].mxu0
        %v1769 = vpop.f32.mrb[0].mxu0
        %v1770 = vadd.f32 %v970, %v1769
        %v1771 = vpop.f32.mrb[0].mxu0
        %1772 = vdwg.mxu0
        %1773 = vmatprep.subr.bf16.mxu0 0
        %1774 = vmatpush1.bf16.msra.mxu0 %v1564
        %1775 = vmatprep.subr.bf16.mxu0 0
        %1776 = vmatpush1.bf16.msra.mxu0 %v1565
        %1777 = vmatprep.subr.bf16.mxu0 0
        %1778 = vmatpush1.bf16.msra.mxu0 %v1566
        %1779 = vmatprep.subr.bf16.mxu0 0
        %1780 = vmatpush1.bf16.msra.mxu0 %v1567
        %1781 = vmatprep.subr.bf16.mxu0 0
        %1782 = vmatpush1.bf16.msra.mxu0 %v1568
        %1783 = vmatprep.subr.bf16.mxu0 0
        %1784 = vmatpush1.bf16.msra.mxu0 %v1569
        %1785 = vmatprep.subr.bf16.mxu0 0
        %1786 = vmatpush1.bf16.msra.mxu0 %v1570
        %1787 = vmatprep.subr.bf16.mxu0 0
        %1788 = vmatpush1.bf16.msra.mxu0 %v1571
        %1789 = vmatprep.subr.bf16.mxu0 0
        %1790 = vmatpush1.bf16.msra.mxu0 %v1572
        %1791 = vmatprep.subr.bf16.mxu0 0
        %1792 = vmatpush1.bf16.msra.mxu0 %v1573
        %1793 = vmatprep.subr.bf16.mxu0 0
        %1794 = vmatpush1.bf16.msra.mxu0 %v1574
        %1795 = vmatprep.subr.bf16.mxu0 0
        %1796 = vmatpush1.bf16.msra.mxu0 %v1575
        %1797 = vmatprep.subr.bf16.mxu0 0
        %1798 = vmatpush1.bf16.msra.mxu0 %v1576
        %1799 = vmatprep.subr.bf16.mxu0 0
        %1800 = vmatpush1.bf16.msra.mxu0 %v1577
        %1801 = vmatprep.subr.bf16.mxu0 0
        %1802 = vmatpush1.bf16.msra.mxu0 %v1578
        %1803 = vmatprep.subr.bf16.mxu0 0
        %1804 = vmatpush1.bf16.msra.mxu0 %v1579
        %1805 = vmatprep.mubr.bf16.mxu0 %v1167
        %1806 = vmatmul.mubr.bf16.gmra.mrb[0].mxu0 %v1166
        %v1807 = vpop.f32.mrb[0].mxu0
        %v1808 = vadd.f32 %v1711, %v1807
        %v1809 = vpop.f32.mrb[0].mxu0
        %v1810 = vpop.f32.mrb[0].mxu0
        %v1811 = vadd.f32 %v1714, %v1810
        %v1812 = vpop.f32.mrb[0].mxu0
        %1813 = vmatprep.mubr.bf16.mxu0 %v1175
        %1814 = vmatmul.mubr.bf16.gmra.mrb[0].mxu0 %v1174
        %v1815 = vpop.f32.mrb[0].mxu0
        %v1816 = vadd.f32 %v1719, %v1815
        %v1817 = vpop.f32.mrb[0].mxu0
        %v1818 = vpop.f32.mrb[0].mxu0
        %v1819 = vadd.f32 %v1722, %v1818
        %v1820 = vpop.f32.mrb[0].mxu0
        %1821 = vmatprep.mubr.bf16.mxu0 %v1183
        %1822 = vmatmul.mubr.bf16.gmra.mrb[0].mxu0 %v1182
        %v1823 = vpop.f32.mrb[0].mxu0
        %v1824 = vadd.f32 %v1727, %v1823
        %v1825 = vpop.f32.mrb[0].mxu0
        %v1826 = vpop.f32.mrb[0].mxu0
        %v1827 = vadd.f32 %v1730, %v1826
        %v1828 = vpop.f32.mrb[0].mxu0
        %1829 = vmatprep.mubr.bf16.mxu0 %v1191
        %1830 = vmatmul.mubr.bf16.gmra.mrb[0].mxu0 %v1190
        %v1831 = vpop.f32.mrb[0].mxu0
        %v1832 = vadd.f32 %v1735, %v1831
        %v1833 = vpop.f32.mrb[0].mxu0
        %v1834 = vpop.f32.mrb[0].mxu0
        %v1835 = vadd.f32 %v1738, %v1834
        %v1836 = vpop.f32.mrb[0].mxu0
        %1837 = vmatprep.mubr.bf16.mxu0 %v1199
        %1838 = vmatmul.mubr.bf16.gmra.mrb[0].mxu0 %v1198
        %v1839 = vpop.f32.mrb[0].mxu0
        %v1840 = vadd.f32 %v1743, %v1839
        %v1841 = vpop.f32.mrb[0].mxu0
        %v1842 = vpop.f32.mrb[0].mxu0
        %v1843 = vadd.f32 %v1746, %v1842
        %v1844 = vpop.f32.mrb[0].mxu0
        %1845 = vmatprep.mubr.bf16.mxu0 %v1207
        %1846 = vmatmul.mubr.bf16.gmra.mrb[0].mxu0 %v1206
        %v1847 = vpop.f32.mrb[0].mxu0
        %v1848 = vadd.f32 %v1751, %v1847
        %v1849 = vpop.f32.mrb[0].mxu0
        %v1850 = vpop.f32.mrb[0].mxu0
        %v1851 = vadd.f32 %v1754, %v1850
        %v1852 = vpop.f32.mrb[0].mxu0
        %1853 = vmatprep.mubr.bf16.mxu0 %v1215
        %1854 = vmatmul.mubr.bf16.gmra.mrb[0].mxu0 %v1214
        %v1855 = vpop.f32.mrb[0].mxu0
        %v1856 = vadd.f32 %v1759, %v1855
        %v1857 = vpop.f32.mrb[0].mxu0
        %v1858 = vpop.f32.mrb[0].mxu0
        %v1859 = vadd.f32 %v1762, %v1858
        %v1860 = vpop.f32.mrb[0].mxu0
        %1861 = vmatprep.mubr.bf16.mxu0 %v1223
        %1862 = vmatmul.mubr.bf16.gmra.mrb[0].mxu0 %v1222
        %v1863 = vpop.f32.mrb[0].mxu0
        %v1864 = vadd.f32 %v1767, %v1863
        %v1865 = vpop.f32.mrb[0].mxu0
        %v1866 = vpop.f32.mrb[0].mxu0
        %v1867 = vadd.f32 %v1770, %v1866
        %v1868 = vpop.f32.mrb[0].mxu0
        %1869 = vdwg.mxu0
        %1870 = vmatprep.subr.bf16.mxu0 0
        %1871 = vmatpush1.bf16.msra.mxu0 %v1580
        %1872 = vmatprep.subr.bf16.mxu0 0
        %1873 = vmatpush1.bf16.msra.mxu0 %v1581
        %1874 = vmatprep.subr.bf16.mxu0 0
        %1875 = vmatpush1.bf16.msra.mxu0 %v1582
        %1876 = vmatprep.subr.bf16.mxu0 0
        %1877 = vmatpush1.bf16.msra.mxu0 %v1583
        %1878 = vmatprep.subr.bf16.mxu0 0
        %1879 = vmatpush1.bf16.msra.mxu0 %v1584
        %1880 = vmatprep.subr.bf16.mxu0 0
        %1881 = vmatpush1.bf16.msra.mxu0 %v1585
        %1882 = vmatprep.subr.bf16.mxu0 0
        %1883 = vmatpush1.bf16.msra.mxu0 %v1586
        %1884 = vmatprep.subr.bf16.mxu0 0
        %1885 = vmatpush1.bf16.msra.mxu0 %v1587
        %1886 = vmatprep.subr.bf16.mxu0 0
        %1887 = vmatpush1.bf16.msra.mxu0 %v1588
        %1888 = vmatprep.subr.bf16.mxu0 0
        %1889 = vmatpush1.bf16.msra.mxu0 %v1589
        %1890 = vmatprep.subr.bf16.mxu0 0
        %1891 = vmatpush1.bf16.msra.mxu0 %v1590
        %1892 = vmatprep.subr.bf16.mxu0 0
        %1893 = vmatpush1.bf16.msra.mxu0 %v1591
        %1894 = vmatprep.subr.bf16.mxu0 0
        %1895 = vmatpush1.bf16.msra.mxu0 %v1592
        %1896 = vmatprep.subr.bf16.mxu0 0
        %1897 = vmatpush1.bf16.msra.mxu0 %v1593
        %1898 = vmatprep.subr.bf16.mxu0 0
        %1899 = vmatpush1.bf16.msra.mxu0 %v1594
        %1900 = vmatprep.subr.bf16.mxu0 0
        %1901 = vmatpush1.bf16.msra.mxu0 %v1595
        %1902 = vmatprep.mubr.bf16.mxu0 %v1169
        %1903 = vmatmul.mubr.bf16.gmra.mrb[0].mxu0 %v1168
        %v1904 = vpop.f32.mrb[0].mxu0
        %v1905 = vadd.f32 %v1808, %v1904
        %v1906 = vpop.f32.mrb[0].mxu0
        %v1907 = vpop.f32.mrb[0].mxu0
        %v1908 = vadd.f32 %v1811, %v1907
        %v1909 = vpop.f32.mrb[0].mxu0
        %1910 = vmatprep.mubr.bf16.mxu0 %v1177
        %1911 = vmatmul.mubr.bf16.gmra.mrb[0].mxu0 %v1176
        %v1912 = vpop.f32.mrb[0].mxu0
        %v1913 = vadd.f32 %v1816, %v1912
        %v1914 = vpop.f32.mrb[0].mxu0
        %v1915 = vpop.f32.mrb[0].mxu0
        %v1916 = vadd.f32 %v1819, %v1915
        %v1917 = vpop.f32.mrb[0].mxu0
        %1918 = vmatprep.mubr.bf16.mxu0 %v1185
        %1919 = vmatmul.mubr.bf16.gmra.mrb[0].mxu0 %v1184
        %v1920 = vpop.f32.mrb[0].mxu0
        %v1921 = vadd.f32 %v1824, %v1920
        %v1922 = vpop.f32.mrb[0].mxu0
        %v1923 = vpop.f32.mrb[0].mxu0
        %v1924 = vadd.f32 %v1827, %v1923
        %v1925 = vpop.f32.mrb[0].mxu0
        %1926 = vmatprep.mubr.bf16.mxu0 %v1193
        %1927 = vmatmul.mubr.bf16.gmra.mrb[0].mxu0 %v1192
        %v1928 = vpop.f32.mrb[0].mxu0
        %v1929 = vadd.f32 %v1832, %v1928
        %v1930 = vpop.f32.mrb[0].mxu0
        %v1931 = vpop.f32.mrb[0].mxu0
        %v1932 = vadd.f32 %v1835, %v1931
        %v1933 = vpop.f32.mrb[0].mxu0
        %1934 = vmatprep.mubr.bf16.mxu0 %v1201
        %1935 = vmatmul.mubr.bf16.gmra.mrb[0].mxu0 %v1200
        %v1936 = vpop.f32.mrb[0].mxu0
        %v1937 = vadd.f32 %v1840, %v1936
        %v1938 = vpop.f32.mrb[0].mxu0
        %v1939 = vpop.f32.mrb[0].mxu0
        %v1940 = vadd.f32 %v1843, %v1939
        %v1941 = vpop.f32.mrb[0].mxu0
        %1942 = vmatprep.mubr.bf16.mxu0 %v1209
        %1943 = vmatmul.mubr.bf16.gmra.mrb[0].mxu0 %v1208
        %v1944 = vpop.f32.mrb[0].mxu0
        %v1945 = vadd.f32 %v1848, %v1944
        %v1946 = vpop.f32.mrb[0].mxu0
        %v1947 = vpop.f32.mrb[0].mxu0
        %v1948 = vadd.f32 %v1851, %v1947
        %v1949 = vpop.f32.mrb[0].mxu0
        %1950 = vmatprep.mubr.bf16.mxu0 %v1217
        %1951 = vmatmul.mubr.bf16.gmra.mrb[0].mxu0 %v1216
        %v1952 = vpop.f32.mrb[0].mxu0
        %v1953 = vadd.f32 %v1856, %v1952
        %v1954 = vpop.f32.mrb[0].mxu0
        %v1955 = vpop.f32.mrb[0].mxu0
        %v1956 = vadd.f32 %v1859, %v1955
        %v1957 = vpop.f32.mrb[0].mxu0
        %1958 = vmatprep.mubr.bf16.mxu0 %v1225
        %1959 = vmatmul.mubr.bf16.gmra.mrb[0].mxu0 %v1224
        %v1960 = vpop.f32.mrb[0].mxu0
        %v1961 = vadd.f32 %v1864, %v1960
        %v1962 = vpop.f32.mrb[0].mxu0
        %v1963 = vpop.f32.mrb[0].mxu0
        %v1964 = vadd.f32 %v1867, %v1963
        %v1965 = vpop.f32.mrb[0].mxu0
        %1966 = vdwg.mxu0
        %1967 = vmatprep.subr.bf16.mxu0 0
        %1968 = vmatpush1.bf16.msra.mxu0 %v1596
        %1969 = vmatprep.subr.bf16.mxu0 0
        %1970 = vmatpush1.bf16.msra.mxu0 %v1597
        %1971 = vmatprep.subr.bf16.mxu0 0
        %1972 = vmatpush1.bf16.msra.mxu0 %v1598
        %1973 = vmatprep.subr.bf16.mxu0 0
        %1974 = vmatpush1.bf16.msra.mxu0 %v1599
        %1975 = vmatprep.subr.bf16.mxu0 0
        %1976 = vmatpush1.bf16.msra.mxu0 %v1600
        %1977 = vmatprep.subr.bf16.mxu0 0
        %1978 = vmatpush1.bf16.msra.mxu0 %v1601
        %1979 = vmatprep.subr.bf16.mxu0 0
        %1980 = vmatpush1.bf16.msra.mxu0 %v1602
        %1981 = vmatprep.subr.bf16.mxu0 0
        %1982 = vmatpush1.bf16.msra.mxu0 %v1603
        %1983 = vmatprep.subr.bf16.mxu0 0
        %1984 = vmatpush1.bf16.msra.mxu0 %v1604
        %1985 = vmatprep.subr.bf16.mxu0 0
        %1986 = vmatpush1.bf16.msra.mxu0 %v1605
        %1987 = vmatprep.subr.bf16.mxu0 0
        %1988 = vmatpush1.bf16.msra.mxu0 %v1606
        %1989 = vmatprep.subr.bf16.mxu0 0
        %1990 = vmatpush1.bf16.msra.mxu0 %v1607
        %1991 = vmatprep.subr.bf16.mxu0 0
        %1992 = vmatpush1.bf16.msra.mxu0 %v1608
        %1993 = vmatprep.subr.bf16.mxu0 0
        %1994 = vmatpush1.bf16.msra.mxu0 %v1609
        %1995 = vmatprep.subr.bf16.mxu0 0
        %1996 = vmatpush1.bf16.msra.mxu0 %v1610
        %1997 = vmatprep.subr.bf16.mxu0 0
        %1998 = vmatpush1.bf16.msra.mxu0 %v1611
        %1999 = vmatprep.mubr.bf16.mxu0 %v1171
        %2000 = vmatmul.mubr.bf16.gmra.mrb[0].mxu0 %v1170
        %v2001 = vpop.f32.mrb[0].mxu0
        %v2002 = vadd.f32 %v1905, %v2001
        %v2003 = vpop.f32.mrb[0].mxu0
        %v2004 = vpop.f32.mrb[0].mxu0
        %v2005 = vadd.f32 %v1908, %v2004
        %v2006 = vpop.f32.mrb[0].mxu0
        %2007 = vmatprep.mubr.bf16.mxu0 %v1179
        %2008 = vmatmul.mubr.bf16.gmra.mrb[0].mxu0 %v1178
        %v2009 = vpop.f32.mrb[0].mxu0
        %v2010 = vadd.f32 %v1913, %v2009
        %v2011 = vpop.f32.mrb[0].mxu0
        %v2012 = vpop.f32.mrb[0].mxu0
        %v2013 = vadd.f32 %v1916, %v2012
        %v2014 = vpop.f32.mrb[0].mxu0
        %2015 = vmatprep.mubr.bf16.mxu0 %v1187
        %2016 = vmatmul.mubr.bf16.gmra.mrb[0].mxu0 %v1186
        %v2017 = vpop.f32.mrb[0].mxu0
        %v2018 = vadd.f32 %v1921, %v2017
        %v2019 = vpop.f32.mrb[0].mxu0
        %v2020 = vpop.f32.mrb[0].mxu0
        %v2021 = vadd.f32 %v1924, %v2020
        %v2022 = vpop.f32.mrb[0].mxu0
        %2023 = vmatprep.mubr.bf16.mxu0 %v1195
        %2024 = vmatmul.mubr.bf16.gmra.mrb[0].mxu0 %v1194
        %v2025 = vpop.f32.mrb[0].mxu0
        %v2026 = vadd.f32 %v1929, %v2025
        %v2027 = vpop.f32.mrb[0].mxu0
        %v2028 = vpop.f32.mrb[0].mxu0
        %v2029 = vadd.f32 %v1932, %v2028
        %v2030 = vpop.f32.mrb[0].mxu0
        %2031 = vmatprep.mubr.bf16.mxu0 %v1203
        %2032 = vmatmul.mubr.bf16.gmra.mrb[0].mxu0 %v1202
        %v2033 = vpop.f32.mrb[0].mxu0
        %v2034 = vadd.f32 %v1937, %v2033
        %v2035 = vpop.f32.mrb[0].mxu0
        %v2036 = vpop.f32.mrb[0].mxu0
        %v2037 = vadd.f32 %v1940, %v2036
        %v2038 = vpop.f32.mrb[0].mxu0
        %2039 = vmatprep.mubr.bf16.mxu0 %v1211
        %2040 = vmatmul.mubr.bf16.gmra.mrb[0].mxu0 %v1210
        %v2041 = vpop.f32.mrb[0].mxu0
        %v2042 = vadd.f32 %v1945, %v2041
        %v2043 = vpop.f32.mrb[0].mxu0
        %v2044 = vpop.f32.mrb[0].mxu0
        %v2045 = vadd.f32 %v1948, %v2044
        %v2046 = vpop.f32.mrb[0].mxu0
        %2047 = vmatprep.mubr.bf16.mxu0 %v1219
        %2048 = vmatmul.mubr.bf16.gmra.mrb[0].mxu0 %v1218
        %v2049 = vpop.f32.mrb[0].mxu0
        %v2050 = vadd.f32 %v1953, %v2049
        %v2051 = vpop.f32.mrb[0].mxu0
        %v2052 = vpop.f32.mrb[0].mxu0
        %v2053 = vadd.f32 %v1956, %v2052
        %v2054 = vpop.f32.mrb[0].mxu0
        %2055 = vmatprep.mubr.bf16.mxu0 %v1227
        %2056 = vmatmul.mubr.bf16.gmra.mrb[0].mxu0 %v1226
        %v2057 = vpop.f32.mrb[0].mxu0
        %v2058 = vadd.f32 %v1961, %v2057
        %v2059 = vpop.f32.mrb[0].mxu0
        %v2060 = vpop.f32.mrb[0].mxu0
        %v2061 = vadd.f32 %v1964, %v2060
        %v2062 = vpop.f32.mrb[0].mxu0
        %2063 = vdwg.mxu0
        %v2064 = vmax.f32 %v2002, 0.0
        %v2065 = vmax.f32 %v2005, 0.0
        %v2066 = vmax.f32 %v2010, 0.0
        %v2067 = vmax.f32 %v2013, 0.0
        %v2068 = vmax.f32 %v2018, 0.0
        %v2069 = vmax.f32 %v2021, 0.0
        %v2070 = vmax.f32 %v2026, 0.0
        %v2071 = vmax.f32 %v2029, 0.0
        %v2072 = vmax.f32 %v2034, 0.0
        %v2073 = vmax.f32 %v2037, 0.0
        %v2074 = vmax.f32 %v2042, 0.0
        %v2075 = vmax.f32 %v2045, 0.0
        %v2076 = vmax.f32 %v2050, 0.0
        %v2077 = vmax.f32 %v2053, 0.0
        %v2078 = vmax.f32 %v2058, 0.0
        %v2079 = vmax.f32 %v2061, 0.0
        %2080 = vst [vmem:[%s760] sm:$0xff] %v2064
        %2081 = vst [vmem:[%s760 + $0x8] sm:$0xff] %v2065
        %2082 = vst [vmem:[%s760 + $0x10] sm:$0xff] %v2066
        %2083 = vst [vmem:[%s760 + $0x18] sm:$0xff] %v2067
        %2084 = vst [vmem:[%s760 + $0x20] sm:$0xff] %v2068
        %2085 = vst [vmem:[%s760 + $0x28] sm:$0xff] %v2069
        %2086 = vst [vmem:[%s760 + $0x30] sm:$0xff] %v2070
        %2087 = vst [vmem:[%s760 + $0x38] sm:$0xff] %v2071
        %2088 = vst [vmem:[%s760 + $0x40] sm:$0xff] %v2072
        %2089 = vst [vmem:[%s760 + $0x48] sm:$0xff] %v2073
        %2090 = vst [vmem:[%s760 + $0x50] sm:$0xff] %v2074
        %2091 = vst [vmem:[%s760 + $0x58] sm:$0xff] %v2075
        %2092 = vst [vmem:[%s760 + $0x60] sm:$0xff] %v2076
        %2093 = vst [vmem:[%s760 + $0x68] sm:$0xff] %v2077
        %2094 = vst [vmem:[%s760 + $0x70] sm:$0xff] %v2078
        %2095 = vst [vmem:[%s760 + $0x78] sm:$0xff] %v2079
        %s2096 = sand.u32 %s117, 1
        %s2097 = scalar_lea.sflag [#allocation4], %s2096
        %s2098 = sand.u32 %s117, 1
        %s2099 = smul.addr %s2098, 128
        %s2100 = scalar_lea.vmem [#allocation3], %s2099
        // Predicated region
        $region74: #{vehicle_detection_forward.4} parent=68 // pred_check
          %p2101 = pneg %p127
        $region75: #{vehicle_detection_forward.4} parent=68 // pred_check_branch
          %2103 = sbr.rel (%p2101) target = $region77
        $region76: #{vehicle_detection_forward.4} parent=68 // pred_region
          %s2104 = smul.u32 16, %s21
          %s2106 = ssub.s32 2048, 2048
          %2107 = vsyncadd %s2097, %s2106
          %s2108 = smul.addr %s2104, 2
          %s2109 = sadd.s32 %s22, %s2108
          %s2110 = smul.addr %s2109, 128
          %s2111 = scalar_lea.hbm %s3, %s2110
          %s2112 = sshll.u32 %s2100, 4
          %s2113 = int_to_ptr.vmem [resolvable:$true] %s2112
          %2118 = dma.vmem_to_hbm [thread:$0]  %s2113, 2048, %s2111, %s2097, 128, 256, 8
        $region77: #{vehicle_detection_forward.4} parent=68 // pred_fallthru
          _
      $region69: #{vehicle_detection_forward.4} parent=5 // pred_fallthru
        _
      %p2119 = scmp.le.s32.totalorder 2, %s12
      // Predicated region
      $region78: #{vehicle_detection_forward.4} parent=5 // pred_check
        %p2120 = pneg %p2119
      $region79: #{vehicle_detection_forward.4} parent=5 // pred_check_branch
        %2122 = sbr.rel (%p2120) target = $region81
      $region80: #{vehicle_detection_forward.4} parent=5 // pred_region
        %s2123 = ssub.s32 %s12, 2
        // Predicated region
        $region82: #{vehicle_detection_forward.4} parent=80 // pred_check
          %p2124 = pneg %p133
        $region83: #{vehicle_detection_forward.4} parent=80 // pred_check_branch
          %2126 = sbr.rel (%p2124) target = $region85
        $region84: #{vehicle_detection_forward.4} parent=80 // pred_region
          %s2127 = sand.u32 %s118, 1
          %s2128 = scalar_lea.sflag [#allocation4], %s2127
          %s2129 = sand.u32 %s118, 1
          %s2130 = smul.addr %s2129, 128
          %s2131 = scalar_lea.vmem [#allocation3], %s2130
          %2132 = dma.done %s2128, 2048
        $region85: #{vehicle_detection_forward.4} parent=80 // pred_fallthru
          _
      $region81: #{vehicle_detection_forward.4} parent=5 // pred_fallthru
        _
    $region6: #{vehicle_detection_forward.4} parent=1 // loop_footer
      %s16 = sadd.s32 1, %s12
    $region7: #{vehicle_detection_forward.4} parent=1 // loop_footer_branch
      %11 = sbr.rel target = $region3
    $region8: #{vehicle_detection_forward.4} parent=1 // loop_exit
      _
    %2133 = vsyncpa [#allocation4], 1
    %s2134 = scalar_lea.sflag [#allocation4], 1
    %2135 = vsyncpa %s2134, 1

</llo_original>
